<compile_context>
chip_gen: v5e
topology: v5e:2x2
jax: 0.10.0
libtpu: 0.0.40
codegen_flags: <defaults>
</compile_context>

<pallas_src>
import math
import functools

import jax
import jax.numpy as jnp
from jax.experimental import pallas as pl
from jax.experimental.pallas import tpu as pltpu

PHI = (1.0 + 5 ** 0.5) / 2.0
HI = jax.lax.Precision.HIGHEST     # mask-feeding chain (everything except the head)
LO = jax.lax.Precision.DEFAULT     # final head only (provably mask-independent)
OUT_PAD = 128                      # lane-dense padded width of the output head


def _full_spec(shape):
    """BlockSpec for a full-array (non-tiled) VMEM block on a grid=(1,) kernel."""
    nd = len(shape)
    return pl.BlockSpec(shape, lambda i, _nd=nd: (0,) * _nd)


# ----------------------------------------------------------------------------
# Fused forward kernel: embedding -> num_layers quantum blocks -> output head
# ----------------------------------------------------------------------------
def _fused_forward_kernel(x_ref, emb_ref, wqkvt_ref, w2_ref, bias_ref, head_ref,
                          o_ref, *, batch, seq_len, feat, hidden, num_layers,
                          threshold_factor):
    S, H = seq_len, hidden
    inv_sqrt_h = 1.0 / math.sqrt(H)
    dn = (((1,), (1,)), ((), ()))      # contract last dims: q @ k.T without materializing k.T

    # ---- embedding:  (B*S, F) @ (F, H) + b ----
    emb = emb_ref[...]                                                 # (F+1, H)
    h = jnp.dot(x_ref[...], emb[0:feat, :], precision=HI,
                preferred_element_type=jnp.float32) + emb[feat:feat + 1, :]

    row = jax.lax.broadcasted_iota(jnp.int32, (S, S), 0)
    col = jax.lax.broadcasted_iota(jnp.int32, (S, S), 1)
    causal = col <= row
    diag = col == row

    for l in range(num_layers):          # static unroll (num_layers = 3)
        wqkvt = wqkvt_ref[l]             # (H, 3H+2) = [wq | wk | wv | wt]
        w2 = w2_ref[l]                   # (H+2, H)  = [wo ; wf]
        b_l = bias_ref[l]                # (3, 128)  = row0 [bq|bk|bv|bt], row1 bo, row2 bf
        wo, wf = w2[0:H, :], w2[H:H + 2, :]
        bqkvt = b_l[0:1, 0:3 * H + 2]
        bo = b_l[1:2, 0:H]
        bf = b_l[2:3, 0:H]

        # fused q/k/v/quantum projection: one MXU push with N = 3H+2 = 98 (<= 128 lanes)
        qkvt = jnp.dot(h, wqkvt, precision=HI,
                       preferred_element_type=jnp.float32) + bqkvt    # (B*S, 3H+2)
        qp = qkvt[:, 3 * H:3 * H + 2]                                  # (B*S, 2)
        # single small transpose per layer to get lane-broadcast rows for pairwise diffs
        qp_t = qp.T                                                    # (2, B*S)

        ctx_parts = []                    # per-batch context tiles stay in registers
        for b in range(batch):            # static unroll (batch = 2)
            r0, r1 = b * S, (b + 1) * S
            q = qkvt[r0:r1, 0:H]
            k = qkvt[r0:r1, H:2 * H]
            v = qkvt[r0:r1, 2 * H:3 * H]

            # attention scores (contraction over last dims; scale by constant)
            scores = jax.lax.dot_general(
                q, k, dn, precision=HI,
                preferred_element_type=jnp.float32) * inv_sqrt_h       # (S, S)

            qx = qp[r0:r1, 0:1]                                        # (S, 1)
            qy = qp[r0:r1, 1:2]
            dx = qx - qp_t[0:1, r0:r1]       # dx[i, j] = qp[i, 0] - qp[j, 0]
            dy = qy - qp_t[1:2, r0:r1]
            dist_sq = dx * dx + dy * dy

            # threshold = mean + factor * unbiased std (two-pass form kept deliberately;
            # the one-pass E[d^2]-E[d]^2 variant risks cancellation near the mask boundary)
            mean_d = jnp.mean(dist_sq)
            var = jnp.sum((dist_sq - mean_d) ** 2) / (S * S - 1)
            threshold = mean_d + threshold_factor * jnp.sqrt(var)

            # binary_attn == 0  <=>  not(valid) or forward_bias == 0; forward_bias
            # vanishes only at phase == pi, i.e. dy == 0 and dx < 0 -> no atan2/cos.
            bias_zero = jnp.logical_and(dy == 0.0, dx < 0.0)
            keep = jnp.logical_and(
                jnp.logical_and(dist_sq <= threshold, causal),
                jnp.logical_not(bias_zero))
            keep = jnp.logical_or(keep, diag)   # diagonal always valid; avoids all-masked rows

            masked = jnp.where(keep, scores, -jnp.inf)
            m = jnp.max(masked, axis=-1, keepdims=True)
            e = jnp.exp(masked - m)
            weights = e / jnp.sum(e, axis=-1, keepdims=True)            # exact softmax

            ctx_parts.append(jnp.dot(weights, v, precision=HI,
                                     preferred_element_type=jnp.float32))

        ctx = jnp.concatenate(ctx_parts, axis=0)                        # (B*S, H), no scratch
        out = jnp.dot(ctx, wo, precision=HI,
                      preferred_element_type=jnp.float32) + bo

        # F.normalize(qp, p=2, dim=-1) via rsqrt (no divide)
        sumsq = jnp.sum(qp * qp, axis=-1, keepdims=True)
        rn = qp * jax.lax.rsqrt(jnp.maximum(sumsq, 1e-24))
        qo = jnp.dot(rn, wf, precision=HI,
                     preferred_element_type=jnp.float32) + bf

        h = h + out + 0.1 * qo

    # final projection: lane-dense 128-wide store; DEFAULT precision is safe here
    # because the head feeds nothing discontinuous.
    head = head_ref[...]                                                # (H+1, 128)
    o_ref[...] = jnp.dot(h, head[0:H, :], precision=LO,
                         preferred_element_type=jnp.float32) + head[H:H + 1, :]


# ----------------------------------------------------------------------------
# Full model forward (single pallas_call + coherence under the same jit)
# ----------------------------------------------------------------------------
def financial_quantum_forward(x, params, *, out_dim):
    B, S, F = x.shape
    H = params["emb"].shape[1]
    L = params["wqkvt"].shape[0]
    x2 = x.reshape(B * S, F)

    # --- coherence side metric (plain JAX, fused under the same jit) ---
    # atan2(sin p, cos p) only wraps the angle; sin/cos are unchanged by the wrap, so the
    # stack/atan2 round-trip of encode_phase is skipped.
    mn = jnp.min(x2, axis=1, keepdims=True)
    mx = jnp.max(x2, axis=1, keepdims=True)
    phase = (2.0 * math.pi * PHI) * (x2 - mn) / (mx - mn + 1e-8)
    sin_mean = jnp.mean(jnp.sin(phase).reshape(B, S, F), axis=(1, 2))
    cos_mean = jnp.mean(jnp.cos(phase).reshape(B, S, F), axis=(1, 2))
    coherence = jnp.mean(jnp.sqrt(sin_mean ** 2 + cos_mean ** 2))

    kern = functools.partial(
        _fused_forward_kernel, batch=B, seq_len=S, feat=F, hidden=H,
        num_layers=L, threshold_factor=1.25)

    operands = (x2, params["emb"], params["wqkvt"], params["w2"],
                params["bias"], params["outhead"])

    out_pad = pl.pallas_call(
        kern,
        out_shape=jax.ShapeDtypeStruct((B * S, OUT_PAD), jnp.float32),
        grid=(1,),
        in_specs=[_full_spec(a.shape) for a in operands],
        out_specs=_full_spec((B * S, OUT_PAD)),
        compiler_params=pltpu.CompilerParams(dimension_semantics=("arbitrary",)),
    )(*operands)

    out = out_pad[:, :out_dim].reshape(B, S, out_dim)
    return out, coherence


# ----------------------------------------------------------------------------
# Parameter init (deterministic, synthetic; packed buffers built once here)
# ----------------------------------------------------------------------------
def init_params(key, input_dim, hidden_dim, output_dim, num_layers):
    H = hidden_dim
    keys = iter(jax.random.split(key, 4 + 7 * num_layers))

    def nrm(shape, scale):
        return (scale * jax.random.normal(next(keys), shape)).astype(jnp.float32)

    emb_w = nrm((input_dim, H), 0.1)
    emb_b = nrm((1, H), 0.1)
    emb = jnp.concatenate([emb_w, emb_b], axis=0)                       # (F+1, H)

    wqkvt_l, w2_l, bias_l = [], [], []
    for _ in range(num_layers):
        wq = nrm((H, H), 0.02)
        wk = nrm((H, H), 0.02)
        wv = nrm((H, H), 0.02)
        wt = nrm((H, 2), 0.1)
        wqkvt_l.append(jnp.concatenate([wq, wk, wv, wt], axis=1))       # (H, 3H+2)
        wo = nrm((H, H), 0.02)
        wf = nrm((2, H), 0.02)
        w2_l.append(jnp.concatenate([wo, wf], axis=0))                  # (H+2, H)
        bt = nrm((1, 2), 0.1)
        # Hebbian biases (q/k/v/o/from_quantum) start at zero; to_quantum bias is random.
        row0 = jnp.zeros((1, 128), jnp.float32).at[:, 3 * H:3 * H + 2].set(bt)
        row1 = jnp.zeros((1, 128), jnp.float32)                         # bo
        row2 = jnp.zeros((1, 128), jnp.float32)                         # bf
        bias_l.append(jnp.concatenate([row0, row1, row2], axis=0))      # (3, 128)

    out_w = nrm((H, output_dim), 0.1)
    out_b = nrm((1, output_dim), 0.1)
    outhead = jnp.zeros((H + 1, OUT_PAD), jnp.float32)
    outhead = outhead.at[:H, :output_dim].set(out_w)
    outhead = outhead.at[H:, :output_dim].set(out_b)                    # (H+1, 128)

    return {"emb": emb, "wqkvt": jnp.stack(wqkvt_l), "w2": jnp.stack(w2_l),
            "bias": jnp.stack(bias_l), "outhead": outhead}


# ----------------------------------------------------------------------------
# Plain-JAX reference (for the correctness check)
# ----------------------------------------------------------------------------
def reference_forward(x, params, *, out_dim):
    B, S, F = x.shape
    H = params["emb"].shape[1]
    L = params["wqkvt"].shape[0]
    emb_w = params["emb"][0:F, :]
    emb_b = params["emb"][F:F + 1, :]
    h = jnp.dot(x, emb_w, precision=HI) + emb_b
    causal = jnp.tril(jnp.ones((S, S), dtype=bool))[None]
    diag = jnp.eye(S, dtype=bool)[None]
    for l in range(L):
        wqkvt = params["wqkvt"][l]
        wq, wk = wqkvt[:, 0:H], wqkvt[:, H:2 * H]
        wv, wt = wqkvt[:, 2 * H:3 * H], wqkvt[:, 3 * H:3 * H + 2]
        b_l = params["bias"][l]
        bq, bk = b_l[0:1, 0:H], b_l[0:1, H:2 * H]
        bv, bt = b_l[0:1, 2 * H:3 * H], b_l[0:1, 3 * H:3 * H + 2]
        bo, bf = b_l[1:2, 0:H], b_l[2:3, 0:H]
        wo = params["w2"][l][0:H, :]
        wf = params["w2"][l][H:H + 2, :]

        q = jnp.dot(h, wq, precision=HI) + bq
        k = jnp.dot(h, wk, precision=HI) + bk
        v = jnp.dot(h, wv, precision=HI) + bv
        scores = jnp.einsum("bid,bjd->bij", q, k, precision=HI) / math.sqrt(H)

        qp = jnp.dot(h, wt, precision=HI) + bt
        diff = qp[:, :, None, :] - qp[:, None, :, :]
        dx, dy = diff[..., 0], diff[..., 1]
        dist_sq = dx * dx + dy * dy
        mean_d = jnp.mean(dist_sq, axis=(-1, -2), keepdims=True)
        std_d = jnp.sqrt(jnp.sum((dist_sq - mean_d) ** 2, axis=(-1, -2),
                                 keepdims=True) / (S * S - 1))
        thr = mean_d + 1.25 * std_d
        # masked_fill(binary_attn == 0, -inf): in exact arithmetic binary_attn == 0 iff
        # not(valid) or (dy == 0 and dx < 0); same algebraic form as the kernel.
        bias_zero = (dy == 0.0) & (dx < 0.0)
        keep = ((dist_sq <= thr) & causal & (~bias_zero)) | diag
        masked = jnp.where(keep, scores, -jnp.inf)
        w_ = jax.nn.softmax(masked, axis=-1)
        ctx = jnp.einsum("bij,bjd->bid", w_, v, precision=HI)
        out = jnp.dot(ctx, wo, precision=HI) + bo
        rn = qp / jnp.maximum(jnp.linalg.norm(qp, axis=-1, keepdims=True), 1e-12)
        qo = jnp.dot(rn, wf, precision=HI) + bf
        h = h + out + 0.1 * qo
    out_w = params["outhead"][0:H, 0:out_dim]
    out_b = params["outhead"][H:H + 1, 0:out_dim]
    return jnp.dot(h, out_w, precision=HI) + out_b


def reference_coherence(x):
    """Literal encode_phase -> atan2 round-trip, to validate the shortcut."""
    B, S, F = x.shape
    x2 = x.reshape(B * S, F)
    mn = jnp.min(x2, axis=1, keepdims=True)
    mx = jnp.max(x2, axis=1, keepdims=True)
    normalized = (x2 - mn) / (mx - mn + 1e-8)
    ph = 2.0 * math.pi * normalized * PHI
    enc = jnp.stack([jnp.cos(ph), jnp.sin(ph)], axis=-1)
    ph2 = jnp.arctan2(enc[..., 1], enc[..., 0])
    sm = jnp.mean(jnp.sin(ph2).reshape(B, S, F), axis=(1, 2))
    cm = jnp.mean(jnp.cos(ph2).reshape(B, S, F), axis=(1, 2))
    return jnp.mean(jnp.sqrt(sm ** 2 + cm ** 2))


if __name__ == "__main__":
    B, S, F_IN, HID, OUT, LAYERS = 2, 8, 4, 32, 2, 3
    key = jax.random.PRNGKey(0)
    kx, kp = jax.random.split(key)
    x = jax.random.normal(kx, (B, S, F_IN), dtype=jnp.float32)
    params = init_params(kp, F_IN, HID, OUT, LAYERS)

    fwd = jax.jit(functools.partial(financial_quantum_forward, out_dim=OUT))
    out, coherence = fwd(x, params)
    out = jax.block_until_ready(out)

    assert out.shape == (B, S, OUT)
    assert bool(jnp.all(jnp.isfinite(out)))
    assert bool(jnp.isfinite(coherence))

    ref = reference_forward(x, params, out_dim=OUT)
    assert bool(jnp.allclose(out, ref, atol=5e-3, rtol=5e-3))

    coh_ref = reference_coherence(x)
    assert abs(float(coherence) - float(coh_ref)) < 1e-4

    print("KERNEL_OK")
</pallas_src>

<mosaic_0001>
module attributes {stable_mosaic.version = 11 : i64} {
  func.func @_fused_forward_kernel(%arg0: i32, %arg1: memref<16x4xf32, #tpu.memory_space<vmem>>, %arg2: memref<5x32xf32, #tpu.memory_space<vmem>>, %arg3: memref<3x32x98xf32, #tpu.memory_space<vmem>>, %arg4: memref<3x34x32xf32, #tpu.memory_space<vmem>>, %arg5: memref<3x3x128xf32, #tpu.memory_space<vmem>>, %arg6: memref<33x128xf32, #tpu.memory_space<vmem>>, %arg7: memref<16x128xf32, #tpu.memory_space<vmem>>) attributes {dimension_semantics = [#tpu.dimension_semantics<arbitrary>], iteration_bounds = array<i64: 1>, scalar_prefetch = 0 : i64, scratch_operands = 0 : i64, tpu.core_type = #tpu.core_type<tc>, window_params = [{pipeline_mode = #tpu.pipeline_mode<synchronous>, transform_indices = @transform_0, window_bounds = array<i64: 16, 4>}, {pipeline_mode = #tpu.pipeline_mode<synchronous>, transform_indices = @transform_1, window_bounds = array<i64: 5, 32>}, {pipeline_mode = #tpu.pipeline_mode<synchronous>, transform_indices = @transform_2, window_bounds = array<i64: 3, 32, 98>}, {pipeline_mode = #tpu.pipeline_mode<synchronous>, transform_indices = @transform_3, window_bounds = array<i64: 3, 34, 32>}, {pipeline_mode = #tpu.pipeline_mode<synchronous>, transform_indices = @transform_4, window_bounds = array<i64: 3, 3, 128>}, {pipeline_mode = #tpu.pipeline_mode<synchronous>, transform_indices = @transform_5, window_bounds = array<i64: 33, 128>}, {pipeline_mode = #tpu.pipeline_mode<synchronous>, transform_indices = @transform_6, window_bounds = array<i64: 16, 128>}]} {
    %c0 = arith.constant 0 : index
    %c0_0 = arith.constant 0 : index
    %0 = vector.load %arg2[%c0, %c0_0] : memref<5x32xf32, #tpu.memory_space<vmem>>, vector<5x32xf32>
    %c0_1 = arith.constant 0 : index
    %c0_2 = arith.constant 0 : index
    %1 = vector.load %arg1[%c0_1, %c0_2] : memref<16x4xf32, #tpu.memory_space<vmem>>, vector<16x4xf32>
    %2 = vector.extract_strided_slice %0 {offsets = [0, 0], sizes = [4, 32], strides = [1, 1]} : vector<5x32xf32> to vector<4x32xf32>
    %cst = arith.constant dense<0.000000e+00> : vector<16x32xf32>
    %3 = tpu.matmul %1, %2, %cst {dimension_numbers = #tpu.dot_dimension_numbers<[1], [0], [0], [1], [0, 0, 1, 1], [], []>, precision = #tpu.contract_precision<fp32>} : vector<16x4xf32>, vector<4x32xf32>, vector<16x32xf32> -> vector<16x32xf32>
    %4 = vector.extract_strided_slice %0 {offsets = [4, 0], sizes = [1, 32], strides = [1, 1]} : vector<5x32xf32> to vector<1x32xf32>
    %5 = vector.broadcast %4 : vector<1x32xf32> to vector<16x32xf32>
    %6 = arith.addf %3, %5 : vector<16x32xf32>
    %7 = tpu.iota {dimensions = array<i32: 0>} : vector<8x8xi32>
    %8 = tpu.iota {dimensions = array<i32: 1>} : vector<8x8xi32>
    %9 = arith.cmpi sle, %8, %7 : vector<8x8xi32>
    %10 = arith.cmpi eq, %8, %7 : vector<8x8xi32>
    %c0_3 = arith.constant 0 : index
    %c0_4 = arith.constant 0 : index
    %c0_5 = arith.constant 0 : index
    %11 = vector.load %arg3[%c0_3, %c0_4, %c0_5] : memref<3x32x98xf32, #tpu.memory_space<vmem>>, vector<1x32x98xf32>
    %12 = vector.shape_cast %11 : vector<1x32x98xf32> to vector<32x98xf32>
    %c0_6 = arith.constant 0 : index
    %c0_7 = arith.constant 0 : index
    %c0_8 = arith.constant 0 : index
    %13 = vector.load %arg4[%c0_6, %c0_7, %c0_8] : memref<3x34x32xf32, #tpu.memory_space<vmem>>, vector<1x34x32xf32>
    %14 = vector.shape_cast %13 : vector<1x34x32xf32> to vector<34x32xf32>
    %c0_9 = arith.constant 0 : index
    %c0_10 = arith.constant 0 : index
    %c0_11 = arith.constant 0 : index
    %15 = vector.load %arg5[%c0_9, %c0_10, %c0_11] : memref<3x3x128xf32, #tpu.memory_space<vmem>>, vector<1x3x128xf32>
    %16 = vector.shape_cast %15 : vector<1x3x128xf32> to vector<3x128xf32>
    %17 = vector.extract_strided_slice %14 {offsets = [0, 0], sizes = [32, 32], strides = [1, 1]} : vector<34x32xf32> to vector<32x32xf32>
    %18 = vector.extract_strided_slice %14 {offsets = [32, 0], sizes = [2, 32], strides = [1, 1]} : vector<34x32xf32> to vector<2x32xf32>
    %19 = vector.extract_strided_slice %16 {offsets = [0, 0], sizes = [1, 98], strides = [1, 1]} : vector<3x128xf32> to vector<1x98xf32>
    %20 = vector.extract_strided_slice %16 {offsets = [1, 0], sizes = [1, 32], strides = [1, 1]} : vector<3x128xf32> to vector<1x32xf32>
    %21 = vector.extract_strided_slice %16 {offsets = [2, 0], sizes = [1, 32], strides = [1, 1]} : vector<3x128xf32> to vector<1x32xf32>
    %cst_12 = arith.constant dense<0.000000e+00> : vector<16x98xf32>
    %22 = tpu.matmul %6, %12, %cst_12 {dimension_numbers = #tpu.dot_dimension_numbers<[1], [0], [0], [1], [0, 0, 1, 1], [], []>, precision = #tpu.contract_precision<fp32>} : vector<16x32xf32>, vector<32x98xf32>, vector<16x98xf32> -> vector<16x98xf32>
    %23 = vector.broadcast %19 : vector<1x98xf32> to vector<16x98xf32>
    %24 = arith.addf %22, %23 : vector<16x98xf32>
    %25 = vector.extract_strided_slice %24 {offsets = [0, 96], sizes = [16, 2], strides = [1, 1]} : vector<16x98xf32> to vector<16x2xf32>
    %26 = tpu.transpose %25, [1, 0] : vector<16x2xf32> -> vector<2x16xf32>
    %27 = vector.extract_strided_slice %24 {offsets = [0, 0], sizes = [8, 32], strides = [1, 1]} : vector<16x98xf32> to vector<8x32xf32>
    %28 = vector.extract_strided_slice %24 {offsets = [0, 32], sizes = [8, 32], strides = [1, 1]} : vector<16x98xf32> to vector<8x32xf32>
    %29 = vector.extract_strided_slice %24 {offsets = [0, 64], sizes = [8, 32], strides = [1, 1]} : vector<16x98xf32> to vector<8x32xf32>
    %cst_13 = arith.constant dense<0.000000e+00> : vector<8x8xf32>
    %30 = tpu.matmul %27, %28, %cst_13 {dimension_numbers = #tpu.dot_dimension_numbers<[1], [1], [0], [0], [0, 0, 1, 0], [], []>, precision = #tpu.contract_precision<fp32>} : vector<8x32xf32>, vector<8x32xf32>, vector<8x8xf32> -> vector<8x8xf32>
    %cst_14 = arith.constant 0.176776692 : f32
    %31 = vector.broadcast %cst_14 : f32 to vector<8x8xf32>
    %32 = arith.mulf %30, %31 : vector<8x8xf32>
    %33 = vector.extract_strided_slice %25 {offsets = [0, 0], sizes = [8, 1], strides = [1, 1]} : vector<16x2xf32> to vector<8x1xf32>
    %34 = vector.extract_strided_slice %25 {offsets = [0, 1], sizes = [8, 1], strides = [1, 1]} : vector<16x2xf32> to vector<8x1xf32>
    %35 = vector.extract_strided_slice %26 {offsets = [0, 0], sizes = [1, 8], strides = [1, 1]} : vector<2x16xf32> to vector<1x8xf32>
    %36 = vector.broadcast %33 : vector<8x1xf32> to vector<8x8xf32>
    %37 = vector.broadcast %35 : vector<1x8xf32> to vector<8x8xf32>
    %38 = arith.subf %36, %37 : vector<8x8xf32>
    %39 = vector.extract_strided_slice %26 {offsets = [1, 0], sizes = [1, 8], strides = [1, 1]} : vector<2x16xf32> to vector<1x8xf32>
    %40 = vector.broadcast %34 : vector<8x1xf32> to vector<8x8xf32>
    %41 = vector.broadcast %39 : vector<1x8xf32> to vector<8x8xf32>
    %42 = arith.subf %40, %41 : vector<8x8xf32>
    %43 = arith.mulf %38, %38 : vector<8x8xf32>
    %44 = arith.mulf %42, %42 : vector<8x8xf32>
    %45 = arith.addf %43, %44 : vector<8x8xf32>
    %46 = vector.shape_cast %45 : vector<8x8xf32> to vector<1x8x8xf32>
    %cst_15 = arith.constant dense<0.000000e+00> : vector<1xf32>
    %47 = vector.multi_reduction <add>, %46, %cst_15 [1, 2] : vector<1x8x8xf32> to vector<1xf32>
    %48 = vector.shape_cast %47 : vector<1xf32> to vector<1x1x1xf32>
    %49 = vector.extract %48[0, 0, 0] : f32 from vector<1x1x1xf32>
    %cst_16 = arith.constant 6.400000e+01 : f32
    %50 = arith.divf %49, %cst_16 : f32
    %51 = vector.broadcast %50 : f32 to vector<8x8xf32>
    %52 = arith.subf %45, %51 : vector<8x8xf32>
    %53 = arith.mulf %52, %52 : vector<8x8xf32>
    %54 = vector.shape_cast %53 : vector<8x8xf32> to vector<1x8x8xf32>
    %cst_17 = arith.constant dense<0.000000e+00> : vector<1xf32>
    %55 = vector.multi_reduction <add>, %54, %cst_17 [1, 2] : vector<1x8x8xf32> to vector<1xf32>
    %56 = vector.shape_cast %55 : vector<1xf32> to vector<1x1x1xf32>
    %57 = vector.extract %56[0, 0, 0] : f32 from vector<1x1x1xf32>
    %cst_18 = arith.constant 6.300000e+01 : f32
    %58 = arith.divf %57, %cst_18 : f32
    %59 = math.sqrt %58 : f32
    %cst_19 = arith.constant 1.250000e+00 : f32
    %60 = arith.mulf %cst_19, %59 : f32
    %61 = arith.addf %50, %60 : f32
    %cst_20 = arith.constant 0.000000e+00 : f32
    %62 = vector.broadcast %cst_20 : f32 to vector<8x8xf32>
    %63 = arith.cmpf oeq, %42, %62 : vector<8x8xf32>
    %cst_21 = arith.constant 0.000000e+00 : f32
    %64 = vector.broadcast %cst_21 : f32 to vector<8x8xf32>
    %65 = arith.cmpf olt, %38, %64 : vector<8x8xf32>
    %66 = arith.andi %63, %65 : vector<8x8xi1>
    %67 = vector.broadcast %61 : f32 to vector<8x8xf32>
    %68 = arith.cmpf ole, %45, %67 : vector<8x8xf32>
    %69 = arith.andi %68, %9 : vector<8x8xi1>
    %cst_22 = arith.constant dense<true> : vector<8x8xi1>
    %70 = arith.xori %66, %cst_22 : vector<8x8xi1>
    %71 = arith.andi %69, %70 : vector<8x8xi1>
    %72 = arith.ori %71, %10 : vector<8x8xi1>
    %cst_23 = arith.constant 0xFF800000 : f32
    %73 = vector.broadcast %cst_23 : f32 to vector<8x8xf32>
    %74 = arith.select %72, %32, %73 : vector<8x8xi1>, vector<8x8xf32>
    %cst_24 = arith.constant dense<0xFF800000> : vector<8xf32>
    %75 = vector.multi_reduction <maximumf>, %74, %cst_24 [1] : vector<8x8xf32> to vector<8xf32>
    %76 = vector.shape_cast %75 : vector<8xf32> to vector<8x1xf32>
    %77 = vector.broadcast %76 : vector<8x1xf32> to vector<8x8xf32>
    %78 = arith.subf %74, %77 : vector<8x8xf32>
    %79 = math.exp %78 : vector<8x8xf32>
    %cst_25 = arith.constant dense<0.000000e+00> : vector<8xf32>
    %80 = vector.multi_reduction <add>, %79, %cst_25 [1] : vector<8x8xf32> to vector<8xf32>
    %81 = vector.shape_cast %80 : vector<8xf32> to vector<8x1xf32>
    %82 = vector.broadcast %81 : vector<8x1xf32> to vector<8x8xf32>
    %83 = arith.divf %79, %82 : vector<8x8xf32>
    %cst_26 = arith.constant dense<0.000000e+00> : vector<8x32xf32>
    %84 = tpu.matmul %83, %29, %cst_26 {dimension_numbers = #tpu.dot_dimension_numbers<[1], [0], [0], [1], [0, 0, 1, 1], [], []>, precision = #tpu.contract_precision<fp32>} : vector<8x8xf32>, vector<8x32xf32>, vector<8x32xf32> -> vector<8x32xf32>
    %85 = vector.extract_strided_slice %24 {offsets = [8, 0], sizes = [8, 32], strides = [1, 1]} : vector<16x98xf32> to vector<8x32xf32>
    %86 = vector.extract_strided_slice %24 {offsets = [8, 32], sizes = [8, 32], strides = [1, 1]} : vector<16x98xf32> to vector<8x32xf32>
    %87 = vector.extract_strided_slice %24 {offsets = [8, 64], sizes = [8, 32], strides = [1, 1]} : vector<16x98xf32> to vector<8x32xf32>
    %cst_27 = arith.constant dense<0.000000e+00> : vector<8x8xf32>
    %88 = tpu.matmul %85, %86, %cst_27 {dimension_numbers = #tpu.dot_dimension_numbers<[1], [1], [0], [0], [0, 0, 1, 0], [], []>, precision = #tpu.contract_precision<fp32>} : vector<8x32xf32>, vector<8x32xf32>, vector<8x8xf32> -> vector<8x8xf32>
    %cst_28 = arith.constant 0.176776692 : f32
    %89 = vector.broadcast %cst_28 : f32 to vector<8x8xf32>
    %90 = arith.mulf %88, %89 : vector<8x8xf32>
    %91 = vector.extract_strided_slice %25 {offsets = [8, 0], sizes = [8, 1], strides = [1, 1]} : vector<16x2xf32> to vector<8x1xf32>
    %92 = vector.extract_strided_slice %25 {offsets = [8, 1], sizes = [8, 1], strides = [1, 1]} : vector<16x2xf32> to vector<8x1xf32>
    %93 = vector.extract_strided_slice %26 {offsets = [0, 8], sizes = [1, 8], strides = [1, 1]} : vector<2x16xf32> to vector<1x8xf32>
    %94 = vector.broadcast %91 : vector<8x1xf32> to vector<8x8xf32>
    %95 = vector.broadcast %93 : vector<1x8xf32> to vector<8x8xf32>
    %96 = arith.subf %94, %95 : vector<8x8xf32>
    %97 = vector.extract_strided_slice %26 {offsets = [1, 8], sizes = [1, 8], strides = [1, 1]} : vector<2x16xf32> to vector<1x8xf32>
    %98 = vector.broadcast %92 : vector<8x1xf32> to vector<8x8xf32>
    %99 = vector.broadcast %97 : vector<1x8xf32> to vector<8x8xf32>
    %100 = arith.subf %98, %99 : vector<8x8xf32>
    %101 = arith.mulf %96, %96 : vector<8x8xf32>
    %102 = arith.mulf %100, %100 : vector<8x8xf32>
    %103 = arith.addf %101, %102 : vector<8x8xf32>
    %104 = vector.shape_cast %103 : vector<8x8xf32> to vector<1x8x8xf32>
    %cst_29 = arith.constant dense<0.000000e+00> : vector<1xf32>
    %105 = vector.multi_reduction <add>, %104, %cst_29 [1, 2] : vector<1x8x8xf32> to vector<1xf32>
    %106 = vector.shape_cast %105 : vector<1xf32> to vector<1x1x1xf32>
    %107 = vector.extract %106[0, 0, 0] : f32 from vector<1x1x1xf32>
    %cst_30 = arith.constant 6.400000e+01 : f32
    %108 = arith.divf %107, %cst_30 : f32
    %109 = vector.broadcast %108 : f32 to vector<8x8xf32>
    %110 = arith.subf %103, %109 : vector<8x8xf32>
    %111 = arith.mulf %110, %110 : vector<8x8xf32>
    %112 = vector.shape_cast %111 : vector<8x8xf32> to vector<1x8x8xf32>
    %cst_31 = arith.constant dense<0.000000e+00> : vector<1xf32>
    %113 = vector.multi_reduction <add>, %112, %cst_31 [1, 2] : vector<1x8x8xf32> to vector<1xf32>
    %114 = vector.shape_cast %113 : vector<1xf32> to vector<1x1x1xf32>
    %115 = vector.extract %114[0, 0, 0] : f32 from vector<1x1x1xf32>
    %cst_32 = arith.constant 6.300000e+01 : f32
    %116 = arith.divf %115, %cst_32 : f32
    %117 = math.sqrt %116 : f32
    %cst_33 = arith.constant 1.250000e+00 : f32
    %118 = arith.mulf %cst_33, %117 : f32
    %119 = arith.addf %108, %118 : f32
    %cst_34 = arith.constant 0.000000e+00 : f32
    %120 = vector.broadcast %cst_34 : f32 to vector<8x8xf32>
    %121 = arith.cmpf oeq, %100, %120 : vector<8x8xf32>
    %cst_35 = arith.constant 0.000000e+00 : f32
    %122 = vector.broadcast %cst_35 : f32 to vector<8x8xf32>
    %123 = arith.cmpf olt, %96, %122 : vector<8x8xf32>
    %124 = arith.andi %121, %123 : vector<8x8xi1>
    %125 = vector.broadcast %119 : f32 to vector<8x8xf32>
    %126 = arith.cmpf ole, %103, %125 : vector<8x8xf32>
    %127 = arith.andi %126, %9 : vector<8x8xi1>
    %cst_36 = arith.constant dense<true> : vector<8x8xi1>
    %128 = arith.xori %124, %cst_36 : vector<8x8xi1>
    %129 = arith.andi %127, %128 : vector<8x8xi1>
    %130 = arith.ori %129, %10 : vector<8x8xi1>
    %cst_37 = arith.constant 0xFF800000 : f32
    %131 = vector.broadcast %cst_37 : f32 to vector<8x8xf32>
    %132 = arith.select %130, %90, %131 : vector<8x8xi1>, vector<8x8xf32>
    %cst_38 = arith.constant dense<0xFF800000> : vector<8xf32>
    %133 = vector.multi_reduction <maximumf>, %132, %cst_38 [1] : vector<8x8xf32> to vector<8xf32>
    %134 = vector.shape_cast %133 : vector<8xf32> to vector<8x1xf32>
    %135 = vector.broadcast %134 : vector<8x1xf32> to vector<8x8xf32>
    %136 = arith.subf %132, %135 : vector<8x8xf32>
    %137 = math.exp %136 : vector<8x8xf32>
    %cst_39 = arith.constant dense<0.000000e+00> : vector<8xf32>
    %138 = vector.multi_reduction <add>, %137, %cst_39 [1] : vector<8x8xf32> to vector<8xf32>
    %139 = vector.shape_cast %138 : vector<8xf32> to vector<8x1xf32>
    %140 = vector.broadcast %139 : vector<8x1xf32> to vector<8x8xf32>
    %141 = arith.divf %137, %140 : vector<8x8xf32>
    %cst_40 = arith.constant dense<0.000000e+00> : vector<8x32xf32>
    %142 = tpu.matmul %141, %87, %cst_40 {dimension_numbers = #tpu.dot_dimension_numbers<[1], [0], [0], [1], [0, 0, 1, 1], [], []>, precision = #tpu.contract_precision<fp32>} : vector<8x8xf32>, vector<8x32xf32>, vector<8x32xf32> -> vector<8x32xf32>
    %143 = tpu.concatenate %84, %142 in 0 : vector<8x32xf32>, vector<8x32xf32> -> vector<16x32xf32>
    %cst_41 = arith.constant dense<0.000000e+00> : vector<16x32xf32>
    %144 = tpu.matmul %143, %17, %cst_41 {dimension_numbers = #tpu.dot_dimension_numbers<[1], [0], [0], [1], [0, 0, 1, 1], [], []>, precision = #tpu.contract_precision<fp32>} : vector<16x32xf32>, vector<32x32xf32>, vector<16x32xf32> -> vector<16x32xf32>
    %145 = vector.broadcast %20 : vector<1x32xf32> to vector<16x32xf32>
    %146 = arith.addf %144, %145 : vector<16x32xf32>
    %147 = arith.mulf %25, %25 : vector<16x2xf32>
    %cst_42 = arith.constant dense<0.000000e+00> : vector<16xf32>
    %148 = vector.multi_reduction <add>, %147, %cst_42 [1] : vector<16x2xf32> to vector<16xf32>
    %149 = vector.shape_cast %148 : vector<16xf32> to vector<16x1xf32>
    %cst_43 = arith.constant 1.000000e-24 : f32
    %150 = vector.broadcast %cst_43 : f32 to vector<16x1xf32>
    %151 = arith.maximumf %149, %150 : vector<16x1xf32>
    %152 = math.rsqrt %151 : vector<16x1xf32>
    %153 = vector.broadcast %152 : vector<16x1xf32> to vector<16x2xf32>
    %154 = arith.mulf %25, %153 : vector<16x2xf32>
    %cst_44 = arith.constant dense<0.000000e+00> : vector<16x32xf32>
    %155 = tpu.matmul %154, %18, %cst_44 {dimension_numbers = #tpu.dot_dimension_numbers<[1], [0], [0], [1], [0, 0, 1, 1], [], []>, precision = #tpu.contract_precision<fp32>} : vector<16x2xf32>, vector<2x32xf32>, vector<16x32xf32> -> vector<16x32xf32>
    %156 = vector.broadcast %21 : vector<1x32xf32> to vector<16x32xf32>
    %157 = arith.addf %155, %156 : vector<16x32xf32>
    %158 = arith.addf %6, %146 : vector<16x32xf32>
    %cst_45 = arith.constant 1.000000e-01 : f32
    %159 = vector.broadcast %cst_45 : f32 to vector<16x32xf32>
    %160 = arith.mulf %159, %157 : vector<16x32xf32>
    %161 = arith.addf %158, %160 : vector<16x32xf32>
    %c1 = arith.constant 1 : index
    %c0_46 = arith.constant 0 : index
    %c0_47 = arith.constant 0 : index
    %162 = vector.load %arg3[%c1, %c0_46, %c0_47] : memref<3x32x98xf32, #tpu.memory_space<vmem>>, vector<1x32x98xf32>
    %163 = vector.shape_cast %162 : vector<1x32x98xf32> to vector<32x98xf32>
    %c1_48 = arith.constant 1 : index
    %c0_49 = arith.constant 0 : index
    %c0_50 = arith.constant 0 : index
    %164 = vector.load %arg4[%c1_48, %c0_49, %c0_50] : memref<3x34x32xf32, #tpu.memory_space<vmem>>, vector<1x34x32xf32>
    %165 = vector.shape_cast %164 : vector<1x34x32xf32> to vector<34x32xf32>
    %c1_51 = arith.constant 1 : index
    %c0_52 = arith.constant 0 : index
    %c0_53 = arith.constant 0 : index
    %166 = vector.load %arg5[%c1_51, %c0_52, %c0_53] : memref<3x3x128xf32, #tpu.memory_space<vmem>>, vector<1x3x128xf32>
    %167 = vector.shape_cast %166 : vector<1x3x128xf32> to vector<3x128xf32>
    %168 = vector.extract_strided_slice %165 {offsets = [0, 0], sizes = [32, 32], strides = [1, 1]} : vector<34x32xf32> to vector<32x32xf32>
    %169 = vector.extract_strided_slice %165 {offsets = [32, 0], sizes = [2, 32], strides = [1, 1]} : vector<34x32xf32> to vector<2x32xf32>
    %170 = vector.extract_strided_slice %167 {offsets = [0, 0], sizes = [1, 98], strides = [1, 1]} : vector<3x128xf32> to vector<1x98xf32>
    %171 = vector.extract_strided_slice %167 {offsets = [1, 0], sizes = [1, 32], strides = [1, 1]} : vector<3x128xf32> to vector<1x32xf32>
    %172 = vector.extract_strided_slice %167 {offsets = [2, 0], sizes = [1, 32], strides = [1, 1]} : vector<3x128xf32> to vector<1x32xf32>
    %cst_54 = arith.constant dense<0.000000e+00> : vector<16x98xf32>
    %173 = tpu.matmul %161, %163, %cst_54 {dimension_numbers = #tpu.dot_dimension_numbers<[1], [0], [0], [1], [0, 0, 1, 1], [], []>, precision = #tpu.contract_precision<fp32>} : vector<16x32xf32>, vector<32x98xf32>, vector<16x98xf32> -> vector<16x98xf32>
    %174 = vector.broadcast %170 : vector<1x98xf32> to vector<16x98xf32>
    %175 = arith.addf %173, %174 : vector<16x98xf32>
    %176 = vector.extract_strided_slice %175 {offsets = [0, 96], sizes = [16, 2], strides = [1, 1]} : vector<16x98xf32> to vector<16x2xf32>
    %177 = tpu.transpose %176, [1, 0] : vector<16x2xf32> -> vector<2x16xf32>
    %178 = vector.extract_strided_slice %175 {offsets = [0, 0], sizes = [8, 32], strides = [1, 1]} : vector<16x98xf32> to vector<8x32xf32>
    %179 = vector.extract_strided_slice %175 {offsets = [0, 32], sizes = [8, 32], strides = [1, 1]} : vector<16x98xf32> to vector<8x32xf32>
    %180 = vector.extract_strided_slice %175 {offsets = [0, 64], sizes = [8, 32], strides = [1, 1]} : vector<16x98xf32> to vector<8x32xf32>
    %cst_55 = arith.constant dense<0.000000e+00> : vector<8x8xf32>
    %181 = tpu.matmul %178, %179, %cst_55 {dimension_numbers = #tpu.dot_dimension_numbers<[1], [1], [0], [0], [0, 0, 1, 0], [], []>, precision = #tpu.contract_precision<fp32>} : vector<8x32xf32>, vector<8x32xf32>, vector<8x8xf32> -> vector<8x8xf32>
    %cst_56 = arith.constant 0.176776692 : f32
    %182 = vector.broadcast %cst_56 : f32 to vector<8x8xf32>
    %183 = arith.mulf %181, %182 : vector<8x8xf32>
    %184 = vector.extract_strided_slice %176 {offsets = [0, 0], sizes = [8, 1], strides = [1, 1]} : vector<16x2xf32> to vector<8x1xf32>
    %185 = vector.extract_strided_slice %176 {offsets = [0, 1], sizes = [8, 1], strides = [1, 1]} : vector<16x2xf32> to vector<8x1xf32>
    %186 = vector.extract_strided_slice %177 {offsets = [0, 0], sizes = [1, 8], strides = [1, 1]} : vector<2x16xf32> to vector<1x8xf32>
    %187 = vector.broadcast %184 : vector<8x1xf32> to vector<8x8xf32>
    %188 = vector.broadcast %186 : vector<1x8xf32> to vector<8x8xf32>
    %189 = arith.subf %187, %188 : vector<8x8xf32>
    %190 = vector.extract_strided_slice %177 {offsets = [1, 0], sizes = [1, 8], strides = [1, 1]} : vector<2x16xf32> to vector<1x8xf32>
    %191 = vector.broadcast %185 : vector<8x1xf32> to vector<8x8xf32>
    %192 = vector.broadcast %190 : vector<1x8xf32> to vector<8x8xf32>
    %193 = arith.subf %191, %192 : vector<8x8xf32>
    %194 = arith.mulf %189, %189 : vector<8x8xf32>
    %195 = arith.mulf %193, %193 : vector<8x8xf32>
    %196 = arith.addf %194, %195 : vector<8x8xf32>
    %197 = vector.shape_cast %196 : vector<8x8xf32> to vector<1x8x8xf32>
    %cst_57 = arith.constant dense<0.000000e+00> : vector<1xf32>
    %198 = vector.multi_reduction <add>, %197, %cst_57 [1, 2] : vector<1x8x8xf32> to vector<1xf32>
    %199 = vector.shape_cast %198 : vector<1xf32> to vector<1x1x1xf32>
    %200 = vector.extract %199[0, 0, 0] : f32 from vector<1x1x1xf32>
    %cst_58 = arith.constant 6.400000e+01 : f32
    %201 = arith.divf %200, %cst_58 : f32
    %202 = vector.broadcast %201 : f32 to vector<8x8xf32>
    %203 = arith.subf %196, %202 : vector<8x8xf32>
    %204 = arith.mulf %203, %203 : vector<8x8xf32>
    %205 = vector.shape_cast %204 : vector<8x8xf32> to vector<1x8x8xf32>
    %cst_59 = arith.constant dense<0.000000e+00> : vector<1xf32>
    %206 = vector.multi_reduction <add>, %205, %cst_59 [1, 2] : vector<1x8x8xf32> to vector<1xf32>
    %207 = vector.shape_cast %206 : vector<1xf32> to vector<1x1x1xf32>
    %208 = vector.extract %207[0, 0, 0] : f32 from vector<1x1x1xf32>
    %cst_60 = arith.constant 6.300000e+01 : f32
    %209 = arith.divf %208, %cst_60 : f32
    %210 = math.sqrt %209 : f32
    %cst_61 = arith.constant 1.250000e+00 : f32
    %211 = arith.mulf %cst_61, %210 : f32
    %212 = arith.addf %201, %211 : f32
    %cst_62 = arith.constant 0.000000e+00 : f32
    %213 = vector.broadcast %cst_62 : f32 to vector<8x8xf32>
    %214 = arith.cmpf oeq, %193, %213 : vector<8x8xf32>
    %cst_63 = arith.constant 0.000000e+00 : f32
    %215 = vector.broadcast %cst_63 : f32 to vector<8x8xf32>
    %216 = arith.cmpf olt, %189, %215 : vector<8x8xf32>
    %217 = arith.andi %214, %216 : vector<8x8xi1>
    %218 = vector.broadcast %212 : f32 to vector<8x8xf32>
    %219 = arith.cmpf ole, %196, %218 : vector<8x8xf32>
    %220 = arith.andi %219, %9 : vector<8x8xi1>
    %cst_64 = arith.constant dense<true> : vector<8x8xi1>
    %221 = arith.xori %217, %cst_64 : vector<8x8xi1>
    %222 = arith.andi %220, %221 : vector<8x8xi1>
    %223 = arith.ori %222, %10 : vector<8x8xi1>
    %cst_65 = arith.constant 0xFF800000 : f32
    %224 = vector.broadcast %cst_65 : f32 to vector<8x8xf32>
    %225 = arith.select %223, %183, %224 : vector<8x8xi1>, vector<8x8xf32>
    %cst_66 = arith.constant dense<0xFF800000> : vector<8xf32>
    %226 = vector.multi_reduction <maximumf>, %225, %cst_66 [1] : vector<8x8xf32> to vector<8xf32>
    %227 = vector.shape_cast %226 : vector<8xf32> to vector<8x1xf32>
    %228 = vector.broadcast %227 : vector<8x1xf32> to vector<8x8xf32>
    %229 = arith.subf %225, %228 : vector<8x8xf32>
    %230 = math.exp %229 : vector<8x8xf32>
    %cst_67 = arith.constant dense<0.000000e+00> : vector<8xf32>
    %231 = vector.multi_reduction <add>, %230, %cst_67 [1] : vector<8x8xf32> to vector<8xf32>
    %232 = vector.shape_cast %231 : vector<8xf32> to vector<8x1xf32>
    %233 = vector.broadcast %232 : vector<8x1xf32> to vector<8x8xf32>
    %234 = arith.divf %230, %233 : vector<8x8xf32>
    %cst_68 = arith.constant dense<0.000000e+00> : vector<8x32xf32>
    %235 = tpu.matmul %234, %180, %cst_68 {dimension_numbers = #tpu.dot_dimension_numbers<[1], [0], [0], [1], [0, 0, 1, 1], [], []>, precision = #tpu.contract_precision<fp32>} : vector<8x8xf32>, vector<8x32xf32>, vector<8x32xf32> -> vector<8x32xf32>
    %236 = vector.extract_strided_slice %175 {offsets = [8, 0], sizes = [8, 32], strides = [1, 1]} : vector<16x98xf32> to vector<8x32xf32>
    %237 = vector.extract_strided_slice %175 {offsets = [8, 32], sizes = [8, 32], strides = [1, 1]} : vector<16x98xf32> to vector<8x32xf32>
    %238 = vector.extract_strided_slice %175 {offsets = [8, 64], sizes = [8, 32], strides = [1, 1]} : vector<16x98xf32> to vector<8x32xf32>
    %cst_69 = arith.constant dense<0.000000e+00> : vector<8x8xf32>
    %239 = tpu.matmul %236, %237, %cst_69 {dimension_numbers = #tpu.dot_dimension_numbers<[1], [1], [0], [0], [0, 0, 1, 0], [], []>, precision = #tpu.contract_precision<fp32>} : vector<8x32xf32>, vector<8x32xf32>, vector<8x8xf32> -> vector<8x8xf32>
    %cst_70 = arith.constant 0.176776692 : f32
    %240 = vector.broadcast %cst_70 : f32 to vector<8x8xf32>
    %241 = arith.mulf %239, %240 : vector<8x8xf32>
    %242 = vector.extract_strided_slice %176 {offsets = [8, 0], sizes = [8, 1], strides = [1, 1]} : vector<16x2xf32> to vector<8x1xf32>
    %243 = vector.extract_strided_slice %176 {offsets = [8, 1], sizes = [8, 1], strides = [1, 1]} : vector<16x2xf32> to vector<8x1xf32>
    %244 = vector.extract_strided_slice %177 {offsets = [0, 8], sizes = [1, 8], strides = [1, 1]} : vector<2x16xf32> to vector<1x8xf32>
    %245 = vector.broadcast %242 : vector<8x1xf32> to vector<8x8xf32>
    %246 = vector.broadcast %244 : vector<1x8xf32> to vector<8x8xf32>
    %247 = arith.subf %245, %246 : vector<8x8xf32>
    %248 = vector.extract_strided_slice %177 {offsets = [1, 8], sizes = [1, 8], strides = [1, 1]} : vector<2x16xf32> to vector<1x8xf32>
    %249 = vector.broadcast %243 : vector<8x1xf32> to vector<8x8xf32>
    %250 = vector.broadcast %248 : vector<1x8xf32> to vector<8x8xf32>
    %251 = arith.subf %249, %250 : vector<8x8xf32>
    %252 = arith.mulf %247, %247 : vector<8x8xf32>
    %253 = arith.mulf %251, %251 : vector<8x8xf32>
    %254 = arith.addf %252, %253 : vector<8x8xf32>
    %255 = vector.shape_cast %254 : vector<8x8xf32> to vector<1x8x8xf32>
    %cst_71 = arith.constant dense<0.000000e+00> : vector<1xf32>
    %256 = vector.multi_reduction <add>, %255, %cst_71 [1, 2] : vector<1x8x8xf32> to vector<1xf32>
    %257 = vector.shape_cast %256 : vector<1xf32> to vector<1x1x1xf32>
    %258 = vector.extract %257[0, 0, 0] : f32 from vector<1x1x1xf32>
    %cst_72 = arith.constant 6.400000e+01 : f32
    %259 = arith.divf %258, %cst_72 : f32
    %260 = vector.broadcast %259 : f32 to vector<8x8xf32>
    %261 = arith.subf %254, %260 : vector<8x8xf32>
    %262 = arith.mulf %261, %261 : vector<8x8xf32>
    %263 = vector.shape_cast %262 : vector<8x8xf32> to vector<1x8x8xf32>
    %cst_73 = arith.constant dense<0.000000e+00> : vector<1xf32>
    %264 = vector.multi_reduction <add>, %263, %cst_73 [1, 2] : vector<1x8x8xf32> to vector<1xf32>
    %265 = vector.shape_cast %264 : vector<1xf32> to vector<1x1x1xf32>
    %266 = vector.extract %265[0, 0, 0] : f32 from vector<1x1x1xf32>
    %cst_74 = arith.constant 6.300000e+01 : f32
    %267 = arith.divf %266, %cst_74 : f32
    %268 = math.sqrt %267 : f32
    %cst_75 = arith.constant 1.250000e+00 : f32
    %269 = arith.mulf %cst_75, %268 : f32
    %270 = arith.addf %259, %269 : f32
    %cst_76 = arith.constant 0.000000e+00 : f32
    %271 = vector.broadcast %cst_76 : f32 to vector<8x8xf32>
    %272 = arith.cmpf oeq, %251, %271 : vector<8x8xf32>
    %cst_77 = arith.constant 0.000000e+00 : f32
    %273 = vector.broadcast %cst_77 : f32 to vector<8x8xf32>
    %274 = arith.cmpf olt, %247, %273 : vector<8x8xf32>
    %275 = arith.andi %272, %274 : vector<8x8xi1>
    %276 = vector.broadcast %270 : f32 to vector<8x8xf32>
    %277 = arith.cmpf ole, %254, %276 : vector<8x8xf32>
    %278 = arith.andi %277, %9 : vector<8x8xi1>
    %cst_78 = arith.constant dense<true> : vector<8x8xi1>
    %279 = arith.xori %275, %cst_78 : vector<8x8xi1>
    %280 = arith.andi %278, %279 : vector<8x8xi1>
    %281 = arith.ori %280, %10 : vector<8x8xi1>
    %cst_79 = arith.constant 0xFF800000 : f32
    %282 = vector.broadcast %cst_79 : f32 to vector<8x8xf32>
    %283 = arith.select %281, %241, %282 : vector<8x8xi1>, vector<8x8xf32>
    %cst_80 = arith.constant dense<0xFF800000> : vector<8xf32>
    %284 = vector.multi_reduction <maximumf>, %283, %cst_80 [1] : vector<8x8xf32> to vector<8xf32>
    %285 = vector.shape_cast %284 : vector<8xf32> to vector<8x1xf32>
    %286 = vector.broadcast %285 : vector<8x1xf32> to vector<8x8xf32>
    %287 = arith.subf %283, %286 : vector<8x8xf32>
    %288 = math.exp %287 : vector<8x8xf32>
    %cst_81 = arith.constant dense<0.000000e+00> : vector<8xf32>
    %289 = vector.multi_reduction <add>, %288, %cst_81 [1] : vector<8x8xf32> to vector<8xf32>
    %290 = vector.shape_cast %289 : vector<8xf32> to vector<8x1xf32>
    %291 = vector.broadcast %290 : vector<8x1xf32> to vector<8x8xf32>
    %292 = arith.divf %288, %291 : vector<8x8xf32>
    %cst_82 = arith.constant dense<0.000000e+00> : vector<8x32xf32>
    %293 = tpu.matmul %292, %238, %cst_82 {dimension_numbers = #tpu.dot_dimension_numbers<[1], [0], [0], [1], [0, 0, 1, 1], [], []>, precision = #tpu.contract_precision<fp32>} : vector<8x8xf32>, vector<8x32xf32>, vector<8x32xf32> -> vector<8x32xf32>
    %294 = tpu.concatenate %235, %293 in 0 : vector<8x32xf32>, vector<8x32xf32> -> vector<16x32xf32>
    %cst_83 = arith.constant dense<0.000000e+00> : vector<16x32xf32>
    %295 = tpu.matmul %294, %168, %cst_83 {dimension_numbers = #tpu.dot_dimension_numbers<[1], [0], [0], [1], [0, 0, 1, 1], [], []>, precision = #tpu.contract_precision<fp32>} : vector<16x32xf32>, vector<32x32xf32>, vector<16x32xf32> -> vector<16x32xf32>
    %296 = vector.broadcast %171 : vector<1x32xf32> to vector<16x32xf32>
    %297 = arith.addf %295, %296 : vector<16x32xf32>
    %298 = arith.mulf %176, %176 : vector<16x2xf32>
    %cst_84 = arith.constant dense<0.000000e+00> : vector<16xf32>
    %299 = vector.multi_reduction <add>, %298, %cst_84 [1] : vector<16x2xf32> to vector<16xf32>
    %300 = vector.shape_cast %299 : vector<16xf32> to vector<16x1xf32>
    %cst_85 = arith.constant 1.000000e-24 : f32
    %301 = vector.broadcast %cst_85 : f32 to vector<16x1xf32>
    %302 = arith.maximumf %300, %301 : vector<16x1xf32>
    %303 = math.rsqrt %302 : vector<16x1xf32>
    %304 = vector.broadcast %303 : vector<16x1xf32> to vector<16x2xf32>
    %305 = arith.mulf %176, %304 : vector<16x2xf32>
    %cst_86 = arith.constant dense<0.000000e+00> : vector<16x32xf32>
    %306 = tpu.matmul %305, %169, %cst_86 {dimension_numbers = #tpu.dot_dimension_numbers<[1], [0], [0], [1], [0, 0, 1, 1], [], []>, precision = #tpu.contract_precision<fp32>} : vector<16x2xf32>, vector<2x32xf32>, vector<16x32xf32> -> vector<16x32xf32>
    %307 = vector.broadcast %172 : vector<1x32xf32> to vector<16x32xf32>
    %308 = arith.addf %306, %307 : vector<16x32xf32>
    %309 = arith.addf %161, %297 : vector<16x32xf32>
    %cst_87 = arith.constant 1.000000e-01 : f32
    %310 = vector.broadcast %cst_87 : f32 to vector<16x32xf32>
    %311 = arith.mulf %310, %308 : vector<16x32xf32>
    %312 = arith.addf %309, %311 : vector<16x32xf32>
    %c2 = arith.constant 2 : index
    %c0_88 = arith.constant 0 : index
    %c0_89 = arith.constant 0 : index
    %313 = vector.load %arg3[%c2, %c0_88, %c0_89] : memref<3x32x98xf32, #tpu.memory_space<vmem>>, vector<1x32x98xf32>
    %314 = vector.shape_cast %313 : vector<1x32x98xf32> to vector<32x98xf32>
    %c2_90 = arith.constant 2 : index
    %c0_91 = arith.constant 0 : index
    %c0_92 = arith.constant 0 : index
    %315 = vector.load %arg4[%c2_90, %c0_91, %c0_92] : memref<3x34x32xf32, #tpu.memory_space<vmem>>, vector<1x34x32xf32>
    %316 = vector.shape_cast %315 : vector<1x34x32xf32> to vector<34x32xf32>
    %c2_93 = arith.constant 2 : index
    %c0_94 = arith.constant 0 : index
    %c0_95 = arith.constant 0 : index
    %317 = vector.load %arg5[%c2_93, %c0_94, %c0_95] : memref<3x3x128xf32, #tpu.memory_space<vmem>>, vector<1x3x128xf32>
    %318 = vector.shape_cast %317 : vector<1x3x128xf32> to vector<3x128xf32>
    %319 = vector.extract_strided_slice %316 {offsets = [0, 0], sizes = [32, 32], strides = [1, 1]} : vector<34x32xf32> to vector<32x32xf32>
    %320 = vector.extract_strided_slice %316 {offsets = [32, 0], sizes = [2, 32], strides = [1, 1]} : vector<34x32xf32> to vector<2x32xf32>
    %321 = vector.extract_strided_slice %318 {offsets = [0, 0], sizes = [1, 98], strides = [1, 1]} : vector<3x128xf32> to vector<1x98xf32>
    %322 = vector.extract_strided_slice %318 {offsets = [1, 0], sizes = [1, 32], strides = [1, 1]} : vector<3x128xf32> to vector<1x32xf32>
    %323 = vector.extract_strided_slice %318 {offsets = [2, 0], sizes = [1, 32], strides = [1, 1]} : vector<3x128xf32> to vector<1x32xf32>
    %cst_96 = arith.constant dense<0.000000e+00> : vector<16x98xf32>
    %324 = tpu.matmul %312, %314, %cst_96 {dimension_numbers = #tpu.dot_dimension_numbers<[1], [0], [0], [1], [0, 0, 1, 1], [], []>, precision = #tpu.contract_precision<fp32>} : vector<16x32xf32>, vector<32x98xf32>, vector<16x98xf32> -> vector<16x98xf32>
    %325 = vector.broadcast %321 : vector<1x98xf32> to vector<16x98xf32>
    %326 = arith.addf %324, %325 : vector<16x98xf32>
    %327 = vector.extract_strided_slice %326 {offsets = [0, 96], sizes = [16, 2], strides = [1, 1]} : vector<16x98xf32> to vector<16x2xf32>
    %328 = tpu.transpose %327, [1, 0] : vector<16x2xf32> -> vector<2x16xf32>
    %329 = vector.extract_strided_slice %326 {offsets = [0, 0], sizes = [8, 32], strides = [1, 1]} : vector<16x98xf32> to vector<8x32xf32>
    %330 = vector.extract_strided_slice %326 {offsets = [0, 32], sizes = [8, 32], strides = [1, 1]} : vector<16x98xf32> to vector<8x32xf32>
    %331 = vector.extract_strided_slice %326 {offsets = [0, 64], sizes = [8, 32], strides = [1, 1]} : vector<16x98xf32> to vector<8x32xf32>
    %cst_97 = arith.constant dense<0.000000e+00> : vector<8x8xf32>
    %332 = tpu.matmul %329, %330, %cst_97 {dimension_numbers = #tpu.dot_dimension_numbers<[1], [1], [0], [0], [0, 0, 1, 0], [], []>, precision = #tpu.contract_precision<fp32>} : vector<8x32xf32>, vector<8x32xf32>, vector<8x8xf32> -> vector<8x8xf32>
    %cst_98 = arith.constant 0.176776692 : f32
    %333 = vector.broadcast %cst_98 : f32 to vector<8x8xf32>
    %334 = arith.mulf %332, %333 : vector<8x8xf32>
    %335 = vector.extract_strided_slice %327 {offsets = [0, 0], sizes = [8, 1], strides = [1, 1]} : vector<16x2xf32> to vector<8x1xf32>
    %336 = vector.extract_strided_slice %327 {offsets = [0, 1], sizes = [8, 1], strides = [1, 1]} : vector<16x2xf32> to vector<8x1xf32>
    %337 = vector.extract_strided_slice %328 {offsets = [0, 0], sizes = [1, 8], strides = [1, 1]} : vector<2x16xf32> to vector<1x8xf32>
    %338 = vector.broadcast %335 : vector<8x1xf32> to vector<8x8xf32>
    %339 = vector.broadcast %337 : vector<1x8xf32> to vector<8x8xf32>
    %340 = arith.subf %338, %339 : vector<8x8xf32>
    %341 = vector.extract_strided_slice %328 {offsets = [1, 0], sizes = [1, 8], strides = [1, 1]} : vector<2x16xf32> to vector<1x8xf32>
    %342 = vector.broadcast %336 : vector<8x1xf32> to vector<8x8xf32>
    %343 = vector.broadcast %341 : vector<1x8xf32> to vector<8x8xf32>
    %344 = arith.subf %342, %343 : vector<8x8xf32>
    %345 = arith.mulf %340, %340 : vector<8x8xf32>
    %346 = arith.mulf %344, %344 : vector<8x8xf32>
    %347 = arith.addf %345, %346 : vector<8x8xf32>
    %348 = vector.shape_cast %347 : vector<8x8xf32> to vector<1x8x8xf32>
    %cst_99 = arith.constant dense<0.000000e+00> : vector<1xf32>
    %349 = vector.multi_reduction <add>, %348, %cst_99 [1, 2] : vector<1x8x8xf32> to vector<1xf32>
    %350 = vector.shape_cast %349 : vector<1xf32> to vector<1x1x1xf32>
    %351 = vector.extract %350[0, 0, 0] : f32 from vector<1x1x1xf32>
    %cst_100 = arith.constant 6.400000e+01 : f32
    %352 = arith.divf %351, %cst_100 : f32
    %353 = vector.broadcast %352 : f32 to vector<8x8xf32>
    %354 = arith.subf %347, %353 : vector<8x8xf32>
    %355 = arith.mulf %354, %354 : vector<8x8xf32>
    %356 = vector.shape_cast %355 : vector<8x8xf32> to vector<1x8x8xf32>
    %cst_101 = arith.constant dense<0.000000e+00> : vector<1xf32>
    %357 = vector.multi_reduction <add>, %356, %cst_101 [1, 2] : vector<1x8x8xf32> to vector<1xf32>
    %358 = vector.shape_cast %357 : vector<1xf32> to vector<1x1x1xf32>
    %359 = vector.extract %358[0, 0, 0] : f32 from vector<1x1x1xf32>
    %cst_102 = arith.constant 6.300000e+01 : f32
    %360 = arith.divf %359, %cst_102 : f32
    %361 = math.sqrt %360 : f32
    %cst_103 = arith.constant 1.250000e+00 : f32
    %362 = arith.mulf %cst_103, %361 : f32
    %363 = arith.addf %352, %362 : f32
    %cst_104 = arith.constant 0.000000e+00 : f32
    %364 = vector.broadcast %cst_104 : f32 to vector<8x8xf32>
    %365 = arith.cmpf oeq, %344, %364 : vector<8x8xf32>
    %cst_105 = arith.constant 0.000000e+00 : f32
    %366 = vector.broadcast %cst_105 : f32 to vector<8x8xf32>
    %367 = arith.cmpf olt, %340, %366 : vector<8x8xf32>
    %368 = arith.andi %365, %367 : vector<8x8xi1>
    %369 = vector.broadcast %363 : f32 to vector<8x8xf32>
    %370 = arith.cmpf ole, %347, %369 : vector<8x8xf32>
    %371 = arith.andi %370, %9 : vector<8x8xi1>
    %cst_106 = arith.constant dense<true> : vector<8x8xi1>
    %372 = arith.xori %368, %cst_106 : vector<8x8xi1>
    %373 = arith.andi %371, %372 : vector<8x8xi1>
    %374 = arith.ori %373, %10 : vector<8x8xi1>
    %cst_107 = arith.constant 0xFF800000 : f32
    %375 = vector.broadcast %cst_107 : f32 to vector<8x8xf32>
    %376 = arith.select %374, %334, %375 : vector<8x8xi1>, vector<8x8xf32>
    %cst_108 = arith.constant dense<0xFF800000> : vector<8xf32>
    %377 = vector.multi_reduction <maximumf>, %376, %cst_108 [1] : vector<8x8xf32> to vector<8xf32>
    %378 = vector.shape_cast %377 : vector<8xf32> to vector<8x1xf32>
    %379 = vector.broadcast %378 : vector<8x1xf32> to vector<8x8xf32>
    %380 = arith.subf %376, %379 : vector<8x8xf32>
    %381 = math.exp %380 : vector<8x8xf32>
    %cst_109 = arith.constant dense<0.000000e+00> : vector<8xf32>
    %382 = vector.multi_reduction <add>, %381, %cst_109 [1] : vector<8x8xf32> to vector<8xf32>
    %383 = vector.shape_cast %382 : vector<8xf32> to vector<8x1xf32>
    %384 = vector.broadcast %383 : vector<8x1xf32> to vector<8x8xf32>
    %385 = arith.divf %381, %384 : vector<8x8xf32>
    %cst_110 = arith.constant dense<0.000000e+00> : vector<8x32xf32>
    %386 = tpu.matmul %385, %331, %cst_110 {dimension_numbers = #tpu.dot_dimension_numbers<[1], [0], [0], [1], [0, 0, 1, 1], [], []>, precision = #tpu.contract_precision<fp32>} : vector<8x8xf32>, vector<8x32xf32>, vector<8x32xf32> -> vector<8x32xf32>
    %387 = vector.extract_strided_slice %326 {offsets = [8, 0], sizes = [8, 32], strides = [1, 1]} : vector<16x98xf32> to vector<8x32xf32>
    %388 = vector.extract_strided_slice %326 {offsets = [8, 32], sizes = [8, 32], strides = [1, 1]} : vector<16x98xf32> to vector<8x32xf32>
    %389 = vector.extract_strided_slice %326 {offsets = [8, 64], sizes = [8, 32], strides = [1, 1]} : vector<16x98xf32> to vector<8x32xf32>
    %cst_111 = arith.constant dense<0.000000e+00> : vector<8x8xf32>
    %390 = tpu.matmul %387, %388, %cst_111 {dimension_numbers = #tpu.dot_dimension_numbers<[1], [1], [0], [0], [0, 0, 1, 0], [], []>, precision = #tpu.contract_precision<fp32>} : vector<8x32xf32>, vector<8x32xf32>, vector<8x8xf32> -> vector<8x8xf32>
    %cst_112 = arith.constant 0.176776692 : f32
    %391 = vector.broadcast %cst_112 : f32 to vector<8x8xf32>
    %392 = arith.mulf %390, %391 : vector<8x8xf32>
    %393 = vector.extract_strided_slice %327 {offsets = [8, 0], sizes = [8, 1], strides = [1, 1]} : vector<16x2xf32> to vector<8x1xf32>
    %394 = vector.extract_strided_slice %327 {offsets = [8, 1], sizes = [8, 1], strides = [1, 1]} : vector<16x2xf32> to vector<8x1xf32>
    %395 = vector.extract_strided_slice %328 {offsets = [0, 8], sizes = [1, 8], strides = [1, 1]} : vector<2x16xf32> to vector<1x8xf32>
    %396 = vector.broadcast %393 : vector<8x1xf32> to vector<8x8xf32>
    %397 = vector.broadcast %395 : vector<1x8xf32> to vector<8x8xf32>
    %398 = arith.subf %396, %397 : vector<8x8xf32>
    %399 = vector.extract_strided_slice %328 {offsets = [1, 8], sizes = [1, 8], strides = [1, 1]} : vector<2x16xf32> to vector<1x8xf32>
    %400 = vector.broadcast %394 : vector<8x1xf32> to vector<8x8xf32>
    %401 = vector.broadcast %399 : vector<1x8xf32> to vector<8x8xf32>
    %402 = arith.subf %400, %401 : vector<8x8xf32>
    %403 = arith.mulf %398, %398 : vector<8x8xf32>
    %404 = arith.mulf %402, %402 : vector<8x8xf32>
    %405 = arith.addf %403, %404 : vector<8x8xf32>
    %406 = vector.shape_cast %405 : vector<8x8xf32> to vector<1x8x8xf32>
    %cst_113 = arith.constant dense<0.000000e+00> : vector<1xf32>
    %407 = vector.multi_reduction <add>, %406, %cst_113 [1, 2] : vector<1x8x8xf32> to vector<1xf32>
    %408 = vector.shape_cast %407 : vector<1xf32> to vector<1x1x1xf32>
    %409 = vector.extract %408[0, 0, 0] : f32 from vector<1x1x1xf32>
    %cst_114 = arith.constant 6.400000e+01 : f32
    %410 = arith.divf %409, %cst_114 : f32
    %411 = vector.broadcast %410 : f32 to vector<8x8xf32>
    %412 = arith.subf %405, %411 : vector<8x8xf32>
    %413 = arith.mulf %412, %412 : vector<8x8xf32>
    %414 = vector.shape_cast %413 : vector<8x8xf32> to vector<1x8x8xf32>
    %cst_115 = arith.constant dense<0.000000e+00> : vector<1xf32>
    %415 = vector.multi_reduction <add>, %414, %cst_115 [1, 2] : vector<1x8x8xf32> to vector<1xf32>
    %416 = vector.shape_cast %415 : vector<1xf32> to vector<1x1x1xf32>
    %417 = vector.extract %416[0, 0, 0] : f32 from vector<1x1x1xf32>
    %cst_116 = arith.constant 6.300000e+01 : f32
    %418 = arith.divf %417, %cst_116 : f32
    %419 = math.sqrt %418 : f32
    %cst_117 = arith.constant 1.250000e+00 : f32
    %420 = arith.mulf %cst_117, %419 : f32
    %421 = arith.addf %410, %420 : f32
    %cst_118 = arith.constant 0.000000e+00 : f32
    %422 = vector.broadcast %cst_118 : f32 to vector<8x8xf32>
    %423 = arith.cmpf oeq, %402, %422 : vector<8x8xf32>
    %cst_119 = arith.constant 0.000000e+00 : f32
    %424 = vector.broadcast %cst_119 : f32 to vector<8x8xf32>
    %425 = arith.cmpf olt, %398, %424 : vector<8x8xf32>
    %426 = arith.andi %423, %425 : vector<8x8xi1>
    %427 = vector.broadcast %421 : f32 to vector<8x8xf32>
    %428 = arith.cmpf ole, %405, %427 : vector<8x8xf32>
    %429 = arith.andi %428, %9 : vector<8x8xi1>
    %cst_120 = arith.constant dense<true> : vector<8x8xi1>
    %430 = arith.xori %426, %cst_120 : vector<8x8xi1>
    %431 = arith.andi %429, %430 : vector<8x8xi1>
    %432 = arith.ori %431, %10 : vector<8x8xi1>
    %cst_121 = arith.constant 0xFF800000 : f32
    %433 = vector.broadcast %cst_121 : f32 to vector<8x8xf32>
    %434 = arith.select %432, %392, %433 : vector<8x8xi1>, vector<8x8xf32>
    %cst_122 = arith.constant dense<0xFF800000> : vector<8xf32>
    %435 = vector.multi_reduction <maximumf>, %434, %cst_122 [1] : vector<8x8xf32> to vector<8xf32>
    %436 = vector.shape_cast %435 : vector<8xf32> to vector<8x1xf32>
    %437 = vector.broadcast %436 : vector<8x1xf32> to vector<8x8xf32>
    %438 = arith.subf %434, %437 : vector<8x8xf32>
    %439 = math.exp %438 : vector<8x8xf32>
    %cst_123 = arith.constant dense<0.000000e+00> : vector<8xf32>
    %440 = vector.multi_reduction <add>, %439, %cst_123 [1] : vector<8x8xf32> to vector<8xf32>
    %441 = vector.shape_cast %440 : vector<8xf32> to vector<8x1xf32>
    %442 = vector.broadcast %441 : vector<8x1xf32> to vector<8x8xf32>
    %443 = arith.divf %439, %442 : vector<8x8xf32>
    %cst_124 = arith.constant dense<0.000000e+00> : vector<8x32xf32>
    %444 = tpu.matmul %443, %389, %cst_124 {dimension_numbers = #tpu.dot_dimension_numbers<[1], [0], [0], [1], [0, 0, 1, 1], [], []>, precision = #tpu.contract_precision<fp32>} : vector<8x8xf32>, vector<8x32xf32>, vector<8x32xf32> -> vector<8x32xf32>
    %445 = tpu.concatenate %386, %444 in 0 : vector<8x32xf32>, vector<8x32xf32> -> vector<16x32xf32>
    %cst_125 = arith.constant dense<0.000000e+00> : vector<16x32xf32>
    %446 = tpu.matmul %445, %319, %cst_125 {dimension_numbers = #tpu.dot_dimension_numbers<[1], [0], [0], [1], [0, 0, 1, 1], [], []>, precision = #tpu.contract_precision<fp32>} : vector<16x32xf32>, vector<32x32xf32>, vector<16x32xf32> -> vector<16x32xf32>
    %447 = vector.broadcast %322 : vector<1x32xf32> to vector<16x32xf32>
    %448 = arith.addf %446, %447 : vector<16x32xf32>
    %449 = arith.mulf %327, %327 : vector<16x2xf32>
    %cst_126 = arith.constant dense<0.000000e+00> : vector<16xf32>
    %450 = vector.multi_reduction <add>, %449, %cst_126 [1] : vector<16x2xf32> to vector<16xf32>
    %451 = vector.shape_cast %450 : vector<16xf32> to vector<16x1xf32>
    %cst_127 = arith.constant 1.000000e-24 : f32
    %452 = vector.broadcast %cst_127 : f32 to vector<16x1xf32>
    %453 = arith.maximumf %451, %452 : vector<16x1xf32>
    %454 = math.rsqrt %453 : vector<16x1xf32>
    %455 = vector.broadcast %454 : vector<16x1xf32> to vector<16x2xf32>
    %456 = arith.mulf %327, %455 : vector<16x2xf32>
    %cst_128 = arith.constant dense<0.000000e+00> : vector<16x32xf32>
    %457 = tpu.matmul %456, %320, %cst_128 {dimension_numbers = #tpu.dot_dimension_numbers<[1], [0], [0], [1], [0, 0, 1, 1], [], []>, precision = #tpu.contract_precision<fp32>} : vector<16x2xf32>, vector<2x32xf32>, vector<16x32xf32> -> vector<16x32xf32>
    %458 = vector.broadcast %323 : vector<1x32xf32> to vector<16x32xf32>
    %459 = arith.addf %457, %458 : vector<16x32xf32>
    %460 = arith.addf %312, %448 : vector<16x32xf32>
    %cst_129 = arith.constant 1.000000e-01 : f32
    %461 = vector.broadcast %cst_129 : f32 to vector<16x32xf32>
    %462 = arith.mulf %461, %459 : vector<16x32xf32>
    %463 = arith.addf %460, %462 : vector<16x32xf32>
    %c0_130 = arith.constant 0 : index
    %c0_131 = arith.constant 0 : index
    %464 = vector.load %arg6[%c0_130, %c0_131] : memref<33x128xf32, #tpu.memory_space<vmem>>, vector<33x128xf32>
    %465 = vector.extract_strided_slice %464 {offsets = [0, 0], sizes = [32, 128], strides = [1, 1]} : vector<33x128xf32> to vector<32x128xf32>
    %cst_132 = arith.constant dense<0.000000e+00> : vector<16x128xf32>
    %466 = tpu.matmul %463, %465, %cst_132 {dimension_numbers = #tpu.dot_dimension_numbers<[1], [0], [0], [1], [0, 0, 1, 1], [], []>} : vector<16x32xf32>, vector<32x128xf32>, vector<16x128xf32> -> vector<16x128xf32>
    %467 = vector.extract_strided_slice %464 {offsets = [32, 0], sizes = [1, 128], strides = [1, 1]} : vector<33x128xf32> to vector<1x128xf32>
    %468 = vector.broadcast %467 : vector<1x128xf32> to vector<16x128xf32>
    %469 = arith.addf %466, %468 : vector<16x128xf32>
    %c0_133 = arith.constant 0 : index
    %c0_134 = arith.constant 0 : index
    %470 = vector.load %arg7[%c0_133, %c0_134] : memref<16x128xf32, #tpu.memory_space<vmem>>, vector<16x128xf32>
    tpu.vector_store %arg7[%c0_133, %c0_134], %469 {strides = array<i32>} : memref<16x128xf32, #tpu.memory_space<vmem>>, vector<16x128xf32>,
    return
  }
  func.func @transform_0(%arg0: i32) -> (i32, i32) {
    %c0_i32 = arith.constant 0 : i32
    %c0_i32_0 = arith.constant 0 : i32
    %c0_i32_1 = arith.constant 0 : i32
    return %c0_i32, %c0_i32_0 : i32, i32
  }
  func.func @transform_1(%arg0: i32) -> (i32, i32) {
    %c0_i32 = arith.constant 0 : i32
    %c0_i32_0 = arith.constant 0 : i32
    %c0_i32_1 = arith.constant 0 : i32
    return %c0_i32, %c0_i32_0 : i32, i32
  }
  func.func @transform_2(%arg0: i32) -> (i32, i32, i32) {
    %c0_i32 = arith.constant 0 : i32
    %c0_i32_0 = arith.constant 0 : i32
    %c0_i32_1 = arith.constant 0 : i32
    %c0_i32_2 = arith.constant 0 : i32
    return %c0_i32, %c0_i32_0, %c0_i32_1 : i32, i32, i32
  }
  func.func @transform_3(%arg0: i32) -> (i32, i32, i32) {
    %c0_i32 = arith.constant 0 : i32
    %c0_i32_0 = arith.constant 0 : i32
    %c0_i32_1 = arith.constant 0 : i32
    %c0_i32_2 = arith.constant 0 : i32
    return %c0_i32, %c0_i32_0, %c0_i32_1 : i32, i32, i32
  }
  func.func @transform_4(%arg0: i32) -> (i32, i32, i32) {
    %c0_i32 = arith.constant 0 : i32
    %c0_i32_0 = arith.constant 0 : i32
    %c0_i32_1 = arith.constant 0 : i32
    %c0_i32_2 = arith.constant 0 : i32
    return %c0_i32, %c0_i32_0, %c0_i32_1 : i32, i32, i32
  }
  func.func @transform_5(%arg0: i32) -> (i32, i32) {
    %c0_i32 = arith.constant 0 : i32
    %c0_i32_0 = arith.constant 0 : i32
    %c0_i32_1 = arith.constant 0 : i32
    return %c0_i32, %c0_i32_0 : i32, i32
  }
  func.func @transform_6(%arg0: i32) -> (i32, i32) {
    %c0_i32 = arith.constant 0 : i32
    %c0_i32_0 = arith.constant 0 : i32
    %c0_i32_1 = arith.constant 0 : i32
    return %c0_i32, %c0_i32_0 : i32, i32
  }
}

</mosaic_0001>

<llo_original>
// kernel: financial_quantum_forward.1
$region0: #{financial_quantum_forward.1}
  #allocation0 [shape = 'u32[]', space=smem, size = 0x4, offset = 0x4, fixed_abs, tag = 'smem constant byte address 0x4 - core index']
  #allocation1 [shape = 'u32[72,128]{1,0:T(1,128)}', space=vmem, size = 0x9000, scoped, tag = 'internal scratch']
  %s0 = inlined_call_operand.vmem [shape: f32[16,4], index: 0, kind: input, shape index: {}]
  %s1 = inlined_call_operand.vmem [shape: f32[5,32], index: 1, kind: input, shape index: {}]
  %s2 = inlined_call_operand.vmem [shape: f32[3,32,98], index: 2, kind: input, shape index: {}]
  %s3 = inlined_call_operand.vmem [shape: f32[3,34,32], index: 3, kind: input, shape index: {}]
  %s4 = inlined_call_operand.vmem [shape: f32[3,3,128], index: 4, kind: input, shape index: {}]
  %s5 = inlined_call_operand.vmem [shape: f32[33,128], index: 5, kind: input, shape index: {}]
  %s6 = inlined_call_operand.vmem [shape: f32[16,128], index: 6, kind: output, shape index: {}]
  %s7 = sld [smem:[#allocation0]]
  $region34: #{financial_quantum_forward.1} parent=0
    _
  %s9 = ssub.s32 1, %s7
  %s10 = scalar_select 0, %s9, %s7
  // Predicated region
  $region2: #{financial_quantum_forward.1} parent=0 // pred_check
    _
  $region3: #{financial_quantum_forward.1} parent=0 // pred_check_branch
    %12 = sbr.rel (0) target = $region5
  $region4: #{financial_quantum_forward.1} parent=0 // pred_region
    _
  $region5: #{financial_quantum_forward.1} parent=0 // pred_fallthru
    _
  // Predicated region
  $region6: #{financial_quantum_forward.1} parent=0 // pred_check
    _
  $region7: #{financial_quantum_forward.1} parent=0 // pred_check_branch
    %14 = sbr.rel (0) target = $region9
  $region8: #{financial_quantum_forward.1} parent=0 // pred_region
    _
  $region9: #{financial_quantum_forward.1} parent=0 // pred_fallthru
    _
  // Predicated region
  $region10: #{financial_quantum_forward.1} parent=0 // pred_check
    _
  $region11: #{financial_quantum_forward.1} parent=0 // pred_check_branch
    %16 = sbr.rel (0) target = $region13
  $region12: #{financial_quantum_forward.1} parent=0 // pred_region
    _
  $region13: #{financial_quantum_forward.1} parent=0 // pred_fallthru
    _
  // Predicated region
  $region14: #{financial_quantum_forward.1} parent=0 // pred_check
    _
  $region15: #{financial_quantum_forward.1} parent=0 // pred_check_branch
    %18 = sbr.rel (0) target = $region17
  $region16: #{financial_quantum_forward.1} parent=0 // pred_region
    _
  $region17: #{financial_quantum_forward.1} parent=0 // pred_fallthru
    _
  // Predicated region
  $region18: #{financial_quantum_forward.1} parent=0 // pred_check
    _
  $region19: #{financial_quantum_forward.1} parent=0 // pred_check_branch
    %20 = sbr.rel (0) target = $region21
  $region20: #{financial_quantum_forward.1} parent=0 // pred_region
    _
  $region21: #{financial_quantum_forward.1} parent=0 // pred_fallthru
    _
  // Predicated region
  $region22: #{financial_quantum_forward.1} parent=0 // pred_check
    _
  $region23: #{financial_quantum_forward.1} parent=0 // pred_check_branch
    %22 = sbr.rel (0) target = $region25
  $region24: #{financial_quantum_forward.1} parent=0 // pred_region
    _
  $region25: #{financial_quantum_forward.1} parent=0 // pred_fallthru
    _
  %v23 = vld [vmem:[%s1] sm:$0x1f]
  %v24 = vld [vmem:[%s0] sm:$0xff]
  %v25 = vld [vmem:[%s0 + $0x8] sm:$0xff]
  %v26 = vperm.slane %v23, 4
  %vm27 = vcmask 31744
  %v29 = vsel %vm27, %v24, 0
  %v32 = vsel %vm27, %v25, 0
  %vm34 = vcmask 1043456
  %v36 = vsel %vm34, %v23, 0
  %38 = vmatpush.msra.mxu0 0.0
  %39 = vmatpush.msra.mxu0 0.0
  %40 = vmatpush.msra.mxu0 0.0
  %41 = vmatpush.msra.mxu0 0.0
  %42 = vmatpush.msra.mxu0 0.0
  %43 = vmatpush.msra.mxu0 0.0
  %44 = vmatpush.msra.mxu0 0.0
  %45 = vmatpush.msra.mxu0 0.0
  %46 = vmatpush.msra.mxu0 0.0
  %47 = vmatpush.msra.mxu0 0.0
  %48 = vmatpush.msra.mxu0 0.0
  %49 = vmatpush.msra.mxu0 0.0
  %50 = vmatpush.msra.mxu0 0.0
  %51 = vmatpush.msra.mxu0 0.0
  %52 = vmatpush.msra.mxu0 0.0
  %v53 = vand.u32 %v36, 4294901760
  %54 = vmatpush.msra.mxu0 %v53
  %v55 = vand.u32 %v29, 4294901760
  %v56 = vsub.f32 %v29, %v55
  %v57 = vand.u32 %v56, 4294901760
  %v58 = vsub.f32 %v56, %v57
  %v59 = vand.u32 %v58, 4294901760
  %60 = vmatmul.f32.gmra.mxu0 %v59
  %v61 = vpop.f32.mrf.mxu0
  %v62 = vadd.f32 %v26, %v61
  %v63 = vand.u32 %v32, 4294901760
  %v64 = vsub.f32 %v32, %v63
  %v65 = vand.u32 %v64, 4294901760
  %v66 = vsub.f32 %v64, %v65
  %v67 = vand.u32 %v66, 4294901760
  %68 = vmatmul.f32.gmra.mxu0 %v67
  %v69 = vpop.f32.mrf.mxu0
  %v70 = vadd.f32 %v26, %v69
  %71 = vdwg.mxu0
  %72 = vmatpush.msra.mxu0 0.0
  %73 = vmatpush.msra.mxu0 0.0
  %74 = vmatpush.msra.mxu0 0.0
  %75 = vmatpush.msra.mxu0 0.0
  %76 = vmatpush.msra.mxu0 0.0
  %77 = vmatpush.msra.mxu0 0.0
  %78 = vmatpush.msra.mxu0 0.0
  %79 = vmatpush.msra.mxu0 0.0
  %80 = vmatpush.msra.mxu0 0.0
  %81 = vmatpush.msra.mxu0 0.0
  %82 = vmatpush.msra.mxu0 0.0
  %83 = vmatpush.msra.mxu0 0.0
  %84 = vmatpush.msra.mxu0 0.0
  %85 = vmatpush.msra.mxu0 0.0
  %86 = vmatpush.msra.mxu0 0.0
  %v87 = vand.u32 %v36, 4294901760
  %v88 = vsub.f32 %v36, %v87
  %v89 = vand.u32 %v88, 4294901760
  %v90 = vsub.f32 %v88, %v89
  %v91 = vand.u32 %v90, 4294901760
  %92 = vmatpush.msra.mxu0 %v91
  %v93 = vand.u32 %v29, 4294901760
  %94 = vmatmul.f32.gmra.mxu0 %v93
  %v95 = vpop.f32.mrf.mxu0
  %v96 = vadd.f32 %v62, %v95
  %v97 = vand.u32 %v32, 4294901760
  %98 = vmatmul.f32.gmra.mxu0 %v97
  %v99 = vpop.f32.mrf.mxu0
  %v100 = vadd.f32 %v70, %v99
  %101 = vdwg.mxu0
  %102 = vmatpush.msra.mxu0 0.0
  %103 = vmatpush.msra.mxu0 0.0
  %104 = vmatpush.msra.mxu0 0.0
  %105 = vmatpush.msra.mxu0 0.0
  %106 = vmatpush.msra.mxu0 0.0
  %107 = vmatpush.msra.mxu0 0.0
  %108 = vmatpush.msra.mxu0 0.0
  %109 = vmatpush.msra.mxu0 0.0
  %110 = vmatpush.msra.mxu0 0.0
  %111 = vmatpush.msra.mxu0 0.0
  %112 = vmatpush.msra.mxu0 0.0
  %113 = vmatpush.msra.mxu0 0.0
  %114 = vmatpush.msra.mxu0 0.0
  %115 = vmatpush.msra.mxu0 0.0
  %116 = vmatpush.msra.mxu0 0.0
  %v117 = vand.u32 %v36, 4294901760
  %v118 = vsub.f32 %v36, %v117
  %119 = vmatpush.msra.mxu0 %v118
  %v120 = vand.u32 %v29, 4294901760
  %v121 = vsub.f32 %v29, %v120
  %122 = vmatmul.f32.gmra.mxu0 %v121
  %v123 = vpop.f32.mrf.mxu0
  %v124 = vadd.f32 %v96, %v123
  %v125 = vand.u32 %v32, 4294901760
  %v126 = vsub.f32 %v32, %v125
  %127 = vmatmul.f32.gmra.mxu0 %v126
  %v128 = vpop.f32.mrf.mxu0
  %v129 = vadd.f32 %v100, %v128
  %130 = vdwg.mxu0
  %131 = vmatpush.msra.mxu0 0.0
  %132 = vmatpush.msra.mxu0 0.0
  %133 = vmatpush.msra.mxu0 0.0
  %134 = vmatpush.msra.mxu0 0.0
  %135 = vmatpush.msra.mxu0 0.0
  %136 = vmatpush.msra.mxu0 0.0
  %137 = vmatpush.msra.mxu0 0.0
  %138 = vmatpush.msra.mxu0 0.0
  %139 = vmatpush.msra.mxu0 0.0
  %140 = vmatpush.msra.mxu0 0.0
  %141 = vmatpush.msra.mxu0 0.0
  %142 = vmatpush.msra.mxu0 0.0
  %143 = vmatpush.msra.mxu0 0.0
  %144 = vmatpush.msra.mxu0 0.0
  %145 = vmatpush.msra.mxu0 0.0
  %v146 = vand.u32 %v36, 4294901760
  %147 = vmatpush.msra.mxu0 %v146
  %v148 = vand.u32 %v29, 4294901760
  %v149 = vsub.f32 %v29, %v148
  %v150 = vand.u32 %v149, 4294901760
  %151 = vmatmul.f32.gmra.mxu0 %v150
  %v152 = vpop.f32.mrf.mxu0
  %v153 = vadd.f32 %v124, %v152
  %v154 = vand.u32 %v32, 4294901760
  %v155 = vsub.f32 %v32, %v154
  %v156 = vand.u32 %v155, 4294901760
  %157 = vmatmul.f32.gmra.mxu0 %v156
  %v158 = vpop.f32.mrf.mxu0
  %v159 = vadd.f32 %v129, %v158
  %160 = vdwg.mxu0
  %161 = vmatpush.msra.mxu0 0.0
  %162 = vmatpush.msra.mxu0 0.0
  %163 = vmatpush.msra.mxu0 0.0
  %164 = vmatpush.msra.mxu0 0.0
  %165 = vmatpush.msra.mxu0 0.0
  %166 = vmatpush.msra.mxu0 0.0
  %167 = vmatpush.msra.mxu0 0.0
  %168 = vmatpush.msra.mxu0 0.0
  %169 = vmatpush.msra.mxu0 0.0
  %170 = vmatpush.msra.mxu0 0.0
  %171 = vmatpush.msra.mxu0 0.0
  %172 = vmatpush.msra.mxu0 0.0
  %173 = vmatpush.msra.mxu0 0.0
  %174 = vmatpush.msra.mxu0 0.0
  %175 = vmatpush.msra.mxu0 0.0
  %v176 = vand.u32 %v36, 4294901760
  %v177 = vsub.f32 %v36, %v176
  %v178 = vand.u32 %v177, 4294901760
  %179 = vmatpush.msra.mxu0 %v178
  %v180 = vand.u32 %v29, 4294901760
  %181 = vmatmul.f32.gmra.mxu0 %v180
  %v182 = vpop.f32.mrf.mxu0
  %v183 = vadd.f32 %v153, %v182
  %v184 = vand.u32 %v32, 4294901760
  %185 = vmatmul.f32.gmra.mxu0 %v184
  %v186 = vpop.f32.mrf.mxu0
  %v187 = vadd.f32 %v159, %v186
  %188 = vdwg.mxu0
  %189 = vmatpush.msra.mxu0 0.0
  %190 = vmatpush.msra.mxu0 0.0
  %191 = vmatpush.msra.mxu0 0.0
  %192 = vmatpush.msra.mxu0 0.0
  %193 = vmatpush.msra.mxu0 0.0
  %194 = vmatpush.msra.mxu0 0.0
  %195 = vmatpush.msra.mxu0 0.0
  %196 = vmatpush.msra.mxu0 0.0
  %197 = vmatpush.msra.mxu0 0.0
  %198 = vmatpush.msra.mxu0 0.0
  %199 = vmatpush.msra.mxu0 0.0
  %200 = vmatpush.msra.mxu0 0.0
  %201 = vmatpush.msra.mxu0 0.0
  %202 = vmatpush.msra.mxu0 0.0
  %203 = vmatpush.msra.mxu0 0.0
  %v204 = vand.u32 %v36, 4294901760
  %205 = vmatpush.msra.mxu0 %v204
  %v206 = vand.u32 %v29, 4294901760
  %207 = vmatmul.f32.gmra.mxu0 %v206
  %v208 = vpop.f32.mrf.mxu0
  %v209 = vadd.f32 %v183, %v208
  %v210 = vand.u32 %v32, 4294901760
  %211 = vmatmul.f32.gmra.mxu0 %v210
  %v212 = vpop.f32.mrf.mxu0
  %v213 = vadd.f32 %v187, %v212
  %214 = vdwg.mxu0
  %v215 = vlaneseq
  %v216 = vshrl.u32 %v215, 7
  %v217 = vlaneseq
  %v218 = vand.u32 %v217, 127
  %vm219 = vcmp.le.s32.totalorder %v218, %v216
  %vm220 = vcmp.eq.s32.totalorder %v218, %v216
  %v221 = vld [vmem:[%s2] sm:$0xff]
  %v222 = vld [vmem:[%s2 + $0x8] sm:$0xff]
  %v223 = vld [vmem:[%s2 + $0x10] sm:$0xff]
  %v224 = vld [vmem:[%s2 + $0x18] sm:$0xff]
  %v225 = vld [vmem:[%s3] sm:$0xff]
  %v226 = vld [vmem:[%s3 + $0x8] sm:$0xff]
  %v227 = vld [vmem:[%s3 + $0x10] sm:$0xff]
  %v228 = vld [vmem:[%s3 + $0x18] sm:$0xff]
  %v229 = vld [vmem:[%s3 + $0x20] sm:$0x3]
  %v230 = vld [vmem:[%s4] sm:$0x7]
  %v231 = vperm.slane %v230, 0
  %vm232 = vcmask 261120
  %v234 = vsel %vm232, %v209, 0
  %v237 = vsel %vm232, %v213, 0
  %239 = vmatpush.msra.mxu0 0.0
  %240 = vmatpush.msra.mxu0 0.0
  %241 = vmatpush.msra.mxu0 0.0
  %242 = vmatpush.msra.mxu0 0.0
  %243 = vmatpush.msra.mxu0 0.0
  %244 = vmatpush.msra.mxu0 0.0
  %245 = vmatpush.msra.mxu0 0.0
  %246 = vmatpush.msra.mxu0 0.0
  %247 = vmatpush.msra.mxu0 0.0
  %248 = vmatpush.msra.mxu0 0.0
  %249 = vmatpush.msra.mxu0 0.0
  %250 = vmatpush.msra.mxu0 0.0
  %v251 = vand.u32 %v224, 4294901760
  %252 = vmatpush.msra.mxu0 %v251
  %v253 = vand.u32 %v223, 4294901760
  %254 = vmatpush.msra.mxu0 %v253
  %v255 = vand.u32 %v222, 4294901760
  %256 = vmatpush.msra.mxu0 %v255
  %v257 = vand.u32 %v221, 4294901760
  %258 = vmatpush.msra.mxu0 %v257
  %v259 = vand.u32 %v234, 4294901760
  %v260 = vsub.f32 %v234, %v259
  %v261 = vand.u32 %v260, 4294901760
  %v262 = vsub.f32 %v260, %v261
  %v263 = vand.u32 %v262, 4294901760
  %264 = vmatmul.f32.gmra.mxu0 %v263
  %v265 = vpop.f32.mrf.mxu0
  %v266 = vadd.f32 %v231, %v265
  %v267 = vand.u32 %v237, 4294901760
  %v268 = vsub.f32 %v237, %v267
  %v269 = vand.u32 %v268, 4294901760
  %v270 = vsub.f32 %v268, %v269
  %v271 = vand.u32 %v270, 4294901760
  %272 = vmatmul.f32.gmra.mxu0 %v271
  %v273 = vpop.f32.mrf.mxu0
  %v274 = vadd.f32 %v231, %v273
  %275 = vdwg.mxu0
  %276 = vmatpush.msra.mxu0 0.0
  %277 = vmatpush.msra.mxu0 0.0
  %278 = vmatpush.msra.mxu0 0.0
  %279 = vmatpush.msra.mxu0 0.0
  %280 = vmatpush.msra.mxu0 0.0
  %281 = vmatpush.msra.mxu0 0.0
  %282 = vmatpush.msra.mxu0 0.0
  %283 = vmatpush.msra.mxu0 0.0
  %284 = vmatpush.msra.mxu0 0.0
  %285 = vmatpush.msra.mxu0 0.0
  %286 = vmatpush.msra.mxu0 0.0
  %287 = vmatpush.msra.mxu0 0.0
  %v288 = vand.u32 %v224, 4294901760
  %v289 = vsub.f32 %v224, %v288
  %v290 = vand.u32 %v289, 4294901760
  %v291 = vsub.f32 %v289, %v290
  %v292 = vand.u32 %v291, 4294901760
  %293 = vmatpush.msra.mxu0 %v292
  %v294 = vand.u32 %v223, 4294901760
  %v295 = vsub.f32 %v223, %v294
  %v296 = vand.u32 %v295, 4294901760
  %v297 = vsub.f32 %v295, %v296
  %v298 = vand.u32 %v297, 4294901760
  %299 = vmatpush.msra.mxu0 %v298
  %v300 = vand.u32 %v222, 4294901760
  %v301 = vsub.f32 %v222, %v300
  %v302 = vand.u32 %v301, 4294901760
  %v303 = vsub.f32 %v301, %v302
  %v304 = vand.u32 %v303, 4294901760
  %305 = vmatpush.msra.mxu0 %v304
  %v306 = vand.u32 %v221, 4294901760
  %v307 = vsub.f32 %v221, %v306
  %v308 = vand.u32 %v307, 4294901760
  %v309 = vsub.f32 %v307, %v308
  %v310 = vand.u32 %v309, 4294901760
  %311 = vmatpush.msra.mxu0 %v310
  %v312 = vand.u32 %v234, 4294901760
  %313 = vmatmul.f32.gmra.mxu0 %v312
  %v314 = vpop.f32.mrf.mxu0
  %v315 = vadd.f32 %v266, %v314
  %v316 = vand.u32 %v237, 4294901760
  %317 = vmatmul.f32.gmra.mxu0 %v316
  %v318 = vpop.f32.mrf.mxu0
  %v319 = vadd.f32 %v274, %v318
  %320 = vdwg.mxu0
  %321 = vmatpush.msra.mxu0 0.0
  %322 = vmatpush.msra.mxu0 0.0
  %323 = vmatpush.msra.mxu0 0.0
  %324 = vmatpush.msra.mxu0 0.0
  %325 = vmatpush.msra.mxu0 0.0
  %326 = vmatpush.msra.mxu0 0.0
  %327 = vmatpush.msra.mxu0 0.0
  %328 = vmatpush.msra.mxu0 0.0
  %329 = vmatpush.msra.mxu0 0.0
  %330 = vmatpush.msra.mxu0 0.0
  %331 = vmatpush.msra.mxu0 0.0
  %332 = vmatpush.msra.mxu0 0.0
  %v333 = vand.u32 %v224, 4294901760
  %v334 = vsub.f32 %v224, %v333
  %335 = vmatpush.msra.mxu0 %v334
  %v336 = vand.u32 %v223, 4294901760
  %v337 = vsub.f32 %v223, %v336
  %338 = vmatpush.msra.mxu0 %v337
  %v339 = vand.u32 %v222, 4294901760
  %v340 = vsub.f32 %v222, %v339
  %341 = vmatpush.msra.mxu0 %v340
  %v342 = vand.u32 %v221, 4294901760
  %v343 = vsub.f32 %v221, %v342
  %344 = vmatpush.msra.mxu0 %v343
  %v345 = vand.u32 %v234, 4294901760
  %v346 = vsub.f32 %v234, %v345
  %347 = vmatmul.f32.gmra.mxu0 %v346
  %v348 = vpop.f32.mrf.mxu0
  %v349 = vadd.f32 %v315, %v348
  %v350 = vand.u32 %v237, 4294901760
  %v351 = vsub.f32 %v237, %v350
  %352 = vmatmul.f32.gmra.mxu0 %v351
  %v353 = vpop.f32.mrf.mxu0
  %v354 = vadd.f32 %v319, %v353
  %355 = vdwg.mxu0
  %356 = vmatpush.msra.mxu0 0.0
  %357 = vmatpush.msra.mxu0 0.0
  %358 = vmatpush.msra.mxu0 0.0
  %359 = vmatpush.msra.mxu0 0.0
  %360 = vmatpush.msra.mxu0 0.0
  %361 = vmatpush.msra.mxu0 0.0
  %362 = vmatpush.msra.mxu0 0.0
  %363 = vmatpush.msra.mxu0 0.0
  %364 = vmatpush.msra.mxu0 0.0
  %365 = vmatpush.msra.mxu0 0.0
  %366 = vmatpush.msra.mxu0 0.0
  %367 = vmatpush.msra.mxu0 0.0
  %v368 = vand.u32 %v224, 4294901760
  %369 = vmatpush.msra.mxu0 %v368
  %v370 = vand.u32 %v223, 4294901760
  %371 = vmatpush.msra.mxu0 %v370
  %v372 = vand.u32 %v222, 4294901760
  %373 = vmatpush.msra.mxu0 %v372
  %v374 = vand.u32 %v221, 4294901760
  %375 = vmatpush.msra.mxu0 %v374
  %v376 = vand.u32 %v234, 4294901760
  %v377 = vsub.f32 %v234, %v376
  %v378 = vand.u32 %v377, 4294901760
  %379 = vmatmul.f32.gmra.mxu0 %v378
  %v380 = vpop.f32.mrf.mxu0
  %v381 = vadd.f32 %v349, %v380
  %v382 = vand.u32 %v237, 4294901760
  %v383 = vsub.f32 %v237, %v382
  %v384 = vand.u32 %v383, 4294901760
  %385 = vmatmul.f32.gmra.mxu0 %v384
  %v386 = vpop.f32.mrf.mxu0
  %v387 = vadd.f32 %v354, %v386
  %388 = vdwg.mxu0
  %389 = vmatpush.msra.mxu0 0.0
  %390 = vmatpush.msra.mxu0 0.0
  %391 = vmatpush.msra.mxu0 0.0
  %392 = vmatpush.msra.mxu0 0.0
  %393 = vmatpush.msra.mxu0 0.0
  %394 = vmatpush.msra.mxu0 0.0
  %395 = vmatpush.msra.mxu0 0.0
  %396 = vmatpush.msra.mxu0 0.0
  %397 = vmatpush.msra.mxu0 0.0
  %398 = vmatpush.msra.mxu0 0.0
  %399 = vmatpush.msra.mxu0 0.0
  %400 = vmatpush.msra.mxu0 0.0
  %v401 = vand.u32 %v224, 4294901760
  %v402 = vsub.f32 %v224, %v401
  %v403 = vand.u32 %v402, 4294901760
  %404 = vmatpush.msra.mxu0 %v403
  %v405 = vand.u32 %v223, 4294901760
  %v406 = vsub.f32 %v223, %v405
  %v407 = vand.u32 %v406, 4294901760
  %408 = vmatpush.msra.mxu0 %v407
  %v409 = vand.u32 %v222, 4294901760
  %v410 = vsub.f32 %v222, %v409
  %v411 = vand.u32 %v410, 4294901760
  %412 = vmatpush.msra.mxu0 %v411
  %v413 = vand.u32 %v221, 4294901760
  %v414 = vsub.f32 %v221, %v413
  %v415 = vand.u32 %v414, 4294901760
  %416 = vmatpush.msra.mxu0 %v415
  %v417 = vand.u32 %v234, 4294901760
  %418 = vmatmul.f32.gmra.mxu0 %v417
  %v419 = vpop.f32.mrf.mxu0
  %v420 = vadd.f32 %v381, %v419
  %v421 = vand.u32 %v237, 4294901760
  %422 = vmatmul.f32.gmra.mxu0 %v421
  %v423 = vpop.f32.mrf.mxu0
  %v424 = vadd.f32 %v387, %v423
  %425 = vdwg.mxu0
  %426 = vmatpush.msra.mxu0 0.0
  %427 = vmatpush.msra.mxu0 0.0
  %428 = vmatpush.msra.mxu0 0.0
  %429 = vmatpush.msra.mxu0 0.0
  %430 = vmatpush.msra.mxu0 0.0
  %431 = vmatpush.msra.mxu0 0.0
  %432 = vmatpush.msra.mxu0 0.0
  %433 = vmatpush.msra.mxu0 0.0
  %434 = vmatpush.msra.mxu0 0.0
  %435 = vmatpush.msra.mxu0 0.0
  %436 = vmatpush.msra.mxu0 0.0
  %437 = vmatpush.msra.mxu0 0.0
  %v438 = vand.u32 %v224, 4294901760
  %439 = vmatpush.msra.mxu0 %v438
  %v440 = vand.u32 %v223, 4294901760
  %441 = vmatpush.msra.mxu0 %v440
  %v442 = vand.u32 %v222, 4294901760
  %443 = vmatpush.msra.mxu0 %v442
  %v444 = vand.u32 %v221, 4294901760
  %445 = vmatpush.msra.mxu0 %v444
  %v446 = vand.u32 %v234, 4294901760
  %447 = vmatmul.f32.gmra.mxu0 %v446
  %v448 = vpop.f32.mrf.mxu0
  %v449 = vadd.f32 %v420, %v448
  %v450 = vand.u32 %v237, 4294901760
  %451 = vmatmul.f32.gmra.mxu0 %v450
  %v452 = vpop.f32.mrf.mxu0
  %v453 = vadd.f32 %v424, %v452
  %454 = vdwg.mxu0
  %457 = vrot.lane.b32.xlu0 %v449, 32
  %v458 = vpop.permute.xlu0 %457
  %459 = vrot.lane.b32.xlu0 %v453, 32
  %v460 = vpop.permute.xlu0 %459
  %463 = vxpose.xlu0.b32.start [1/16] %v458, 128
  %464 = vxpose.xlu0.b32.cont [2/16] %v460, 128
  %465 = vxpose.xlu0.b32.cont [3/16] 0.0, 128
  %466 = vxpose.xlu0.b32.cont [4/16] 0.0, 128
  %467 = vxpose.xlu0.b32.cont [5/16] 0.0, 128
  %468 = vxpose.xlu0.b32.cont [6/16] 0.0, 128
  %469 = vxpose.xlu0.b32.cont [7/16] 0.0, 128
  %470 = vxpose.xlu0.b32.cont [8/16] 0.0, 128
  %471 = vxpose.xlu0.b32.cont [9/16] 0.0, 128
  %472 = vxpose.xlu0.b32.cont [10/16] 0.0, 128
  %473 = vxpose.xlu0.b32.cont [11/16] 0.0, 128
  %474 = vxpose.xlu0.b32.cont [12/16] 0.0, 128
  %475 = vxpose.xlu0.b32.cont [13/16] 0.0, 128
  %476 = vxpose.xlu0.b32.cont [14/16] 0.0, 128
  %477 = vxpose.xlu0.b32.cont [15/16] 0.0, 128
  %478 = vxpose.xlu0.b32.end [16/16] 0.0, 128
  %v479 = vpop.trf.xlu0
  %v480 = vpop.trf.xlu0
  %v481 = vpop.trf.xlu0
  %v482 = vpop.trf.xlu0
  %v483 = vpop.trf.xlu0
  %v484 = vpop.trf.xlu0
  %v485 = vpop.trf.xlu0
  %v486 = vpop.trf.xlu0
  %v487 = vpop.trf.xlu0
  %v488 = vpop.trf.xlu0
  %v489 = vpop.trf.xlu0
  %v490 = vpop.trf.xlu0
  %v491 = vpop.trf.xlu0
  %v492 = vpop.trf.xlu0
  %v493 = vpop.trf.xlu0
  %v494 = vpop.trf.xlu0
  %495 = vrot.lane.b32.xlu0 %v449, 96
  %v496 = vpop.permute.xlu0 %495
  %v497 = vsel %vm232, %v449, 0
  %v499 = vsel %vm232, %v496, 0
  %501 = vmatpush.xpose.msra.mxu0 0.0
  %502 = vmatpush.xpose.msra.mxu0 0.0
  %503 = vmatpush.xpose.msra.mxu0 0.0
  %504 = vmatpush.xpose.msra.mxu0 0.0
  %505 = vmatpush.xpose.msra.mxu0 0.0
  %506 = vmatpush.xpose.msra.mxu0 0.0
  %507 = vmatpush.xpose.msra.mxu0 0.0
  %508 = vmatpush.xpose.msra.mxu0 0.0
  %509 = vmatpush.xpose.msra.mxu0 0.0
  %510 = vmatpush.xpose.msra.mxu0 0.0
  %511 = vmatpush.xpose.msra.mxu0 0.0
  %512 = vmatpush.xpose.msra.mxu0 0.0
  %513 = vmatpush.xpose.msra.mxu0 0.0
  %514 = vmatpush.xpose.msra.mxu0 0.0
  %515 = vmatpush.xpose.msra.mxu0 0.0
  %v516 = vand.u32 %v499, 4294901760
  %517 = vmatpush.xpose.msra.mxu0 %v516
  %v518 = vand.u32 %v497, 4294901760
  %v519 = vsub.f32 %v497, %v518
  %v520 = vand.u32 %v519, 4294901760
  %v521 = vsub.f32 %v519, %v520
  %v522 = vand.u32 %v521, 4294901760
  %523 = vmatmul.f32.gmra.mxu0 %v522
  %v524 = vpop.f32.mrf.mxu0
  %v525 = vadd.f32 0.0, %v524
  %526 = vdwg.mxu0
  %527 = vmatpush.xpose.msra.mxu0 0.0
  %528 = vmatpush.xpose.msra.mxu0 0.0
  %529 = vmatpush.xpose.msra.mxu0 0.0
  %530 = vmatpush.xpose.msra.mxu0 0.0
  %531 = vmatpush.xpose.msra.mxu0 0.0
  %532 = vmatpush.xpose.msra.mxu0 0.0
  %533 = vmatpush.xpose.msra.mxu0 0.0
  %534 = vmatpush.xpose.msra.mxu0 0.0
  %535 = vmatpush.xpose.msra.mxu0 0.0
  %536 = vmatpush.xpose.msra.mxu0 0.0
  %537 = vmatpush.xpose.msra.mxu0 0.0
  %538 = vmatpush.xpose.msra.mxu0 0.0
  %539 = vmatpush.xpose.msra.mxu0 0.0
  %540 = vmatpush.xpose.msra.mxu0 0.0
  %541 = vmatpush.xpose.msra.mxu0 0.0
  %v542 = vand.u32 %v499, 4294901760
  %v543 = vsub.f32 %v499, %v542
  %v544 = vand.u32 %v543, 4294901760
  %v545 = vsub.f32 %v543, %v544
  %v546 = vand.u32 %v545, 4294901760
  %547 = vmatpush.xpose.msra.mxu0 %v546
  %v548 = vand.u32 %v497, 4294901760
  %549 = vmatmul.f32.gmra.mxu0 %v548
  %v550 = vpop.f32.mrf.mxu0
  %v551 = vadd.f32 %v525, %v550
  %552 = vdwg.mxu0
  %553 = vmatpush.xpose.msra.mxu0 0.0
  %554 = vmatpush.xpose.msra.mxu0 0.0
  %555 = vmatpush.xpose.msra.mxu0 0.0
  %556 = vmatpush.xpose.msra.mxu0 0.0
  %557 = vmatpush.xpose.msra.mxu0 0.0
  %558 = vmatpush.xpose.msra.mxu0 0.0
  %559 = vmatpush.xpose.msra.mxu0 0.0
  %560 = vmatpush.xpose.msra.mxu0 0.0
  %561 = vmatpush.xpose.msra.mxu0 0.0
  %562 = vmatpush.xpose.msra.mxu0 0.0
  %563 = vmatpush.xpose.msra.mxu0 0.0
  %564 = vmatpush.xpose.msra.mxu0 0.0
  %565 = vmatpush.xpose.msra.mxu0 0.0
  %566 = vmatpush.xpose.msra.mxu0 0.0
  %567 = vmatpush.xpose.msra.mxu0 0.0
  %v568 = vand.u32 %v499, 4294901760
  %v569 = vsub.f32 %v499, %v568
  %570 = vmatpush.xpose.msra.mxu0 %v569
  %v571 = vand.u32 %v497, 4294901760
  %v572 = vsub.f32 %v497, %v571
  %573 = vmatmul.f32.gmra.mxu0 %v572
  %v574 = vpop.f32.mrf.mxu0
  %v575 = vadd.f32 %v551, %v574
  %576 = vdwg.mxu0
  %577 = vmatpush.xpose.msra.mxu0 0.0
  %578 = vmatpush.xpose.msra.mxu0 0.0
  %579 = vmatpush.xpose.msra.mxu0 0.0
  %580 = vmatpush.xpose.msra.mxu0 0.0
  %581 = vmatpush.xpose.msra.mxu0 0.0
  %582 = vmatpush.xpose.msra.mxu0 0.0
  %583 = vmatpush.xpose.msra.mxu0 0.0
  %584 = vmatpush.xpose.msra.mxu0 0.0
  %585 = vmatpush.xpose.msra.mxu0 0.0
  %586 = vmatpush.xpose.msra.mxu0 0.0
  %587 = vmatpush.xpose.msra.mxu0 0.0
  %588 = vmatpush.xpose.msra.mxu0 0.0
  %589 = vmatpush.xpose.msra.mxu0 0.0
  %590 = vmatpush.xpose.msra.mxu0 0.0
  %591 = vmatpush.xpose.msra.mxu0 0.0
  %v592 = vand.u32 %v499, 4294901760
  %593 = vmatpush.xpose.msra.mxu0 %v592
  %v594 = vand.u32 %v497, 4294901760
  %v595 = vsub.f32 %v497, %v594
  %v596 = vand.u32 %v595, 4294901760
  %597 = vmatmul.f32.gmra.mxu0 %v596
  %v598 = vpop.f32.mrf.mxu0
  %v599 = vadd.f32 %v575, %v598
  %600 = vdwg.mxu0
  %601 = vmatpush.xpose.msra.mxu0 0.0
  %602 = vmatpush.xpose.msra.mxu0 0.0
  %603 = vmatpush.xpose.msra.mxu0 0.0
  %604 = vmatpush.xpose.msra.mxu0 0.0
  %605 = vmatpush.xpose.msra.mxu0 0.0
  %606 = vmatpush.xpose.msra.mxu0 0.0
  %607 = vmatpush.xpose.msra.mxu0 0.0
  %608 = vmatpush.xpose.msra.mxu0 0.0
  %609 = vmatpush.xpose.msra.mxu0 0.0
  %610 = vmatpush.xpose.msra.mxu0 0.0
  %611 = vmatpush.xpose.msra.mxu0 0.0
  %612 = vmatpush.xpose.msra.mxu0 0.0
  %613 = vmatpush.xpose.msra.mxu0 0.0
  %614 = vmatpush.xpose.msra.mxu0 0.0
  %615 = vmatpush.xpose.msra.mxu0 0.0
  %v616 = vand.u32 %v499, 4294901760
  %v617 = vsub.f32 %v499, %v616
  %v618 = vand.u32 %v617, 4294901760
  %619 = vmatpush.xpose.msra.mxu0 %v618
  %v620 = vand.u32 %v497, 4294901760
  %621 = vmatmul.f32.gmra.mxu0 %v620
  %v622 = vpop.f32.mrf.mxu0
  %v623 = vadd.f32 %v599, %v622
  %624 = vdwg.mxu0
  %625 = vmatpush.xpose.msra.mxu0 0.0
  %626 = vmatpush.xpose.msra.mxu0 0.0
  %627 = vmatpush.xpose.msra.mxu0 0.0
  %628 = vmatpush.xpose.msra.mxu0 0.0
  %629 = vmatpush.xpose.msra.mxu0 0.0
  %630 = vmatpush.xpose.msra.mxu0 0.0
  %631 = vmatpush.xpose.msra.mxu0 0.0
  %632 = vmatpush.xpose.msra.mxu0 0.0
  %633 = vmatpush.xpose.msra.mxu0 0.0
  %634 = vmatpush.xpose.msra.mxu0 0.0
  %635 = vmatpush.xpose.msra.mxu0 0.0
  %636 = vmatpush.xpose.msra.mxu0 0.0
  %637 = vmatpush.xpose.msra.mxu0 0.0
  %638 = vmatpush.xpose.msra.mxu0 0.0
  %639 = vmatpush.xpose.msra.mxu0 0.0
  %v640 = vand.u32 %v499, 4294901760
  %641 = vmatpush.xpose.msra.mxu0 %v640
  %v642 = vand.u32 %v497, 4294901760
  %643 = vmatmul.f32.gmra.mxu0 %v642
  %v644 = vpop.f32.mrf.mxu0
  %v645 = vadd.f32 %v623, %v644
  %646 = vdwg.mxu0
  %v647 = vmul.f32 %v645, 0.17677669
  %648 = vset.pattern.permute.xlu0 96
  %649 = vperm.xlu0 %648, %v449
  %v650 = vpop.permute.xlu0 %649
  %v652 = vperm.slane %v479, 0
  %v653 = vsub.f32 %v650, %v652
  %654 = vset.pattern.permute.xlu0 97
  %655 = vperm.xlu0 %654, %v449
  %v656 = vpop.permute.xlu0 %655
  %v658 = vperm.slane %v479, 1
  %v659 = vsub.f32 %v656, %v658
  %v660 = vmul.f32 %v653, %v653
  %v661 = vmul.f32 %v659, %v659
  %v662 = vadd.f32 %v660, %v661
  %vm663 = vcmask 64512
  %v664 = vsel %vm663, %v662, 0.0
  %665 = vadd.xlane.f32.xlu0 %v664
  %v666 = vpop.xlane.xlu0 %665
  %v667 = vrot.slane %v666, 4
  %v668 = vadd.f32 %v666, %v667
  %v669 = vrot.slane %v668, 2
  %v670 = vadd.f32 %v668, %v669
  %v671 = vrot.slane %v670, 1
  %v672 = vadd.f32 %v670, %v671
  %s673 = vtos %v672
  %v674 = vrcp.pop 64.0
  %v675 = vmul.f32 64.0, %v674
  %v676 = vsub.f32 1.0, %v675
  %v677 = vmul.f32 %v674, %v676
  %v678 = vadd.f32 %v674, %v677
  %vm679 = vweird.f32 %v674
  %v680 = vsel %vm679, %v674, %v678
  %s681 = vtos %v680
  %s682 = smul.f32 %s673, %s681
  %v683 = vstv %s682
  %v684 = vsub.f32 %v662, %v683
  %v685 = vmul.f32 %v684, %v684
  %v686 = vsel %vm663, %v685, 0.0
  %687 = vadd.xlane.f32.xlu0 %v686
  %v688 = vpop.xlane.xlu0 %687
  %v689 = vrot.slane %v688, 4
  %v690 = vadd.f32 %v688, %v689
  %v691 = vrot.slane %v690, 2
  %v692 = vadd.f32 %v690, %v691
  %v693 = vrot.slane %v692, 1
  %v694 = vadd.f32 %v692, %v693
  %s695 = vtos %v694
  %v696 = vrcp.pop 63.0
  %v697 = vmul.f32 63.0, %v696
  %v698 = vsub.f32 1.0, %v697
  %v699 = vmul.f32 %v696, %v698
  %v700 = vadd.f32 %v696, %v699
  %vm701 = vweird.f32 %v696
  %v702 = vsel %vm701, %v696, %v700
  %s703 = vtos %v702
  %s704 = smul.f32 %s695, %s703
  %v705 = vstv %s704
  %v706 = vrsqrt.pop %v705
  %v707 = vmul.f32 %v706, %v705
  %v708 = vmul.f32 %v707, %v706
  %v709 = vmul.f32 0.5, %v708
  %v710 = vsub.f32 1.5, %v709
  %v711 = vmul.f32 %v706, %v710
  %v712 = vmul.f32 %v705, %v711
  %vm713 = vcmp.eq.f32.partialorder %v705, inf
  %v714 = vsel %vm713, %v705, %v712
  %vm715 = vcmp.eq.f32.partialorder %v705, 0.0
  %v716 = vand.u32 %v705, 2147483648
  %v717 = vsel %vm715, %v716, %v714
  %s718 = vtos %v717
  %s719 = smul.f32 %s718, 1.25
  %s720 = sadd.f32 %s682, %s719
  %vm721 = vcmp.eq.f32.partialorder %v659, 0.0
  %vm722 = vcmp.lt.f32.partialorder %v653, 0.0
  %vm723 = vmand %vm721, %vm722
  %v724 = vstv %s720
  %vm725 = vcmp.le.f32.partialorder %v662, %v724
  %vm726 = vmand %vm725, %vm219
  %vm727 = vmxor %vm723, 1
  %vm728 = vmand %vm726, %vm727
  %vm729 = vmor %vm728, %vm220
  %v730 = vsel %vm729, %v647, -inf
  %v731 = vsel %vm663, %v730, -inf
  %732 = vmax.xlane.f32.xlu0 %v731
  %v733 = vpop.xlane.xlu0 %732
  %v734 = vsub.f32 %v730, %v733
  %v735 = vmul.f32 %v734, 1.442695
  %v736 = vpow.pop %v735
  %v737 = vsel %vm663, %v736, 0.0
  %738 = vadd.xlane.f32.xlu0 %v737
  %v739 = vpop.xlane.xlu0 %738
  %v740 = vrcp.pop %v739
  %v741 = vmul.f32 %v739, %v740
  %v742 = vsub.f32 1.0, %v741
  %v743 = vmul.f32 %v740, %v742
  %v744 = vadd.f32 %v740, %v743
  %vm745 = vweird.f32 %v739
  %vm746 = vweird.f32 %v740
  %vm747 = vmor %vm745, %vm746
  %v748 = vsel %vm747, %v740, %v744
  %v749 = vand.u32 2147483647, %v739
  %vm750 = vcmp.eq.f32.partialorder %v749, 8.507059e+37
  %v751 = vand.u32 %v739, 2147483648
  %v752 = vor.u32 1.1754944e-38, %v751
  %v753 = vsel %vm750, %v752, %v748
  %v754 = vmul.f32 %v736, %v753
  %755 = vrot.lane.b32.xlu0 %v449, 64
  %v756 = vpop.permute.xlu0 %755
  %v759 = vsel %vm663, %v754, 0
  %761 = vmatpush.msra.mxu0 0.0
  %762 = vmatpush.msra.mxu0 0.0
  %763 = vmatpush.msra.mxu0 0.0
  %764 = vmatpush.msra.mxu0 0.0
  %765 = vmatpush.msra.mxu0 0.0
  %766 = vmatpush.msra.mxu0 0.0
  %767 = vmatpush.msra.mxu0 0.0
  %768 = vmatpush.msra.mxu0 0.0
  %769 = vmatpush.msra.mxu0 0.0
  %770 = vmatpush.msra.mxu0 0.0
  %771 = vmatpush.msra.mxu0 0.0
  %772 = vmatpush.msra.mxu0 0.0
  %773 = vmatpush.msra.mxu0 0.0
  %774 = vmatpush.msra.mxu0 0.0
  %775 = vmatpush.msra.mxu0 0.0
  %v776 = vand.u32 %v756, 4294901760
  %777 = vmatpush.msra.mxu0 %v776
  %v778 = vand.u32 %v759, 4294901760
  %v779 = vsub.f32 %v759, %v778
  %v780 = vand.u32 %v779, 4294901760
  %v781 = vsub.f32 %v779, %v780
  %v782 = vand.u32 %v781, 4294901760
  %783 = vmatmul.f32.gmra.mxu0 %v782
  %v784 = vpop.f32.mrf.mxu0
  %v785 = vadd.f32 0.0, %v784
  %786 = vdwg.mxu0
  %787 = vmatpush.msra.mxu0 0.0
  %788 = vmatpush.msra.mxu0 0.0
  %789 = vmatpush.msra.mxu0 0.0
  %790 = vmatpush.msra.mxu0 0.0
  %791 = vmatpush.msra.mxu0 0.0
  %792 = vmatpush.msra.mxu0 0.0
  %793 = vmatpush.msra.mxu0 0.0
  %794 = vmatpush.msra.mxu0 0.0
  %795 = vmatpush.msra.mxu0 0.0
  %796 = vmatpush.msra.mxu0 0.0
  %797 = vmatpush.msra.mxu0 0.0
  %798 = vmatpush.msra.mxu0 0.0
  %799 = vmatpush.msra.mxu0 0.0
  %800 = vmatpush.msra.mxu0 0.0
  %801 = vmatpush.msra.mxu0 0.0
  %v802 = vand.u32 %v756, 4294901760
  %v803 = vsub.f32 %v756, %v802
  %v804 = vand.u32 %v803, 4294901760
  %v805 = vsub.f32 %v803, %v804
  %v806 = vand.u32 %v805, 4294901760
  %807 = vmatpush.msra.mxu0 %v806
  %v808 = vand.u32 %v759, 4294901760
  %809 = vmatmul.f32.gmra.mxu0 %v808
  %v810 = vpop.f32.mrf.mxu0
  %v811 = vadd.f32 %v785, %v810
  %812 = vdwg.mxu0
  %813 = vmatpush.msra.mxu0 0.0
  %814 = vmatpush.msra.mxu0 0.0
  %815 = vmatpush.msra.mxu0 0.0
  %816 = vmatpush.msra.mxu0 0.0
  %817 = vmatpush.msra.mxu0 0.0
  %818 = vmatpush.msra.mxu0 0.0
  %819 = vmatpush.msra.mxu0 0.0
  %820 = vmatpush.msra.mxu0 0.0
  %821 = vmatpush.msra.mxu0 0.0
  %822 = vmatpush.msra.mxu0 0.0
  %823 = vmatpush.msra.mxu0 0.0
  %824 = vmatpush.msra.mxu0 0.0
  %825 = vmatpush.msra.mxu0 0.0
  %826 = vmatpush.msra.mxu0 0.0
  %827 = vmatpush.msra.mxu0 0.0
  %v828 = vand.u32 %v756, 4294901760
  %v829 = vsub.f32 %v756, %v828
  %830 = vmatpush.msra.mxu0 %v829
  %v831 = vand.u32 %v759, 4294901760
  %v832 = vsub.f32 %v759, %v831
  %833 = vmatmul.f32.gmra.mxu0 %v832
  %v834 = vpop.f32.mrf.mxu0
  %v835 = vadd.f32 %v811, %v834
  %836 = vdwg.mxu0
  %837 = vmatpush.msra.mxu0 0.0
  %838 = vmatpush.msra.mxu0 0.0
  %839 = vmatpush.msra.mxu0 0.0
  %840 = vmatpush.msra.mxu0 0.0
  %841 = vmatpush.msra.mxu0 0.0
  %842 = vmatpush.msra.mxu0 0.0
  %843 = vmatpush.msra.mxu0 0.0
  %844 = vmatpush.msra.mxu0 0.0
  %845 = vmatpush.msra.mxu0 0.0
  %846 = vmatpush.msra.mxu0 0.0
  %847 = vmatpush.msra.mxu0 0.0
  %848 = vmatpush.msra.mxu0 0.0
  %849 = vmatpush.msra.mxu0 0.0
  %850 = vmatpush.msra.mxu0 0.0
  %851 = vmatpush.msra.mxu0 0.0
  %v852 = vand.u32 %v756, 4294901760
  %853 = vmatpush.msra.mxu0 %v852
  %v854 = vand.u32 %v759, 4294901760
  %v855 = vsub.f32 %v759, %v854
  %v856 = vand.u32 %v855, 4294901760
  %857 = vmatmul.f32.gmra.mxu0 %v856
  %v858 = vpop.f32.mrf.mxu0
  %v859 = vadd.f32 %v835, %v858
  %860 = vdwg.mxu0
  %861 = vmatpush.msra.mxu0 0.0
  %862 = vmatpush.msra.mxu0 0.0
  %863 = vmatpush.msra.mxu0 0.0
  %864 = vmatpush.msra.mxu0 0.0
  %865 = vmatpush.msra.mxu0 0.0
  %866 = vmatpush.msra.mxu0 0.0
  %867 = vmatpush.msra.mxu0 0.0
  %868 = vmatpush.msra.mxu0 0.0
  %869 = vmatpush.msra.mxu0 0.0
  %870 = vmatpush.msra.mxu0 0.0
  %871 = vmatpush.msra.mxu0 0.0
  %872 = vmatpush.msra.mxu0 0.0
  %873 = vmatpush.msra.mxu0 0.0
  %874 = vmatpush.msra.mxu0 0.0
  %875 = vmatpush.msra.mxu0 0.0
  %v876 = vand.u32 %v756, 4294901760
  %v877 = vsub.f32 %v756, %v876
  %v878 = vand.u32 %v877, 4294901760
  %879 = vmatpush.msra.mxu0 %v878
  %v880 = vand.u32 %v759, 4294901760
  %881 = vmatmul.f32.gmra.mxu0 %v880
  %v882 = vpop.f32.mrf.mxu0
  %v883 = vadd.f32 %v859, %v882
  %884 = vdwg.mxu0
  %885 = vmatpush.msra.mxu0 0.0
  %886 = vmatpush.msra.mxu0 0.0
  %887 = vmatpush.msra.mxu0 0.0
  %888 = vmatpush.msra.mxu0 0.0
  %889 = vmatpush.msra.mxu0 0.0
  %890 = vmatpush.msra.mxu0 0.0
  %891 = vmatpush.msra.mxu0 0.0
  %892 = vmatpush.msra.mxu0 0.0
  %893 = vmatpush.msra.mxu0 0.0
  %894 = vmatpush.msra.mxu0 0.0
  %895 = vmatpush.msra.mxu0 0.0
  %896 = vmatpush.msra.mxu0 0.0
  %897 = vmatpush.msra.mxu0 0.0
  %898 = vmatpush.msra.mxu0 0.0
  %899 = vmatpush.msra.mxu0 0.0
  %v900 = vand.u32 %v756, 4294901760
  %901 = vmatpush.msra.mxu0 %v900
  %v902 = vand.u32 %v759, 4294901760
  %903 = vmatmul.f32.gmra.mxu0 %v902
  %v904 = vpop.f32.mrf.mxu0
  %v905 = vadd.f32 %v883, %v904
  %906 = vdwg.mxu0
  %907 = vrot.lane.b32.xlu0 %v453, 96
  %v908 = vpop.permute.xlu0 %907
  %v909 = vsel %vm232, %v453, 0
  %v911 = vsel %vm232, %v908, 0
  %913 = vmatpush.xpose.msra.mxu0 0.0
  %914 = vmatpush.xpose.msra.mxu0 0.0
  %915 = vmatpush.xpose.msra.mxu0 0.0
  %916 = vmatpush.xpose.msra.mxu0 0.0
  %917 = vmatpush.xpose.msra.mxu0 0.0
  %918 = vmatpush.xpose.msra.mxu0 0.0
  %919 = vmatpush.xpose.msra.mxu0 0.0
  %920 = vmatpush.xpose.msra.mxu0 0.0
  %921 = vmatpush.xpose.msra.mxu0 0.0
  %922 = vmatpush.xpose.msra.mxu0 0.0
  %923 = vmatpush.xpose.msra.mxu0 0.0
  %924 = vmatpush.xpose.msra.mxu0 0.0
  %925 = vmatpush.xpose.msra.mxu0 0.0
  %926 = vmatpush.xpose.msra.mxu0 0.0
  %927 = vmatpush.xpose.msra.mxu0 0.0
  %v928 = vand.u32 %v911, 4294901760
  %929 = vmatpush.xpose.msra.mxu0 %v928
  %v930 = vand.u32 %v909, 4294901760
  %v931 = vsub.f32 %v909, %v930
  %v932 = vand.u32 %v931, 4294901760
  %v933 = vsub.f32 %v931, %v932
  %v934 = vand.u32 %v933, 4294901760
  %935 = vmatmul.f32.gmra.mxu0 %v934
  %v936 = vpop.f32.mrf.mxu0
  %v937 = vadd.f32 0.0, %v936
  %938 = vdwg.mxu0
  %939 = vmatpush.xpose.msra.mxu0 0.0
  %940 = vmatpush.xpose.msra.mxu0 0.0
  %941 = vmatpush.xpose.msra.mxu0 0.0
  %942 = vmatpush.xpose.msra.mxu0 0.0
  %943 = vmatpush.xpose.msra.mxu0 0.0
  %944 = vmatpush.xpose.msra.mxu0 0.0
  %945 = vmatpush.xpose.msra.mxu0 0.0
  %946 = vmatpush.xpose.msra.mxu0 0.0
  %947 = vmatpush.xpose.msra.mxu0 0.0
  %948 = vmatpush.xpose.msra.mxu0 0.0
  %949 = vmatpush.xpose.msra.mxu0 0.0
  %950 = vmatpush.xpose.msra.mxu0 0.0
  %951 = vmatpush.xpose.msra.mxu0 0.0
  %952 = vmatpush.xpose.msra.mxu0 0.0
  %953 = vmatpush.xpose.msra.mxu0 0.0
  %v954 = vand.u32 %v911, 4294901760
  %v955 = vsub.f32 %v911, %v954
  %v956 = vand.u32 %v955, 4294901760
  %v957 = vsub.f32 %v955, %v956
  %v958 = vand.u32 %v957, 4294901760
  %959 = vmatpush.xpose.msra.mxu0 %v958
  %v960 = vand.u32 %v909, 4294901760
  %961 = vmatmul.f32.gmra.mxu0 %v960
  %v962 = vpop.f32.mrf.mxu0
  %v963 = vadd.f32 %v937, %v962
  %964 = vdwg.mxu0
  %965 = vmatpush.xpose.msra.mxu0 0.0
  %966 = vmatpush.xpose.msra.mxu0 0.0
  %967 = vmatpush.xpose.msra.mxu0 0.0
  %968 = vmatpush.xpose.msra.mxu0 0.0
  %969 = vmatpush.xpose.msra.mxu0 0.0
  %970 = vmatpush.xpose.msra.mxu0 0.0
  %971 = vmatpush.xpose.msra.mxu0 0.0
  %972 = vmatpush.xpose.msra.mxu0 0.0
  %973 = vmatpush.xpose.msra.mxu0 0.0
  %974 = vmatpush.xpose.msra.mxu0 0.0
  %975 = vmatpush.xpose.msra.mxu0 0.0
  %976 = vmatpush.xpose.msra.mxu0 0.0
  %977 = vmatpush.xpose.msra.mxu0 0.0
  %978 = vmatpush.xpose.msra.mxu0 0.0
  %979 = vmatpush.xpose.msra.mxu0 0.0
  %v980 = vand.u32 %v911, 4294901760
  %v981 = vsub.f32 %v911, %v980
  %982 = vmatpush.xpose.msra.mxu0 %v981
  %v983 = vand.u32 %v909, 4294901760
  %v984 = vsub.f32 %v909, %v983
  %985 = vmatmul.f32.gmra.mxu0 %v984
  %v986 = vpop.f32.mrf.mxu0
  %v987 = vadd.f32 %v963, %v986
  %988 = vdwg.mxu0
  %989 = vmatpush.xpose.msra.mxu0 0.0
  %990 = vmatpush.xpose.msra.mxu0 0.0
  %991 = vmatpush.xpose.msra.mxu0 0.0
  %992 = vmatpush.xpose.msra.mxu0 0.0
  %993 = vmatpush.xpose.msra.mxu0 0.0
  %994 = vmatpush.xpose.msra.mxu0 0.0
  %995 = vmatpush.xpose.msra.mxu0 0.0
  %996 = vmatpush.xpose.msra.mxu0 0.0
  %997 = vmatpush.xpose.msra.mxu0 0.0
  %998 = vmatpush.xpose.msra.mxu0 0.0
  %999 = vmatpush.xpose.msra.mxu0 0.0
  %1000 = vmatpush.xpose.msra.mxu0 0.0
  %1001 = vmatpush.xpose.msra.mxu0 0.0
  %1002 = vmatpush.xpose.msra.mxu0 0.0
  %1003 = vmatpush.xpose.msra.mxu0 0.0
  %v1004 = vand.u32 %v911, 4294901760
  %1005 = vmatpush.xpose.msra.mxu0 %v1004
  %v1006 = vand.u32 %v909, 4294901760
  %v1007 = vsub.f32 %v909, %v1006
  %v1008 = vand.u32 %v1007, 4294901760
  %1009 = vmatmul.f32.gmra.mxu0 %v1008
  %v1010 = vpop.f32.mrf.mxu0
  %v1011 = vadd.f32 %v987, %v1010
  %1012 = vdwg.mxu0
  %1013 = vmatpush.xpose.msra.mxu0 0.0
  %1014 = vmatpush.xpose.msra.mxu0 0.0
  %1015 = vmatpush.xpose.msra.mxu0 0.0
  %1016 = vmatpush.xpose.msra.mxu0 0.0
  %1017 = vmatpush.xpose.msra.mxu0 0.0
  %1018 = vmatpush.xpose.msra.mxu0 0.0
  %1019 = vmatpush.xpose.msra.mxu0 0.0
  %1020 = vmatpush.xpose.msra.mxu0 0.0
  %1021 = vmatpush.xpose.msra.mxu0 0.0
  %1022 = vmatpush.xpose.msra.mxu0 0.0
  %1023 = vmatpush.xpose.msra.mxu0 0.0
  %1024 = vmatpush.xpose.msra.mxu0 0.0
  %1025 = vmatpush.xpose.msra.mxu0 0.0
  %1026 = vmatpush.xpose.msra.mxu0 0.0
  %1027 = vmatpush.xpose.msra.mxu0 0.0
  %v1028 = vand.u32 %v911, 4294901760
  %v1029 = vsub.f32 %v911, %v1028
  %v1030 = vand.u32 %v1029, 4294901760
  %1031 = vmatpush.xpose.msra.mxu0 %v1030
  %v1032 = vand.u32 %v909, 4294901760
  %1033 = vmatmul.f32.gmra.mxu0 %v1032
  %v1034 = vpop.f32.mrf.mxu0
  %v1035 = vadd.f32 %v1011, %v1034
  %1036 = vdwg.mxu0
  %1037 = vmatpush.xpose.msra.mxu0 0.0
  %1038 = vmatpush.xpose.msra.mxu0 0.0
  %1039 = vmatpush.xpose.msra.mxu0 0.0
  %1040 = vmatpush.xpose.msra.mxu0 0.0
  %1041 = vmatpush.xpose.msra.mxu0 0.0
  %1042 = vmatpush.xpose.msra.mxu0 0.0
  %1043 = vmatpush.xpose.msra.mxu0 0.0
  %1044 = vmatpush.xpose.msra.mxu0 0.0
  %1045 = vmatpush.xpose.msra.mxu0 0.0
  %1046 = vmatpush.xpose.msra.mxu0 0.0
  %1047 = vmatpush.xpose.msra.mxu0 0.0
  %1048 = vmatpush.xpose.msra.mxu0 0.0
  %1049 = vmatpush.xpose.msra.mxu0 0.0
  %1050 = vmatpush.xpose.msra.mxu0 0.0
  %1051 = vmatpush.xpose.msra.mxu0 0.0
  %v1052 = vand.u32 %v911, 4294901760
  %1053 = vmatpush.xpose.msra.mxu0 %v1052
  %v1054 = vand.u32 %v909, 4294901760
  %1055 = vmatmul.f32.gmra.mxu0 %v1054
  %v1056 = vpop.f32.mrf.mxu0
  %v1057 = vadd.f32 %v1035, %v1056
  %1058 = vdwg.mxu0
  %v1059 = vmul.f32 %v1057, 0.17677669
  %1060 = vset.pattern.permute.xlu0 96
  %1061 = vperm.xlu0 %1060, %v453
  %v1062 = vpop.permute.xlu0 %1061
  %v1064 = vsub.f32 %v1062, %v652
  %1065 = vset.pattern.permute.xlu0 97
  %1066 = vperm.xlu0 %1065, %v453
  %v1067 = vpop.permute.xlu0 %1066
  %v1069 = vsub.f32 %v1067, %v658
  %v1070 = vmul.f32 %v1064, %v1064
  %v1071 = vmul.f32 %v1069, %v1069
  %v1072 = vadd.f32 %v1070, %v1071
  %1074 = vrot.lane.b32.xlu0 %v1072, 120
  %v1075 = vpop.permute.xlu0 %1074
  %v1077 = vsel %vm663, %v1075, 0.0
  %1078 = vadd.xlane.f32.xlu0 %v1077
  %v1079 = vpop.xlane.xlu0 %1078
  %v1080 = vrot.slane %v1079, 4
  %v1081 = vadd.f32 %v1079, %v1080
  %v1082 = vrot.slane %v1081, 2
  %v1083 = vadd.f32 %v1081, %v1082
  %v1084 = vrot.slane %v1083, 1
  %v1085 = vadd.f32 %v1083, %v1084
  %s1086 = vtos %v1085
  %v1087 = vrcp.pop 64.0
  %v1088 = vmul.f32 64.0, %v1087
  %v1089 = vsub.f32 1.0, %v1088
  %v1090 = vmul.f32 %v1087, %v1089
  %v1091 = vadd.f32 %v1087, %v1090
  %vm1092 = vweird.f32 %v1087
  %v1093 = vsel %vm1092, %v1087, %v1091
  %s1094 = vtos %v1093
  %s1095 = smul.f32 %s1086, %s1094
  %v1096 = vstv %s1095
  %v1097 = vsub.f32 %v1072, %v1096
  %v1098 = vmul.f32 %v1097, %v1097
  %1100 = vrot.lane.b32.xlu0 %v1098, 120
  %v1101 = vpop.permute.xlu0 %1100
  %v1103 = vsel %vm663, %v1101, 0.0
  %1104 = vadd.xlane.f32.xlu0 %v1103
  %v1105 = vpop.xlane.xlu0 %1104
  %v1106 = vrot.slane %v1105, 4
  %v1107 = vadd.f32 %v1105, %v1106
  %v1108 = vrot.slane %v1107, 2
  %v1109 = vadd.f32 %v1107, %v1108
  %v1110 = vrot.slane %v1109, 1
  %v1111 = vadd.f32 %v1109, %v1110
  %s1112 = vtos %v1111
  %v1113 = vrcp.pop 63.0
  %v1114 = vmul.f32 63.0, %v1113
  %v1115 = vsub.f32 1.0, %v1114
  %v1116 = vmul.f32 %v1113, %v1115
  %v1117 = vadd.f32 %v1113, %v1116
  %vm1118 = vweird.f32 %v1113
  %v1119 = vsel %vm1118, %v1113, %v1117
  %s1120 = vtos %v1119
  %s1121 = smul.f32 %s1112, %s1120
  %v1122 = vstv %s1121
  %v1123 = vrsqrt.pop %v1122
  %v1124 = vmul.f32 %v1123, %v1122
  %v1125 = vmul.f32 %v1124, %v1123
  %v1126 = vmul.f32 0.5, %v1125
  %v1127 = vsub.f32 1.5, %v1126
  %v1128 = vmul.f32 %v1123, %v1127
  %v1129 = vmul.f32 %v1122, %v1128
  %vm1130 = vcmp.eq.f32.partialorder %v1122, inf
  %v1131 = vsel %vm1130, %v1122, %v1129
  %vm1132 = vcmp.eq.f32.partialorder %v1122, 0.0
  %v1133 = vand.u32 %v1122, 2147483648
  %v1134 = vsel %vm1132, %v1133, %v1131
  %s1135 = vtos %v1134
  %s1136 = smul.f32 %s1135, 1.25
  %s1137 = sadd.f32 %s1095, %s1136
  %vm1138 = vcmp.eq.f32.partialorder %v1069, 0.0
  %vm1139 = vcmp.lt.f32.partialorder %v1064, 0.0
  %vm1140 = vmand %vm1138, %vm1139
  %v1141 = vstv %s1137
  %vm1142 = vcmp.le.f32.partialorder %v1072, %v1141
  %v1143 = vsel %vm219, 1, 0
  %1144 = vrot.lane.b32.xlu0 %v1143, 8
  %v1145 = vpop.permute.xlu0 %1144
  %vm1146 = vcmp.ne.s32.totalorder %v1145, 0
  %vm1147 = vmand %vm1142, %vm1146
  %vm1148 = vmxor %vm1140, 1
  %vm1149 = vmand %vm1147, %vm1148
  %v1150 = vsel %vm220, 1, 0
  %1151 = vrot.lane.b32.xlu0 %v1150, 8
  %v1152 = vpop.permute.xlu0 %1151
  %vm1153 = vcmp.ne.s32.totalorder %v1152, 0
  %vm1154 = vmor %vm1149, %vm1153
  %1156 = vrot.lane.b32.xlu0 %v1059, 8
  %v1157 = vpop.permute.xlu0 %1156
  %v1159 = vsel %vm1154, %v1157, -inf
  %vm1160 = vcmask 130112
  %v1161 = vsel %vm1160, %v1159, -inf
  %1162 = vmax.xlane.f32.xlu0 %v1161
  %v1163 = vpop.xlane.xlu0 %1162
  %v1164 = vsub.f32 %v1159, %v1163
  %v1165 = vmul.f32 %v1164, 1.442695
  %v1166 = vpow.pop %v1165
  %1168 = vrot.lane.b32.xlu0 %v1166, 120
  %v1169 = vpop.permute.xlu0 %1168
  %v1171 = vsel %vm663, %v1169, 0.0
  %1172 = vadd.xlane.f32.xlu0 %v1171
  %v1173 = vpop.xlane.xlu0 %1172
  %v1174 = vrcp.pop %v1173
  %v1175 = vmul.f32 %v1173, %v1174
  %v1176 = vsub.f32 1.0, %v1175
  %v1177 = vmul.f32 %v1174, %v1176
  %v1178 = vadd.f32 %v1174, %v1177
  %vm1179 = vweird.f32 %v1173
  %vm1180 = vweird.f32 %v1174
  %vm1181 = vmor %vm1179, %vm1180
  %v1182 = vsel %vm1181, %v1174, %v1178
  %v1183 = vand.u32 2147483647, %v1173
  %vm1184 = vcmp.eq.f32.partialorder %v1183, 8.507059e+37
  %v1185 = vand.u32 %v1173, 2147483648
  %v1186 = vor.u32 1.1754944e-38, %v1185
  %v1187 = vsel %vm1184, %v1186, %v1182
  %v1188 = vmul.f32 %v1166, %v1187
  %1190 = vrot.lane.b32.xlu0 %v1188, 120
  %v1191 = vpop.permute.xlu0 %1190
  %1192 = vrot.lane.b32.xlu0 %v453, 64
  %v1193 = vpop.permute.xlu0 %1192
  %v1195 = vsel %vm663, %v1191, 0
  %1197 = vmatpush.msra.mxu0 0.0
  %1198 = vmatpush.msra.mxu0 0.0
  %1199 = vmatpush.msra.mxu0 0.0
  %1200 = vmatpush.msra.mxu0 0.0
  %1201 = vmatpush.msra.mxu0 0.0
  %1202 = vmatpush.msra.mxu0 0.0
  %1203 = vmatpush.msra.mxu0 0.0
  %1204 = vmatpush.msra.mxu0 0.0
  %1205 = vmatpush.msra.mxu0 0.0
  %1206 = vmatpush.msra.mxu0 0.0
  %1207 = vmatpush.msra.mxu0 0.0
  %1208 = vmatpush.msra.mxu0 0.0
  %1209 = vmatpush.msra.mxu0 0.0
  %1210 = vmatpush.msra.mxu0 0.0
  %1211 = vmatpush.msra.mxu0 0.0
  %v1212 = vand.u32 %v1193, 4294901760
  %1213 = vmatpush.msra.mxu0 %v1212
  %v1214 = vand.u32 %v1195, 4294901760
  %v1215 = vsub.f32 %v1195, %v1214
  %v1216 = vand.u32 %v1215, 4294901760
  %v1217 = vsub.f32 %v1215, %v1216
  %v1218 = vand.u32 %v1217, 4294901760
  %1219 = vmatmul.f32.gmra.mxu0 %v1218
  %v1220 = vpop.f32.mrf.mxu0
  %v1221 = vadd.f32 0.0, %v1220
  %1222 = vdwg.mxu0
  %1223 = vmatpush.msra.mxu0 0.0
  %1224 = vmatpush.msra.mxu0 0.0
  %1225 = vmatpush.msra.mxu0 0.0
  %1226 = vmatpush.msra.mxu0 0.0
  %1227 = vmatpush.msra.mxu0 0.0
  %1228 = vmatpush.msra.mxu0 0.0
  %1229 = vmatpush.msra.mxu0 0.0
  %1230 = vmatpush.msra.mxu0 0.0
  %1231 = vmatpush.msra.mxu0 0.0
  %1232 = vmatpush.msra.mxu0 0.0
  %1233 = vmatpush.msra.mxu0 0.0
  %1234 = vmatpush.msra.mxu0 0.0
  %1235 = vmatpush.msra.mxu0 0.0
  %1236 = vmatpush.msra.mxu0 0.0
  %1237 = vmatpush.msra.mxu0 0.0
  %v1238 = vand.u32 %v1193, 4294901760
  %v1239 = vsub.f32 %v1193, %v1238
  %v1240 = vand.u32 %v1239, 4294901760
  %v1241 = vsub.f32 %v1239, %v1240
  %v1242 = vand.u32 %v1241, 4294901760
  %1243 = vmatpush.msra.mxu0 %v1242
  %v1244 = vand.u32 %v1195, 4294901760
  %1245 = vmatmul.f32.gmra.mxu0 %v1244
  %v1246 = vpop.f32.mrf.mxu0
  %v1247 = vadd.f32 %v1221, %v1246
  %1248 = vdwg.mxu0
  %1249 = vmatpush.msra.mxu0 0.0
  %1250 = vmatpush.msra.mxu0 0.0
  %1251 = vmatpush.msra.mxu0 0.0
  %1252 = vmatpush.msra.mxu0 0.0
  %1253 = vmatpush.msra.mxu0 0.0
  %1254 = vmatpush.msra.mxu0 0.0
  %1255 = vmatpush.msra.mxu0 0.0
  %1256 = vmatpush.msra.mxu0 0.0
  %1257 = vmatpush.msra.mxu0 0.0
  %1258 = vmatpush.msra.mxu0 0.0
  %1259 = vmatpush.msra.mxu0 0.0
  %1260 = vmatpush.msra.mxu0 0.0
  %1261 = vmatpush.msra.mxu0 0.0
  %1262 = vmatpush.msra.mxu0 0.0
  %1263 = vmatpush.msra.mxu0 0.0
  %v1264 = vand.u32 %v1193, 4294901760
  %v1265 = vsub.f32 %v1193, %v1264
  %1266 = vmatpush.msra.mxu0 %v1265
  %v1267 = vand.u32 %v1195, 4294901760
  %v1268 = vsub.f32 %v1195, %v1267
  %1269 = vmatmul.f32.gmra.mxu0 %v1268
  %v1270 = vpop.f32.mrf.mxu0
  %v1271 = vadd.f32 %v1247, %v1270
  %1272 = vdwg.mxu0
  %1273 = vmatpush.msra.mxu0 0.0
  %1274 = vmatpush.msra.mxu0 0.0
  %1275 = vmatpush.msra.mxu0 0.0
  %1276 = vmatpush.msra.mxu0 0.0
  %1277 = vmatpush.msra.mxu0 0.0
  %1278 = vmatpush.msra.mxu0 0.0
  %1279 = vmatpush.msra.mxu0 0.0
  %1280 = vmatpush.msra.mxu0 0.0
  %1281 = vmatpush.msra.mxu0 0.0
  %1282 = vmatpush.msra.mxu0 0.0
  %1283 = vmatpush.msra.mxu0 0.0
  %1284 = vmatpush.msra.mxu0 0.0
  %1285 = vmatpush.msra.mxu0 0.0
  %1286 = vmatpush.msra.mxu0 0.0
  %1287 = vmatpush.msra.mxu0 0.0
  %v1288 = vand.u32 %v1193, 4294901760
  %1289 = vmatpush.msra.mxu0 %v1288
  %v1290 = vand.u32 %v1195, 4294901760
  %v1291 = vsub.f32 %v1195, %v1290
  %v1292 = vand.u32 %v1291, 4294901760
  %1293 = vmatmul.f32.gmra.mxu0 %v1292
  %v1294 = vpop.f32.mrf.mxu0
  %v1295 = vadd.f32 %v1271, %v1294
  %1296 = vdwg.mxu0
  %1297 = vmatpush.msra.mxu0 0.0
  %1298 = vmatpush.msra.mxu0 0.0
  %1299 = vmatpush.msra.mxu0 0.0
  %1300 = vmatpush.msra.mxu0 0.0
  %1301 = vmatpush.msra.mxu0 0.0
  %1302 = vmatpush.msra.mxu0 0.0
  %1303 = vmatpush.msra.mxu0 0.0
  %1304 = vmatpush.msra.mxu0 0.0
  %1305 = vmatpush.msra.mxu0 0.0
  %1306 = vmatpush.msra.mxu0 0.0
  %1307 = vmatpush.msra.mxu0 0.0
  %1308 = vmatpush.msra.mxu0 0.0
  %1309 = vmatpush.msra.mxu0 0.0
  %1310 = vmatpush.msra.mxu0 0.0
  %1311 = vmatpush.msra.mxu0 0.0
  %v1312 = vand.u32 %v1193, 4294901760
  %v1313 = vsub.f32 %v1193, %v1312
  %v1314 = vand.u32 %v1313, 4294901760
  %1315 = vmatpush.msra.mxu0 %v1314
  %v1316 = vand.u32 %v1195, 4294901760
  %1317 = vmatmul.f32.gmra.mxu0 %v1316
  %v1318 = vpop.f32.mrf.mxu0
  %v1319 = vadd.f32 %v1295, %v1318
  %1320 = vdwg.mxu0
  %1321 = vmatpush.msra.mxu0 0.0
  %1322 = vmatpush.msra.mxu0 0.0
  %1323 = vmatpush.msra.mxu0 0.0
  %1324 = vmatpush.msra.mxu0 0.0
  %1325 = vmatpush.msra.mxu0 0.0
  %1326 = vmatpush.msra.mxu0 0.0
  %1327 = vmatpush.msra.mxu0 0.0
  %1328 = vmatpush.msra.mxu0 0.0
  %1329 = vmatpush.msra.mxu0 0.0
  %1330 = vmatpush.msra.mxu0 0.0
  %1331 = vmatpush.msra.mxu0 0.0
  %1332 = vmatpush.msra.mxu0 0.0
  %1333 = vmatpush.msra.mxu0 0.0
  %1334 = vmatpush.msra.mxu0 0.0
  %1335 = vmatpush.msra.mxu0 0.0
  %v1336 = vand.u32 %v1193, 4294901760
  %1337 = vmatpush.msra.mxu0 %v1336
  %v1338 = vand.u32 %v1195, 4294901760
  %1339 = vmatmul.f32.gmra.mxu0 %v1338
  %v1340 = vpop.f32.mrf.mxu0
  %v1341 = vadd.f32 %v1319, %v1340
  %1342 = vdwg.mxu0
  %v1343 = vperm.slane %v230, 1
  %v1345 = vsel %vm232, %v905, 0
  %v1348 = vsel %vm232, %v1341, 0
  %1350 = vmatpush.msra.mxu0 0.0
  %1351 = vmatpush.msra.mxu0 0.0
  %1352 = vmatpush.msra.mxu0 0.0
  %1353 = vmatpush.msra.mxu0 0.0
  %1354 = vmatpush.msra.mxu0 0.0
  %1355 = vmatpush.msra.mxu0 0.0
  %1356 = vmatpush.msra.mxu0 0.0
  %1357 = vmatpush.msra.mxu0 0.0
  %1358 = vmatpush.msra.mxu0 0.0
  %1359 = vmatpush.msra.mxu0 0.0
  %1360 = vmatpush.msra.mxu0 0.0
  %1361 = vmatpush.msra.mxu0 0.0
  %v1362 = vand.u32 %v228, 4294901760
  %1363 = vmatpush.msra.mxu0 %v1362
  %v1364 = vand.u32 %v227, 4294901760
  %1365 = vmatpush.msra.mxu0 %v1364
  %v1366 = vand.u32 %v226, 4294901760
  %1367 = vmatpush.msra.mxu0 %v1366
  %v1368 = vand.u32 %v225, 4294901760
  %1369 = vmatpush.msra.mxu0 %v1368
  %v1370 = vand.u32 %v1345, 4294901760
  %v1371 = vsub.f32 %v1345, %v1370
  %v1372 = vand.u32 %v1371, 4294901760
  %v1373 = vsub.f32 %v1371, %v1372
  %v1374 = vand.u32 %v1373, 4294901760
  %1375 = vmatmul.f32.gmra.mxu0 %v1374
  %v1376 = vpop.f32.mrf.mxu0
  %v1377 = vadd.f32 %v1343, %v1376
  %v1378 = vand.u32 %v1348, 4294901760
  %v1379 = vsub.f32 %v1348, %v1378
  %v1380 = vand.u32 %v1379, 4294901760
  %v1381 = vsub.f32 %v1379, %v1380
  %v1382 = vand.u32 %v1381, 4294901760
  %1383 = vmatmul.f32.gmra.mxu0 %v1382
  %v1384 = vpop.f32.mrf.mxu0
  %v1385 = vadd.f32 %v1343, %v1384
  %1386 = vdwg.mxu0
  %1387 = vmatpush.msra.mxu0 0.0
  %1388 = vmatpush.msra.mxu0 0.0
  %1389 = vmatpush.msra.mxu0 0.0
  %1390 = vmatpush.msra.mxu0 0.0
  %1391 = vmatpush.msra.mxu0 0.0
  %1392 = vmatpush.msra.mxu0 0.0
  %1393 = vmatpush.msra.mxu0 0.0
  %1394 = vmatpush.msra.mxu0 0.0
  %1395 = vmatpush.msra.mxu0 0.0
  %1396 = vmatpush.msra.mxu0 0.0
  %1397 = vmatpush.msra.mxu0 0.0
  %1398 = vmatpush.msra.mxu0 0.0
  %v1399 = vand.u32 %v228, 4294901760
  %v1400 = vsub.f32 %v228, %v1399
  %v1401 = vand.u32 %v1400, 4294901760
  %v1402 = vsub.f32 %v1400, %v1401
  %v1403 = vand.u32 %v1402, 4294901760
  %1404 = vmatpush.msra.mxu0 %v1403
  %v1405 = vand.u32 %v227, 4294901760
  %v1406 = vsub.f32 %v227, %v1405
  %v1407 = vand.u32 %v1406, 4294901760
  %v1408 = vsub.f32 %v1406, %v1407
  %v1409 = vand.u32 %v1408, 4294901760
  %1410 = vmatpush.msra.mxu0 %v1409
  %v1411 = vand.u32 %v226, 4294901760
  %v1412 = vsub.f32 %v226, %v1411
  %v1413 = vand.u32 %v1412, 4294901760
  %v1414 = vsub.f32 %v1412, %v1413
  %v1415 = vand.u32 %v1414, 4294901760
  %1416 = vmatpush.msra.mxu0 %v1415
  %v1417 = vand.u32 %v225, 4294901760
  %v1418 = vsub.f32 %v225, %v1417
  %v1419 = vand.u32 %v1418, 4294901760
  %v1420 = vsub.f32 %v1418, %v1419
  %v1421 = vand.u32 %v1420, 4294901760
  %1422 = vmatpush.msra.mxu0 %v1421
  %v1423 = vand.u32 %v1345, 4294901760
  %1424 = vmatmul.f32.gmra.mxu0 %v1423
  %v1425 = vpop.f32.mrf.mxu0
  %v1426 = vadd.f32 %v1377, %v1425
  %v1427 = vand.u32 %v1348, 4294901760
  %1428 = vmatmul.f32.gmra.mxu0 %v1427
  %v1429 = vpop.f32.mrf.mxu0
  %v1430 = vadd.f32 %v1385, %v1429
  %1431 = vdwg.mxu0
  %1432 = vmatpush.msra.mxu0 0.0
  %1433 = vmatpush.msra.mxu0 0.0
  %1434 = vmatpush.msra.mxu0 0.0
  %1435 = vmatpush.msra.mxu0 0.0
  %1436 = vmatpush.msra.mxu0 0.0
  %1437 = vmatpush.msra.mxu0 0.0
  %1438 = vmatpush.msra.mxu0 0.0
  %1439 = vmatpush.msra.mxu0 0.0
  %1440 = vmatpush.msra.mxu0 0.0
  %1441 = vmatpush.msra.mxu0 0.0
  %1442 = vmatpush.msra.mxu0 0.0
  %1443 = vmatpush.msra.mxu0 0.0
  %v1444 = vand.u32 %v228, 4294901760
  %v1445 = vsub.f32 %v228, %v1444
  %1446 = vmatpush.msra.mxu0 %v1445
  %v1447 = vand.u32 %v227, 4294901760
  %v1448 = vsub.f32 %v227, %v1447
  %1449 = vmatpush.msra.mxu0 %v1448
  %v1450 = vand.u32 %v226, 4294901760
  %v1451 = vsub.f32 %v226, %v1450
  %1452 = vmatpush.msra.mxu0 %v1451
  %v1453 = vand.u32 %v225, 4294901760
  %v1454 = vsub.f32 %v225, %v1453
  %1455 = vmatpush.msra.mxu0 %v1454
  %v1456 = vand.u32 %v1345, 4294901760
  %v1457 = vsub.f32 %v1345, %v1456
  %1458 = vmatmul.f32.gmra.mxu0 %v1457
  %v1459 = vpop.f32.mrf.mxu0
  %v1460 = vadd.f32 %v1426, %v1459
  %v1461 = vand.u32 %v1348, 4294901760
  %v1462 = vsub.f32 %v1348, %v1461
  %1463 = vmatmul.f32.gmra.mxu0 %v1462
  %v1464 = vpop.f32.mrf.mxu0
  %v1465 = vadd.f32 %v1430, %v1464
  %1466 = vdwg.mxu0
  %1467 = vmatpush.msra.mxu0 0.0
  %1468 = vmatpush.msra.mxu0 0.0
  %1469 = vmatpush.msra.mxu0 0.0
  %1470 = vmatpush.msra.mxu0 0.0
  %1471 = vmatpush.msra.mxu0 0.0
  %1472 = vmatpush.msra.mxu0 0.0
  %1473 = vmatpush.msra.mxu0 0.0
  %1474 = vmatpush.msra.mxu0 0.0
  %1475 = vmatpush.msra.mxu0 0.0
  %1476 = vmatpush.msra.mxu0 0.0
  %1477 = vmatpush.msra.mxu0 0.0
  %1478 = vmatpush.msra.mxu0 0.0
  %v1479 = vand.u32 %v228, 4294901760
  %1480 = vmatpush.msra.mxu0 %v1479
  %v1481 = vand.u32 %v227, 4294901760
  %1482 = vmatpush.msra.mxu0 %v1481
  %v1483 = vand.u32 %v226, 4294901760
  %1484 = vmatpush.msra.mxu0 %v1483
  %v1485 = vand.u32 %v225, 4294901760
  %1486 = vmatpush.msra.mxu0 %v1485
  %v1487 = vand.u32 %v1345, 4294901760
  %v1488 = vsub.f32 %v1345, %v1487
  %v1489 = vand.u32 %v1488, 4294901760
  %1490 = vmatmul.f32.gmra.mxu0 %v1489
  %v1491 = vpop.f32.mrf.mxu0
  %v1492 = vadd.f32 %v1460, %v1491
  %v1493 = vand.u32 %v1348, 4294901760
  %v1494 = vsub.f32 %v1348, %v1493
  %v1495 = vand.u32 %v1494, 4294901760
  %1496 = vmatmul.f32.gmra.mxu0 %v1495
  %v1497 = vpop.f32.mrf.mxu0
  %v1498 = vadd.f32 %v1465, %v1497
  %1499 = vdwg.mxu0
  %1500 = vmatpush.msra.mxu0 0.0
  %1501 = vmatpush.msra.mxu0 0.0
  %1502 = vmatpush.msra.mxu0 0.0
  %1503 = vmatpush.msra.mxu0 0.0
  %1504 = vmatpush.msra.mxu0 0.0
  %1505 = vmatpush.msra.mxu0 0.0
  %1506 = vmatpush.msra.mxu0 0.0
  %1507 = vmatpush.msra.mxu0 0.0
  %1508 = vmatpush.msra.mxu0 0.0
  %1509 = vmatpush.msra.mxu0 0.0
  %1510 = vmatpush.msra.mxu0 0.0
  %1511 = vmatpush.msra.mxu0 0.0
  %v1512 = vand.u32 %v228, 4294901760
  %v1513 = vsub.f32 %v228, %v1512
  %v1514 = vand.u32 %v1513, 4294901760
  %1515 = vmatpush.msra.mxu0 %v1514
  %v1516 = vand.u32 %v227, 4294901760
  %v1517 = vsub.f32 %v227, %v1516
  %v1518 = vand.u32 %v1517, 4294901760
  %1519 = vmatpush.msra.mxu0 %v1518
  %v1520 = vand.u32 %v226, 4294901760
  %v1521 = vsub.f32 %v226, %v1520
  %v1522 = vand.u32 %v1521, 4294901760
  %1523 = vmatpush.msra.mxu0 %v1522
  %v1524 = vand.u32 %v225, 4294901760
  %v1525 = vsub.f32 %v225, %v1524
  %v1526 = vand.u32 %v1525, 4294901760
  %1527 = vmatpush.msra.mxu0 %v1526
  %v1528 = vand.u32 %v1345, 4294901760
  %1529 = vmatmul.f32.gmra.mxu0 %v1528
  %v1530 = vpop.f32.mrf.mxu0
  %v1531 = vadd.f32 %v1492, %v1530
  %v1532 = vand.u32 %v1348, 4294901760
  %1533 = vmatmul.f32.gmra.mxu0 %v1532
  %v1534 = vpop.f32.mrf.mxu0
  %v1535 = vadd.f32 %v1498, %v1534
  %1536 = vdwg.mxu0
  %1537 = vmatpush.msra.mxu0 0.0
  %1538 = vmatpush.msra.mxu0 0.0
  %1539 = vmatpush.msra.mxu0 0.0
  %1540 = vmatpush.msra.mxu0 0.0
  %1541 = vmatpush.msra.mxu0 0.0
  %1542 = vmatpush.msra.mxu0 0.0
  %1543 = vmatpush.msra.mxu0 0.0
  %1544 = vmatpush.msra.mxu0 0.0
  %1545 = vmatpush.msra.mxu0 0.0
  %1546 = vmatpush.msra.mxu0 0.0
  %1547 = vmatpush.msra.mxu0 0.0
  %1548 = vmatpush.msra.mxu0 0.0
  %v1549 = vand.u32 %v228, 4294901760
  %1550 = vmatpush.msra.mxu0 %v1549
  %v1551 = vand.u32 %v227, 4294901760
  %1552 = vmatpush.msra.mxu0 %v1551
  %v1553 = vand.u32 %v226, 4294901760
  %1554 = vmatpush.msra.mxu0 %v1553
  %v1555 = vand.u32 %v225, 4294901760
  %1556 = vmatpush.msra.mxu0 %v1555
  %v1557 = vand.u32 %v1345, 4294901760
  %1558 = vmatmul.f32.gmra.mxu0 %v1557
  %v1559 = vpop.f32.mrf.mxu0
  %v1560 = vadd.f32 %v1531, %v1559
  %v1561 = vand.u32 %v1348, 4294901760
  %1562 = vmatmul.f32.gmra.mxu0 %v1561
  %v1563 = vpop.f32.mrf.mxu0
  %v1564 = vadd.f32 %v1535, %v1563
  %1565 = vdwg.mxu0
  %v1566 = vmul.f32 %v449, %v449
  %v1567 = vmul.f32 %v453, %v453
  %1570 = vrot.lane.b32.xlu0 %v1566, 32
  %v1571 = vpop.permute.xlu0 %1570
  %1572 = vrot.lane.b32.xlu0 %v1567, 32
  %v1573 = vpop.permute.xlu0 %1572
  %vm1576 = vcmask 15360
  %v1577 = vsel %vm1576, %v1571, 0.0
  %1578 = vadd.xlane.f32.xlu0 %v1577
  %v1579 = vpop.xlane.xlu0 %1578
  %v1580 = vsel %vm1576, %v1573, 0.0
  %1581 = vadd.xlane.f32.xlu0 %v1580
  %v1582 = vpop.xlane.xlu0 %1581
  %v1583 = vmax.f32 %v1579, 1e-24
  %v1584 = vmax.f32 %v1582, 1e-24
  %v1585 = vrsqrt.pop %v1583
  %v1586 = vmul.f32 %v1585, %v1583
  %v1587 = vmul.f32 %v1586, %v1585
  %v1588 = vmul.f32 0.5, %v1587
  %v1589 = vsub.f32 1.5, %v1588
  %v1590 = vmul.f32 %v1585, %v1589
  %vm1591 = vweird.f32 %v1583
  %vm1592 = vweird.f32 %v1585
  %vm1593 = vmor %vm1591, %vm1592
  %v1594 = vsel %vm1593, %v1585, %v1590
  %v1595 = vrsqrt.pop %v1584
  %v1596 = vmul.f32 %v1595, %v1584
  %v1597 = vmul.f32 %v1596, %v1595
  %v1598 = vmul.f32 0.5, %v1597
  %v1599 = vsub.f32 1.5, %v1598
  %v1600 = vmul.f32 %v1595, %v1599
  %vm1601 = vweird.f32 %v1584
  %vm1602 = vweird.f32 %v1595
  %vm1603 = vmor %vm1601, %vm1602
  %v1604 = vsel %vm1603, %v1595, %v1600
  %v1605 = vmul.f32 %v449, %v1594
  %v1606 = vmul.f32 %v453, %v1604
  %v1607 = vperm.slane %v230, 2
  %1610 = vrot.lane.b32.xlu0 %v1605, 32
  %v1611 = vpop.permute.xlu0 %1610
  %1612 = vrot.lane.b32.xlu0 %v1606, 32
  %v1613 = vpop.permute.xlu0 %1612
  %v1614 = vsel %vm1576, %v1611, 0
  %v1616 = vsel %vm1576, %v1613, 0
  %vm1618 = vcmask 1041408
  %v1620 = vsel %vm1618, %v229, 0
  %1622 = vmatpush.msra.mxu0 0.0
  %1623 = vmatpush.msra.mxu0 0.0
  %1624 = vmatpush.msra.mxu0 0.0
  %1625 = vmatpush.msra.mxu0 0.0
  %1626 = vmatpush.msra.mxu0 0.0
  %1627 = vmatpush.msra.mxu0 0.0
  %1628 = vmatpush.msra.mxu0 0.0
  %1629 = vmatpush.msra.mxu0 0.0
  %1630 = vmatpush.msra.mxu0 0.0
  %1631 = vmatpush.msra.mxu0 0.0
  %1632 = vmatpush.msra.mxu0 0.0
  %1633 = vmatpush.msra.mxu0 0.0
  %1634 = vmatpush.msra.mxu0 0.0
  %1635 = vmatpush.msra.mxu0 0.0
  %1636 = vmatpush.msra.mxu0 0.0
  %v1637 = vand.u32 %v1620, 4294901760
  %1638 = vmatpush.msra.mxu0 %v1637
  %v1639 = vand.u32 %v1614, 4294901760
  %v1640 = vsub.f32 %v1614, %v1639
  %v1641 = vand.u32 %v1640, 4294901760
  %v1642 = vsub.f32 %v1640, %v1641
  %v1643 = vand.u32 %v1642, 4294901760
  %1644 = vmatmul.f32.gmra.mxu0 %v1643
  %v1645 = vpop.f32.mrf.mxu0
  %v1646 = vadd.f32 %v1607, %v1645
  %v1647 = vand.u32 %v1616, 4294901760
  %v1648 = vsub.f32 %v1616, %v1647
  %v1649 = vand.u32 %v1648, 4294901760
  %v1650 = vsub.f32 %v1648, %v1649
  %v1651 = vand.u32 %v1650, 4294901760
  %1652 = vmatmul.f32.gmra.mxu0 %v1651
  %v1653 = vpop.f32.mrf.mxu0
  %v1654 = vadd.f32 %v1607, %v1653
  %1655 = vdwg.mxu0
  %1656 = vmatpush.msra.mxu0 0.0
  %1657 = vmatpush.msra.mxu0 0.0
  %1658 = vmatpush.msra.mxu0 0.0
  %1659 = vmatpush.msra.mxu0 0.0
  %1660 = vmatpush.msra.mxu0 0.0
  %1661 = vmatpush.msra.mxu0 0.0
  %1662 = vmatpush.msra.mxu0 0.0
  %1663 = vmatpush.msra.mxu0 0.0
  %1664 = vmatpush.msra.mxu0 0.0
  %1665 = vmatpush.msra.mxu0 0.0
  %1666 = vmatpush.msra.mxu0 0.0
  %1667 = vmatpush.msra.mxu0 0.0
  %1668 = vmatpush.msra.mxu0 0.0
  %1669 = vmatpush.msra.mxu0 0.0
  %1670 = vmatpush.msra.mxu0 0.0
  %v1671 = vand.u32 %v1620, 4294901760
  %v1672 = vsub.f32 %v1620, %v1671
  %v1673 = vand.u32 %v1672, 4294901760
  %v1674 = vsub.f32 %v1672, %v1673
  %v1675 = vand.u32 %v1674, 4294901760
  %1676 = vmatpush.msra.mxu0 %v1675
  %v1677 = vand.u32 %v1614, 4294901760
  %1678 = vmatmul.f32.gmra.mxu0 %v1677
  %v1679 = vpop.f32.mrf.mxu0
  %v1680 = vadd.f32 %v1646, %v1679
  %v1681 = vand.u32 %v1616, 4294901760
  %1682 = vmatmul.f32.gmra.mxu0 %v1681
  %v1683 = vpop.f32.mrf.mxu0
  %v1684 = vadd.f32 %v1654, %v1683
  %1685 = vdwg.mxu0
  %1686 = vmatpush.msra.mxu0 0.0
  %1687 = vmatpush.msra.mxu0 0.0
  %1688 = vmatpush.msra.mxu0 0.0
  %1689 = vmatpush.msra.mxu0 0.0
  %1690 = vmatpush.msra.mxu0 0.0
  %1691 = vmatpush.msra.mxu0 0.0
  %1692 = vmatpush.msra.mxu0 0.0
  %1693 = vmatpush.msra.mxu0 0.0
  %1694 = vmatpush.msra.mxu0 0.0
  %1695 = vmatpush.msra.mxu0 0.0
  %1696 = vmatpush.msra.mxu0 0.0
  %1697 = vmatpush.msra.mxu0 0.0
  %1698 = vmatpush.msra.mxu0 0.0
  %1699 = vmatpush.msra.mxu0 0.0
  %1700 = vmatpush.msra.mxu0 0.0
  %v1701 = vand.u32 %v1620, 4294901760
  %v1702 = vsub.f32 %v1620, %v1701
  %1703 = vmatpush.msra.mxu0 %v1702
  %v1704 = vand.u32 %v1614, 4294901760
  %v1705 = vsub.f32 %v1614, %v1704
  %1706 = vmatmul.f32.gmra.mxu0 %v1705
  %v1707 = vpop.f32.mrf.mxu0
  %v1708 = vadd.f32 %v1680, %v1707
  %v1709 = vand.u32 %v1616, 4294901760
  %v1710 = vsub.f32 %v1616, %v1709
  %1711 = vmatmul.f32.gmra.mxu0 %v1710
  %v1712 = vpop.f32.mrf.mxu0
  %v1713 = vadd.f32 %v1684, %v1712
  %1714 = vdwg.mxu0
  %1715 = vmatpush.msra.mxu0 0.0
  %1716 = vmatpush.msra.mxu0 0.0
  %1717 = vmatpush.msra.mxu0 0.0
  %1718 = vmatpush.msra.mxu0 0.0
  %1719 = vmatpush.msra.mxu0 0.0
  %1720 = vmatpush.msra.mxu0 0.0
  %1721 = vmatpush.msra.mxu0 0.0
  %1722 = vmatpush.msra.mxu0 0.0
  %1723 = vmatpush.msra.mxu0 0.0
  %1724 = vmatpush.msra.mxu0 0.0
  %1725 = vmatpush.msra.mxu0 0.0
  %1726 = vmatpush.msra.mxu0 0.0
  %1727 = vmatpush.msra.mxu0 0.0
  %1728 = vmatpush.msra.mxu0 0.0
  %1729 = vmatpush.msra.mxu0 0.0
  %v1730 = vand.u32 %v1620, 4294901760
  %1731 = vmatpush.msra.mxu0 %v1730
  %v1732 = vand.u32 %v1614, 4294901760
  %v1733 = vsub.f32 %v1614, %v1732
  %v1734 = vand.u32 %v1733, 4294901760
  %1735 = vmatmul.f32.gmra.mxu0 %v1734
  %v1736 = vpop.f32.mrf.mxu0
  %v1737 = vadd.f32 %v1708, %v1736
  %v1738 = vand.u32 %v1616, 4294901760
  %v1739 = vsub.f32 %v1616, %v1738
  %v1740 = vand.u32 %v1739, 4294901760
  %1741 = vmatmul.f32.gmra.mxu0 %v1740
  %v1742 = vpop.f32.mrf.mxu0
  %v1743 = vadd.f32 %v1713, %v1742
  %1744 = vdwg.mxu0
  %1745 = vmatpush.msra.mxu0 0.0
  %1746 = vmatpush.msra.mxu0 0.0
  %1747 = vmatpush.msra.mxu0 0.0
  %1748 = vmatpush.msra.mxu0 0.0
  %1749 = vmatpush.msra.mxu0 0.0
  %1750 = vmatpush.msra.mxu0 0.0
  %1751 = vmatpush.msra.mxu0 0.0
  %1752 = vmatpush.msra.mxu0 0.0
  %1753 = vmatpush.msra.mxu0 0.0
  %1754 = vmatpush.msra.mxu0 0.0
  %1755 = vmatpush.msra.mxu0 0.0
  %1756 = vmatpush.msra.mxu0 0.0
  %1757 = vmatpush.msra.mxu0 0.0
  %1758 = vmatpush.msra.mxu0 0.0
  %1759 = vmatpush.msra.mxu0 0.0
  %v1760 = vand.u32 %v1620, 4294901760
  %v1761 = vsub.f32 %v1620, %v1760
  %v1762 = vand.u32 %v1761, 4294901760
  %1763 = vmatpush.msra.mxu0 %v1762
  %v1764 = vand.u32 %v1614, 4294901760
  %1765 = vmatmul.f32.gmra.mxu0 %v1764
  %v1766 = vpop.f32.mrf.mxu0
  %v1767 = vadd.f32 %v1737, %v1766
  %v1768 = vand.u32 %v1616, 4294901760
  %1769 = vmatmul.f32.gmra.mxu0 %v1768
  %v1770 = vpop.f32.mrf.mxu0
  %v1771 = vadd.f32 %v1743, %v1770
  %1772 = vdwg.mxu0
  %1773 = vmatpush.msra.mxu0 0.0
  %1774 = vmatpush.msra.mxu0 0.0
  %1775 = vmatpush.msra.mxu0 0.0
  %1776 = vmatpush.msra.mxu0 0.0
  %1777 = vmatpush.msra.mxu0 0.0
  %1778 = vmatpush.msra.mxu0 0.0
  %1779 = vmatpush.msra.mxu0 0.0
  %1780 = vmatpush.msra.mxu0 0.0
  %1781 = vmatpush.msra.mxu0 0.0
  %1782 = vmatpush.msra.mxu0 0.0
  %1783 = vmatpush.msra.mxu0 0.0
  %1784 = vmatpush.msra.mxu0 0.0
  %1785 = vmatpush.msra.mxu0 0.0
  %1786 = vmatpush.msra.mxu0 0.0
  %1787 = vmatpush.msra.mxu0 0.0
  %v1788 = vand.u32 %v1620, 4294901760
  %1789 = vmatpush.msra.mxu0 %v1788
  %v1790 = vand.u32 %v1614, 4294901760
  %1791 = vmatmul.f32.gmra.mxu0 %v1790
  %v1792 = vpop.f32.mrf.mxu0
  %v1793 = vadd.f32 %v1767, %v1792
  %v1794 = vand.u32 %v1616, 4294901760
  %1795 = vmatmul.f32.gmra.mxu0 %v1794
  %v1796 = vpop.f32.mrf.mxu0
  %v1797 = vadd.f32 %v1771, %v1796
  %1798 = vdwg.mxu0
  %v1799 = vadd.f32 %v209, %v1560
  %v1800 = vadd.f32 %v213, %v1564
  %v1801 = vmul.f32 %v1793, 0.1
  %v1802 = vmul.f32 %v1797, 0.1
  %v1803 = vadd.f32 %v1799, %v1801
  %v1804 = vadd.f32 %v1800, %v1802
  %s1805 = scalar_lea.vmem %s2, 32
  %v1806 = vld [vmem:[%s1805] sm:$0xff]
  %v1807 = vld [vmem:[%s1805 + $0x8] sm:$0xff]
  %v1808 = vld [vmem:[%s1805 + $0x10] sm:$0xff]
  %v1809 = vld [vmem:[%s1805 + $0x18] sm:$0xff]
  %s1810 = scalar_lea.vmem %s3, 40
  %v1811 = vld [vmem:[%s1810] sm:$0xff]
  %v1812 = vld [vmem:[%s1810 + $0x8] sm:$0xff]
  %v1813 = vld [vmem:[%s1810 + $0x10] sm:$0xff]
  %v1814 = vld [vmem:[%s1810 + $0x18] sm:$0xff]
  %v1815 = vld [vmem:[%s1810 + $0x20] sm:$0x3]
  %s1816 = scalar_lea.vmem %s4, 4
  %v1817 = vld [vmem:[%s1816] sm:$0x7]
  %v1818 = vperm.slane %v1817, 0
  %v1820 = vsel %vm232, %v1803, 0
  %v1823 = vsel %vm232, %v1804, 0
  %1825 = vmatpush.msra.mxu0 0.0
  %1826 = vmatpush.msra.mxu0 0.0
  %1827 = vmatpush.msra.mxu0 0.0
  %1828 = vmatpush.msra.mxu0 0.0
  %1829 = vmatpush.msra.mxu0 0.0
  %1830 = vmatpush.msra.mxu0 0.0
  %1831 = vmatpush.msra.mxu0 0.0
  %1832 = vmatpush.msra.mxu0 0.0
  %1833 = vmatpush.msra.mxu0 0.0
  %1834 = vmatpush.msra.mxu0 0.0
  %1835 = vmatpush.msra.mxu0 0.0
  %1836 = vmatpush.msra.mxu0 0.0
  %v1837 = vand.u32 %v1809, 4294901760
  %1838 = vmatpush.msra.mxu0 %v1837
  %v1839 = vand.u32 %v1808, 4294901760
  %1840 = vmatpush.msra.mxu0 %v1839
  %v1841 = vand.u32 %v1807, 4294901760
  %1842 = vmatpush.msra.mxu0 %v1841
  %v1843 = vand.u32 %v1806, 4294901760
  %1844 = vmatpush.msra.mxu0 %v1843
  %v1845 = vand.u32 %v1820, 4294901760
  %v1846 = vsub.f32 %v1820, %v1845
  %v1847 = vand.u32 %v1846, 4294901760
  %v1848 = vsub.f32 %v1846, %v1847
  %v1849 = vand.u32 %v1848, 4294901760
  %1850 = vmatmul.f32.gmra.mxu0 %v1849
  %v1851 = vpop.f32.mrf.mxu0
  %v1852 = vadd.f32 %v1818, %v1851
  %v1853 = vand.u32 %v1823, 4294901760
  %v1854 = vsub.f32 %v1823, %v1853
  %v1855 = vand.u32 %v1854, 4294901760
  %v1856 = vsub.f32 %v1854, %v1855
  %v1857 = vand.u32 %v1856, 4294901760
  %1858 = vmatmul.f32.gmra.mxu0 %v1857
  %v1859 = vpop.f32.mrf.mxu0
  %v1860 = vadd.f32 %v1818, %v1859
  %1861 = vdwg.mxu0
  %1862 = vmatpush.msra.mxu0 0.0
  %1863 = vmatpush.msra.mxu0 0.0
  %1864 = vmatpush.msra.mxu0 0.0
  %1865 = vmatpush.msra.mxu0 0.0
  %1866 = vmatpush.msra.mxu0 0.0
  %1867 = vmatpush.msra.mxu0 0.0
  %1868 = vmatpush.msra.mxu0 0.0
  %1869 = vmatpush.msra.mxu0 0.0
  %1870 = vmatpush.msra.mxu0 0.0
  %1871 = vmatpush.msra.mxu0 0.0
  %1872 = vmatpush.msra.mxu0 0.0
  %1873 = vmatpush.msra.mxu0 0.0
  %v1874 = vand.u32 %v1809, 4294901760
  %v1875 = vsub.f32 %v1809, %v1874
  %v1876 = vand.u32 %v1875, 4294901760
  %v1877 = vsub.f32 %v1875, %v1876
  %v1878 = vand.u32 %v1877, 4294901760
  %1879 = vmatpush.msra.mxu0 %v1878
  %v1880 = vand.u32 %v1808, 4294901760
  %v1881 = vsub.f32 %v1808, %v1880
  %v1882 = vand.u32 %v1881, 4294901760
  %v1883 = vsub.f32 %v1881, %v1882
  %v1884 = vand.u32 %v1883, 4294901760
  %1885 = vmatpush.msra.mxu0 %v1884
  %v1886 = vand.u32 %v1807, 4294901760
  %v1887 = vsub.f32 %v1807, %v1886
  %v1888 = vand.u32 %v1887, 4294901760
  %v1889 = vsub.f32 %v1887, %v1888
  %v1890 = vand.u32 %v1889, 4294901760
  %1891 = vmatpush.msra.mxu0 %v1890
  %v1892 = vand.u32 %v1806, 4294901760
  %v1893 = vsub.f32 %v1806, %v1892
  %v1894 = vand.u32 %v1893, 4294901760
  %v1895 = vsub.f32 %v1893, %v1894
  %v1896 = vand.u32 %v1895, 4294901760
  %1897 = vmatpush.msra.mxu0 %v1896
  %v1898 = vand.u32 %v1820, 4294901760
  %1899 = vmatmul.f32.gmra.mxu0 %v1898
  %v1900 = vpop.f32.mrf.mxu0
  %v1901 = vadd.f32 %v1852, %v1900
  %v1902 = vand.u32 %v1823, 4294901760
  %1903 = vmatmul.f32.gmra.mxu0 %v1902
  %v1904 = vpop.f32.mrf.mxu0
  %v1905 = vadd.f32 %v1860, %v1904
  %1906 = vdwg.mxu0
  %1907 = vmatpush.msra.mxu0 0.0
  %1908 = vmatpush.msra.mxu0 0.0
  %1909 = vmatpush.msra.mxu0 0.0
  %1910 = vmatpush.msra.mxu0 0.0
  %1911 = vmatpush.msra.mxu0 0.0
  %1912 = vmatpush.msra.mxu0 0.0
  %1913 = vmatpush.msra.mxu0 0.0
  %1914 = vmatpush.msra.mxu0 0.0
  %1915 = vmatpush.msra.mxu0 0.0
  %1916 = vmatpush.msra.mxu0 0.0
  %1917 = vmatpush.msra.mxu0 0.0
  %1918 = vmatpush.msra.mxu0 0.0
  %v1919 = vand.u32 %v1809, 4294901760
  %v1920 = vsub.f32 %v1809, %v1919
  %1921 = vmatpush.msra.mxu0 %v1920
  %v1922 = vand.u32 %v1808, 4294901760
  %v1923 = vsub.f32 %v1808, %v1922
  %1924 = vmatpush.msra.mxu0 %v1923
  %v1925 = vand.u32 %v1807, 4294901760
  %v1926 = vsub.f32 %v1807, %v1925
  %1927 = vmatpush.msra.mxu0 %v1926
  %v1928 = vand.u32 %v1806, 4294901760
  %v1929 = vsub.f32 %v1806, %v1928
  %1930 = vmatpush.msra.mxu0 %v1929
  %v1931 = vand.u32 %v1820, 4294901760
  %v1932 = vsub.f32 %v1820, %v1931
  %1933 = vmatmul.f32.gmra.mxu0 %v1932
  %v1934 = vpop.f32.mrf.mxu0
  %v1935 = vadd.f32 %v1901, %v1934
  %v1936 = vand.u32 %v1823, 4294901760
  %v1937 = vsub.f32 %v1823, %v1936
  %1938 = vmatmul.f32.gmra.mxu0 %v1937
  %v1939 = vpop.f32.mrf.mxu0
  %v1940 = vadd.f32 %v1905, %v1939
  %1941 = vdwg.mxu0
  %1942 = vmatpush.msra.mxu0 0.0
  %1943 = vmatpush.msra.mxu0 0.0
  %1944 = vmatpush.msra.mxu0 0.0
  %1945 = vmatpush.msra.mxu0 0.0
  %1946 = vmatpush.msra.mxu0 0.0
  %1947 = vmatpush.msra.mxu0 0.0
  %1948 = vmatpush.msra.mxu0 0.0
  %1949 = vmatpush.msra.mxu0 0.0
  %1950 = vmatpush.msra.mxu0 0.0
  %1951 = vmatpush.msra.mxu0 0.0
  %1952 = vmatpush.msra.mxu0 0.0
  %1953 = vmatpush.msra.mxu0 0.0
  %v1954 = vand.u32 %v1809, 4294901760
  %1955 = vmatpush.msra.mxu0 %v1954
  %v1956 = vand.u32 %v1808, 4294901760
  %1957 = vmatpush.msra.mxu0 %v1956
  %v1958 = vand.u32 %v1807, 4294901760
  %1959 = vmatpush.msra.mxu0 %v1958
  %v1960 = vand.u32 %v1806, 4294901760
  %1961 = vmatpush.msra.mxu0 %v1960
  %v1962 = vand.u32 %v1820, 4294901760
  %v1963 = vsub.f32 %v1820, %v1962
  %v1964 = vand.u32 %v1963, 4294901760
  %1965 = vmatmul.f32.gmra.mxu0 %v1964
  %v1966 = vpop.f32.mrf.mxu0
  %v1967 = vadd.f32 %v1935, %v1966
  %v1968 = vand.u32 %v1823, 4294901760
  %v1969 = vsub.f32 %v1823, %v1968
  %v1970 = vand.u32 %v1969, 4294901760
  %1971 = vmatmul.f32.gmra.mxu0 %v1970
  %v1972 = vpop.f32.mrf.mxu0
  %v1973 = vadd.f32 %v1940, %v1972
  %1974 = vdwg.mxu0
  %1975 = vmatpush.msra.mxu0 0.0
  %1976 = vmatpush.msra.mxu0 0.0
  %1977 = vmatpush.msra.mxu0 0.0
  %1978 = vmatpush.msra.mxu0 0.0
  %1979 = vmatpush.msra.mxu0 0.0
  %1980 = vmatpush.msra.mxu0 0.0
  %1981 = vmatpush.msra.mxu0 0.0
  %1982 = vmatpush.msra.mxu0 0.0
  %1983 = vmatpush.msra.mxu0 0.0
  %1984 = vmatpush.msra.mxu0 0.0
  %1985 = vmatpush.msra.mxu0 0.0
  %1986 = vmatpush.msra.mxu0 0.0
  %v1987 = vand.u32 %v1809, 4294901760
  %v1988 = vsub.f32 %v1809, %v1987
  %v1989 = vand.u32 %v1988, 4294901760
  %1990 = vmatpush.msra.mxu0 %v1989
  %v1991 = vand.u32 %v1808, 4294901760
  %v1992 = vsub.f32 %v1808, %v1991
  %v1993 = vand.u32 %v1992, 4294901760
  %1994 = vmatpush.msra.mxu0 %v1993
  %v1995 = vand.u32 %v1807, 4294901760
  %v1996 = vsub.f32 %v1807, %v1995
  %v1997 = vand.u32 %v1996, 4294901760
  %1998 = vmatpush.msra.mxu0 %v1997
  %v1999 = vand.u32 %v1806, 4294901760
  %v2000 = vsub.f32 %v1806, %v1999
  %v2001 = vand.u32 %v2000, 4294901760
  %2002 = vmatpush.msra.mxu0 %v2001
  %v2003 = vand.u32 %v1820, 4294901760
  %2004 = vmatmul.f32.gmra.mxu0 %v2003
  %v2005 = vpop.f32.mrf.mxu0
  %v2006 = vadd.f32 %v1967, %v2005
  %v2007 = vand.u32 %v1823, 4294901760
  %2008 = vmatmul.f32.gmra.mxu0 %v2007
  %v2009 = vpop.f32.mrf.mxu0
  %v2010 = vadd.f32 %v1973, %v2009
  %2011 = vdwg.mxu0
  %2012 = vmatpush.msra.mxu0 0.0
  %2013 = vmatpush.msra.mxu0 0.0
  %2014 = vmatpush.msra.mxu0 0.0
  %2015 = vmatpush.msra.mxu0 0.0
  %2016 = vmatpush.msra.mxu0 0.0
  %2017 = vmatpush.msra.mxu0 0.0
  %2018 = vmatpush.msra.mxu0 0.0
  %2019 = vmatpush.msra.mxu0 0.0
  %2020 = vmatpush.msra.mxu0 0.0
  %2021 = vmatpush.msra.mxu0 0.0
  %2022 = vmatpush.msra.mxu0 0.0
  %2023 = vmatpush.msra.mxu0 0.0
  %v2024 = vand.u32 %v1809, 4294901760
  %2025 = vmatpush.msra.mxu0 %v2024
  %v2026 = vand.u32 %v1808, 4294901760
  %2027 = vmatpush.msra.mxu0 %v2026
  %v2028 = vand.u32 %v1807, 4294901760
  %2029 = vmatpush.msra.mxu0 %v2028
  %v2030 = vand.u32 %v1806, 4294901760
  %2031 = vmatpush.msra.mxu0 %v2030
  %v2032 = vand.u32 %v1820, 4294901760
  %2033 = vmatmul.f32.gmra.mxu0 %v2032
  %v2034 = vpop.f32.mrf.mxu0
  %v2035 = vadd.f32 %v2006, %v2034
  %v2036 = vand.u32 %v1823, 4294901760
  %2037 = vmatmul.f32.gmra.mxu0 %v2036
  %v2038 = vpop.f32.mrf.mxu0
  %v2039 = vadd.f32 %v2010, %v2038
  %2040 = vdwg.mxu0
  %2043 = vrot.lane.b32.xlu0 %v2035, 32
  %v2044 = vpop.permute.xlu0 %2043
  %2045 = vrot.lane.b32.xlu0 %v2039, 32
  %v2046 = vpop.permute.xlu0 %2045
  %2049 = vxpose.xlu0.b32.start [1/16] %v2044, 128
  %2050 = vxpose.xlu0.b32.cont [2/16] %v2046, 128
  %2051 = vxpose.xlu0.b32.cont [3/16] 0.0, 128
  %2052 = vxpose.xlu0.b32.cont [4/16] 0.0, 128
  %2053 = vxpose.xlu0.b32.cont [5/16] 0.0, 128
  %2054 = vxpose.xlu0.b32.cont [6/16] 0.0, 128
  %2055 = vxpose.xlu0.b32.cont [7/16] 0.0, 128
  %2056 = vxpose.xlu0.b32.cont [8/16] 0.0, 128
  %2057 = vxpose.xlu0.b32.cont [9/16] 0.0, 128
  %2058 = vxpose.xlu0.b32.cont [10/16] 0.0, 128
  %2059 = vxpose.xlu0.b32.cont [11/16] 0.0, 128
  %2060 = vxpose.xlu0.b32.cont [12/16] 0.0, 128
  %2061 = vxpose.xlu0.b32.cont [13/16] 0.0, 128
  %2062 = vxpose.xlu0.b32.cont [14/16] 0.0, 128
  %2063 = vxpose.xlu0.b32.cont [15/16] 0.0, 128
  %2064 = vxpose.xlu0.b32.end [16/16] 0.0, 128
  %v2065 = vpop.trf.xlu0
  %v2066 = vpop.trf.xlu0
  %v2067 = vpop.trf.xlu0
  %v2068 = vpop.trf.xlu0
  %v2069 = vpop.trf.xlu0
  %v2070 = vpop.trf.xlu0
  %v2071 = vpop.trf.xlu0
  %v2072 = vpop.trf.xlu0
  %v2073 = vpop.trf.xlu0
  %v2074 = vpop.trf.xlu0
  %v2075 = vpop.trf.xlu0
  %v2076 = vpop.trf.xlu0
  %v2077 = vpop.trf.xlu0
  %v2078 = vpop.trf.xlu0
  %v2079 = vpop.trf.xlu0
  %v2080 = vpop.trf.xlu0
  %2081 = vrot.lane.b32.xlu0 %v2035, 96
  %v2082 = vpop.permute.xlu0 %2081
  %v2083 = vsel %vm232, %v2035, 0
  %v2085 = vsel %vm232, %v2082, 0
  %2087 = vmatpush.xpose.msra.mxu0 0.0
  %2088 = vmatpush.xpose.msra.mxu0 0.0
  %2089 = vmatpush.xpose.msra.mxu0 0.0
  %2090 = vmatpush.xpose.msra.mxu0 0.0
  %2091 = vmatpush.xpose.msra.mxu0 0.0
  %2092 = vmatpush.xpose.msra.mxu0 0.0
  %2093 = vmatpush.xpose.msra.mxu0 0.0
  %2094 = vmatpush.xpose.msra.mxu0 0.0
  %2095 = vmatpush.xpose.msra.mxu0 0.0
  %2096 = vmatpush.xpose.msra.mxu0 0.0
  %2097 = vmatpush.xpose.msra.mxu0 0.0
  %2098 = vmatpush.xpose.msra.mxu0 0.0
  %2099 = vmatpush.xpose.msra.mxu0 0.0
  %2100 = vmatpush.xpose.msra.mxu0 0.0
  %2101 = vmatpush.xpose.msra.mxu0 0.0
  %v2102 = vand.u32 %v2085, 4294901760
  %2103 = vmatpush.xpose.msra.mxu0 %v2102
  %v2104 = vand.u32 %v2083, 4294901760
  %v2105 = vsub.f32 %v2083, %v2104
  %v2106 = vand.u32 %v2105, 4294901760
  %v2107 = vsub.f32 %v2105, %v2106
  %v2108 = vand.u32 %v2107, 4294901760
  %2109 = vmatmul.f32.gmra.mxu0 %v2108
  %v2110 = vpop.f32.mrf.mxu0
  %v2111 = vadd.f32 0.0, %v2110
  %2112 = vdwg.mxu0
  %2113 = vmatpush.xpose.msra.mxu0 0.0
  %2114 = vmatpush.xpose.msra.mxu0 0.0
  %2115 = vmatpush.xpose.msra.mxu0 0.0
  %2116 = vmatpush.xpose.msra.mxu0 0.0
  %2117 = vmatpush.xpose.msra.mxu0 0.0
  %2118 = vmatpush.xpose.msra.mxu0 0.0
  %2119 = vmatpush.xpose.msra.mxu0 0.0
  %2120 = vmatpush.xpose.msra.mxu0 0.0
  %2121 = vmatpush.xpose.msra.mxu0 0.0
  %2122 = vmatpush.xpose.msra.mxu0 0.0
  %2123 = vmatpush.xpose.msra.mxu0 0.0
  %2124 = vmatpush.xpose.msra.mxu0 0.0
  %2125 = vmatpush.xpose.msra.mxu0 0.0
  %2126 = vmatpush.xpose.msra.mxu0 0.0
  %2127 = vmatpush.xpose.msra.mxu0 0.0
  %v2128 = vand.u32 %v2085, 4294901760
  %v2129 = vsub.f32 %v2085, %v2128
  %v2130 = vand.u32 %v2129, 4294901760
  %v2131 = vsub.f32 %v2129, %v2130
  %v2132 = vand.u32 %v2131, 4294901760
  %2133 = vmatpush.xpose.msra.mxu0 %v2132
  %v2134 = vand.u32 %v2083, 4294901760
  %2135 = vmatmul.f32.gmra.mxu0 %v2134
  %v2136 = vpop.f32.mrf.mxu0
  %v2137 = vadd.f32 %v2111, %v2136
  %2138 = vdwg.mxu0
  %2139 = vmatpush.xpose.msra.mxu0 0.0
  %2140 = vmatpush.xpose.msra.mxu0 0.0
  %2141 = vmatpush.xpose.msra.mxu0 0.0
  %2142 = vmatpush.xpose.msra.mxu0 0.0
  %2143 = vmatpush.xpose.msra.mxu0 0.0
  %2144 = vmatpush.xpose.msra.mxu0 0.0
  %2145 = vmatpush.xpose.msra.mxu0 0.0
  %2146 = vmatpush.xpose.msra.mxu0 0.0
  %2147 = vmatpush.xpose.msra.mxu0 0.0
  %2148 = vmatpush.xpose.msra.mxu0 0.0
  %2149 = vmatpush.xpose.msra.mxu0 0.0
  %2150 = vmatpush.xpose.msra.mxu0 0.0
  %2151 = vmatpush.xpose.msra.mxu0 0.0
  %2152 = vmatpush.xpose.msra.mxu0 0.0
  %2153 = vmatpush.xpose.msra.mxu0 0.0
  %v2154 = vand.u32 %v2085, 4294901760
  %v2155 = vsub.f32 %v2085, %v2154
  %2156 = vmatpush.xpose.msra.mxu0 %v2155
  %v2157 = vand.u32 %v2083, 4294901760
  %v2158 = vsub.f32 %v2083, %v2157
  %2159 = vmatmul.f32.gmra.mxu0 %v2158
  %v2160 = vpop.f32.mrf.mxu0
  %v2161 = vadd.f32 %v2137, %v2160
  %2162 = vdwg.mxu0
  %2163 = vmatpush.xpose.msra.mxu0 0.0
  %2164 = vmatpush.xpose.msra.mxu0 0.0
  %2165 = vmatpush.xpose.msra.mxu0 0.0
  %2166 = vmatpush.xpose.msra.mxu0 0.0
  %2167 = vmatpush.xpose.msra.mxu0 0.0
  %2168 = vmatpush.xpose.msra.mxu0 0.0
  %2169 = vmatpush.xpose.msra.mxu0 0.0
  %2170 = vmatpush.xpose.msra.mxu0 0.0
  %2171 = vmatpush.xpose.msra.mxu0 0.0
  %2172 = vmatpush.xpose.msra.mxu0 0.0
  %2173 = vmatpush.xpose.msra.mxu0 0.0
  %2174 = vmatpush.xpose.msra.mxu0 0.0
  %2175 = vmatpush.xpose.msra.mxu0 0.0
  %2176 = vmatpush.xpose.msra.mxu0 0.0
  %2177 = vmatpush.xpose.msra.mxu0 0.0
  %v2178 = vand.u32 %v2085, 4294901760
  %2179 = vmatpush.xpose.msra.mxu0 %v2178
  %v2180 = vand.u32 %v2083, 4294901760
  %v2181 = vsub.f32 %v2083, %v2180
  %v2182 = vand.u32 %v2181, 4294901760
  %2183 = vmatmul.f32.gmra.mxu0 %v2182
  %v2184 = vpop.f32.mrf.mxu0
  %v2185 = vadd.f32 %v2161, %v2184
  %2186 = vdwg.mxu0
  %2187 = vmatpush.xpose.msra.mxu0 0.0
  %2188 = vmatpush.xpose.msra.mxu0 0.0
  %2189 = vmatpush.xpose.msra.mxu0 0.0
  %2190 = vmatpush.xpose.msra.mxu0 0.0
  %2191 = vmatpush.xpose.msra.mxu0 0.0
  %2192 = vmatpush.xpose.msra.mxu0 0.0
  %2193 = vmatpush.xpose.msra.mxu0 0.0
  %2194 = vmatpush.xpose.msra.mxu0 0.0
  %2195 = vmatpush.xpose.msra.mxu0 0.0
  %2196 = vmatpush.xpose.msra.mxu0 0.0
  %2197 = vmatpush.xpose.msra.mxu0 0.0
  %2198 = vmatpush.xpose.msra.mxu0 0.0
  %2199 = vmatpush.xpose.msra.mxu0 0.0
  %2200 = vmatpush.xpose.msra.mxu0 0.0
  %2201 = vmatpush.xpose.msra.mxu0 0.0
  %v2202 = vand.u32 %v2085, 4294901760
  %v2203 = vsub.f32 %v2085, %v2202
  %v2204 = vand.u32 %v2203, 4294901760
  %2205 = vmatpush.xpose.msra.mxu0 %v2204
  %v2206 = vand.u32 %v2083, 4294901760
  %2207 = vmatmul.f32.gmra.mxu0 %v2206
  %v2208 = vpop.f32.mrf.mxu0
  %v2209 = vadd.f32 %v2185, %v2208
  %2210 = vdwg.mxu0
  %2211 = vmatpush.xpose.msra.mxu0 0.0
  %2212 = vmatpush.xpose.msra.mxu0 0.0
  %2213 = vmatpush.xpose.msra.mxu0 0.0
  %2214 = vmatpush.xpose.msra.mxu0 0.0
  %2215 = vmatpush.xpose.msra.mxu0 0.0
  %2216 = vmatpush.xpose.msra.mxu0 0.0
  %2217 = vmatpush.xpose.msra.mxu0 0.0
  %2218 = vmatpush.xpose.msra.mxu0 0.0
  %2219 = vmatpush.xpose.msra.mxu0 0.0
  %2220 = vmatpush.xpose.msra.mxu0 0.0
  %2221 = vmatpush.xpose.msra.mxu0 0.0
  %2222 = vmatpush.xpose.msra.mxu0 0.0
  %2223 = vmatpush.xpose.msra.mxu0 0.0
  %2224 = vmatpush.xpose.msra.mxu0 0.0
  %2225 = vmatpush.xpose.msra.mxu0 0.0
  %v2226 = vand.u32 %v2085, 4294901760
  %2227 = vmatpush.xpose.msra.mxu0 %v2226
  %v2228 = vand.u32 %v2083, 4294901760
  %2229 = vmatmul.f32.gmra.mxu0 %v2228
  %v2230 = vpop.f32.mrf.mxu0
  %v2231 = vadd.f32 %v2209, %v2230
  %2232 = vdwg.mxu0
  %v2233 = vmul.f32 %v2231, 0.17677669
  %2234 = vset.pattern.permute.xlu0 96
  %2235 = vperm.xlu0 %2234, %v2035
  %v2236 = vpop.permute.xlu0 %2235
  %v2238 = vperm.slane %v2065, 0
  %v2239 = vsub.f32 %v2236, %v2238
  %2240 = vset.pattern.permute.xlu0 97
  %2241 = vperm.xlu0 %2240, %v2035
  %v2242 = vpop.permute.xlu0 %2241
  %v2244 = vperm.slane %v2065, 1
  %v2245 = vsub.f32 %v2242, %v2244
  %v2246 = vmul.f32 %v2239, %v2239
  %v2247 = vmul.f32 %v2245, %v2245
  %v2248 = vadd.f32 %v2246, %v2247
  %v2249 = vsel %vm663, %v2248, 0.0
  %2250 = vadd.xlane.f32.xlu0 %v2249
  %v2251 = vpop.xlane.xlu0 %2250
  %v2252 = vrot.slane %v2251, 4
  %v2253 = vadd.f32 %v2251, %v2252
  %v2254 = vrot.slane %v2253, 2
  %v2255 = vadd.f32 %v2253, %v2254
  %v2256 = vrot.slane %v2255, 1
  %v2257 = vadd.f32 %v2255, %v2256
  %s2258 = vtos %v2257
  %v2259 = vrcp.pop 64.0
  %v2260 = vmul.f32 64.0, %v2259
  %v2261 = vsub.f32 1.0, %v2260
  %v2262 = vmul.f32 %v2259, %v2261
  %v2263 = vadd.f32 %v2259, %v2262
  %vm2264 = vweird.f32 %v2259
  %v2265 = vsel %vm2264, %v2259, %v2263
  %s2266 = vtos %v2265
  %s2267 = smul.f32 %s2258, %s2266
  %v2268 = vstv %s2267
  %v2269 = vsub.f32 %v2248, %v2268
  %v2270 = vmul.f32 %v2269, %v2269
  %v2271 = vsel %vm663, %v2270, 0.0
  %2272 = vadd.xlane.f32.xlu0 %v2271
  %v2273 = vpop.xlane.xlu0 %2272
  %v2274 = vrot.slane %v2273, 4
  %v2275 = vadd.f32 %v2273, %v2274
  %v2276 = vrot.slane %v2275, 2
  %v2277 = vadd.f32 %v2275, %v2276
  %v2278 = vrot.slane %v2277, 1
  %v2279 = vadd.f32 %v2277, %v2278
  %s2280 = vtos %v2279
  %v2281 = vrcp.pop 63.0
  %v2282 = vmul.f32 63.0, %v2281
  %v2283 = vsub.f32 1.0, %v2282
  %v2284 = vmul.f32 %v2281, %v2283
  %v2285 = vadd.f32 %v2281, %v2284
  %vm2286 = vweird.f32 %v2281
  %v2287 = vsel %vm2286, %v2281, %v2285
  %s2288 = vtos %v2287
  %s2289 = smul.f32 %s2280, %s2288
  %v2290 = vstv %s2289
  %v2291 = vrsqrt.pop %v2290
  %v2292 = vmul.f32 %v2291, %v2290
  %v2293 = vmul.f32 %v2292, %v2291
  %v2294 = vmul.f32 0.5, %v2293
  %v2295 = vsub.f32 1.5, %v2294
  %v2296 = vmul.f32 %v2291, %v2295
  %v2297 = vmul.f32 %v2290, %v2296
  %vm2298 = vcmp.eq.f32.partialorder %v2290, inf
  %v2299 = vsel %vm2298, %v2290, %v2297
  %vm2300 = vcmp.eq.f32.partialorder %v2290, 0.0
  %v2301 = vand.u32 %v2290, 2147483648
  %v2302 = vsel %vm2300, %v2301, %v2299
  %s2303 = vtos %v2302
  %s2304 = smul.f32 %s2303, 1.25
  %s2305 = sadd.f32 %s2267, %s2304
  %vm2306 = vcmp.eq.f32.partialorder %v2245, 0.0
  %vm2307 = vcmp.lt.f32.partialorder %v2239, 0.0
  %vm2308 = vmand %vm2306, %vm2307
  %v2309 = vstv %s2305
  %vm2310 = vcmp.le.f32.partialorder %v2248, %v2309
  %vm2311 = vmand %vm2310, %vm219
  %vm2312 = vmxor %vm2308, 1
  %vm2313 = vmand %vm2311, %vm2312
  %vm2314 = vmor %vm2313, %vm220
  %v2315 = vsel %vm2314, %v2233, -inf
  %v2316 = vsel %vm663, %v2315, -inf
  %2317 = vmax.xlane.f32.xlu0 %v2316
  %v2318 = vpop.xlane.xlu0 %2317
  %v2319 = vsub.f32 %v2315, %v2318
  %v2320 = vmul.f32 %v2319, 1.442695
  %v2321 = vpow.pop %v2320
  %v2322 = vsel %vm663, %v2321, 0.0
  %2323 = vadd.xlane.f32.xlu0 %v2322
  %v2324 = vpop.xlane.xlu0 %2323
  %v2325 = vrcp.pop %v2324
  %v2326 = vmul.f32 %v2324, %v2325
  %v2327 = vsub.f32 1.0, %v2326
  %v2328 = vmul.f32 %v2325, %v2327
  %v2329 = vadd.f32 %v2325, %v2328
  %vm2330 = vweird.f32 %v2324
  %vm2331 = vweird.f32 %v2325
  %vm2332 = vmor %vm2330, %vm2331
  %v2333 = vsel %vm2332, %v2325, %v2329
  %v2334 = vand.u32 2147483647, %v2324
  %vm2335 = vcmp.eq.f32.partialorder %v2334, 8.507059e+37
  %v2336 = vand.u32 %v2324, 2147483648
  %v2337 = vor.u32 1.1754944e-38, %v2336
  %v2338 = vsel %vm2335, %v2337, %v2333
  %v2339 = vmul.f32 %v2321, %v2338
  %2340 = vrot.lane.b32.xlu0 %v2035, 64
  %v2341 = vpop.permute.xlu0 %2340
  %v2344 = vsel %vm663, %v2339, 0
  %2346 = vmatpush.msra.mxu0 0.0
  %2347 = vmatpush.msra.mxu0 0.0
  %2348 = vmatpush.msra.mxu0 0.0
  %2349 = vmatpush.msra.mxu0 0.0
  %2350 = vmatpush.msra.mxu0 0.0
  %2351 = vmatpush.msra.mxu0 0.0
  %2352 = vmatpush.msra.mxu0 0.0
  %2353 = vmatpush.msra.mxu0 0.0
  %2354 = vmatpush.msra.mxu0 0.0
  %2355 = vmatpush.msra.mxu0 0.0
  %2356 = vmatpush.msra.mxu0 0.0
  %2357 = vmatpush.msra.mxu0 0.0
  %2358 = vmatpush.msra.mxu0 0.0
  %2359 = vmatpush.msra.mxu0 0.0
  %2360 = vmatpush.msra.mxu0 0.0
  %v2361 = vand.u32 %v2341, 4294901760
  %2362 = vmatpush.msra.mxu0 %v2361
  %v2363 = vand.u32 %v2344, 4294901760
  %v2364 = vsub.f32 %v2344, %v2363
  %v2365 = vand.u32 %v2364, 4294901760
  %v2366 = vsub.f32 %v2364, %v2365
  %v2367 = vand.u32 %v2366, 4294901760
  %2368 = vmatmul.f32.gmra.mxu0 %v2367
  %v2369 = vpop.f32.mrf.mxu0
  %v2370 = vadd.f32 0.0, %v2369
  %2371 = vdwg.mxu0
  %2372 = vmatpush.msra.mxu0 0.0
  %2373 = vmatpush.msra.mxu0 0.0
  %2374 = vmatpush.msra.mxu0 0.0
  %2375 = vmatpush.msra.mxu0 0.0
  %2376 = vmatpush.msra.mxu0 0.0
  %2377 = vmatpush.msra.mxu0 0.0
  %2378 = vmatpush.msra.mxu0 0.0
  %2379 = vmatpush.msra.mxu0 0.0
  %2380 = vmatpush.msra.mxu0 0.0
  %2381 = vmatpush.msra.mxu0 0.0
  %2382 = vmatpush.msra.mxu0 0.0
  %2383 = vmatpush.msra.mxu0 0.0
  %2384 = vmatpush.msra.mxu0 0.0
  %2385 = vmatpush.msra.mxu0 0.0
  %2386 = vmatpush.msra.mxu0 0.0
  %v2387 = vand.u32 %v2341, 4294901760
  %v2388 = vsub.f32 %v2341, %v2387
  %v2389 = vand.u32 %v2388, 4294901760
  %v2390 = vsub.f32 %v2388, %v2389
  %v2391 = vand.u32 %v2390, 4294901760
  %2392 = vmatpush.msra.mxu0 %v2391
  %v2393 = vand.u32 %v2344, 4294901760
  %2394 = vmatmul.f32.gmra.mxu0 %v2393
  %v2395 = vpop.f32.mrf.mxu0
  %v2396 = vadd.f32 %v2370, %v2395
  %2397 = vdwg.mxu0
  %2398 = vmatpush.msra.mxu0 0.0
  %2399 = vmatpush.msra.mxu0 0.0
  %2400 = vmatpush.msra.mxu0 0.0
  %2401 = vmatpush.msra.mxu0 0.0
  %2402 = vmatpush.msra.mxu0 0.0
  %2403 = vmatpush.msra.mxu0 0.0
  %2404 = vmatpush.msra.mxu0 0.0
  %2405 = vmatpush.msra.mxu0 0.0
  %2406 = vmatpush.msra.mxu0 0.0
  %2407 = vmatpush.msra.mxu0 0.0
  %2408 = vmatpush.msra.mxu0 0.0
  %2409 = vmatpush.msra.mxu0 0.0
  %2410 = vmatpush.msra.mxu0 0.0
  %2411 = vmatpush.msra.mxu0 0.0
  %2412 = vmatpush.msra.mxu0 0.0
  %v2413 = vand.u32 %v2341, 4294901760
  %v2414 = vsub.f32 %v2341, %v2413
  %2415 = vmatpush.msra.mxu0 %v2414
  %v2416 = vand.u32 %v2344, 4294901760
  %v2417 = vsub.f32 %v2344, %v2416
  %2418 = vmatmul.f32.gmra.mxu0 %v2417
  %v2419 = vpop.f32.mrf.mxu0
  %v2420 = vadd.f32 %v2396, %v2419
  %2421 = vdwg.mxu0
  %2422 = vmatpush.msra.mxu0 0.0
  %2423 = vmatpush.msra.mxu0 0.0
  %2424 = vmatpush.msra.mxu0 0.0
  %2425 = vmatpush.msra.mxu0 0.0
  %2426 = vmatpush.msra.mxu0 0.0
  %2427 = vmatpush.msra.mxu0 0.0
  %2428 = vmatpush.msra.mxu0 0.0
  %2429 = vmatpush.msra.mxu0 0.0
  %2430 = vmatpush.msra.mxu0 0.0
  %2431 = vmatpush.msra.mxu0 0.0
  %2432 = vmatpush.msra.mxu0 0.0
  %2433 = vmatpush.msra.mxu0 0.0
  %2434 = vmatpush.msra.mxu0 0.0
  %2435 = vmatpush.msra.mxu0 0.0
  %2436 = vmatpush.msra.mxu0 0.0
  %v2437 = vand.u32 %v2341, 4294901760
  %2438 = vmatpush.msra.mxu0 %v2437
  %v2439 = vand.u32 %v2344, 4294901760
  %v2440 = vsub.f32 %v2344, %v2439
  %v2441 = vand.u32 %v2440, 4294901760
  %2442 = vmatmul.f32.gmra.mxu0 %v2441
  %v2443 = vpop.f32.mrf.mxu0
  %v2444 = vadd.f32 %v2420, %v2443
  %2445 = vdwg.mxu0
  %2446 = vmatpush.msra.mxu0 0.0
  %2447 = vmatpush.msra.mxu0 0.0
  %2448 = vmatpush.msra.mxu0 0.0
  %2449 = vmatpush.msra.mxu0 0.0
  %2450 = vmatpush.msra.mxu0 0.0
  %2451 = vmatpush.msra.mxu0 0.0
  %2452 = vmatpush.msra.mxu0 0.0
  %2453 = vmatpush.msra.mxu0 0.0
  %2454 = vmatpush.msra.mxu0 0.0
  %2455 = vmatpush.msra.mxu0 0.0
  %2456 = vmatpush.msra.mxu0 0.0
  %2457 = vmatpush.msra.mxu0 0.0
  %2458 = vmatpush.msra.mxu0 0.0
  %2459 = vmatpush.msra.mxu0 0.0
  %2460 = vmatpush.msra.mxu0 0.0
  %v2461 = vand.u32 %v2341, 4294901760
  %v2462 = vsub.f32 %v2341, %v2461
  %v2463 = vand.u32 %v2462, 4294901760
  %2464 = vmatpush.msra.mxu0 %v2463
  %v2465 = vand.u32 %v2344, 4294901760
  %2466 = vmatmul.f32.gmra.mxu0 %v2465
  %v2467 = vpop.f32.mrf.mxu0
  %v2468 = vadd.f32 %v2444, %v2467
  %2469 = vdwg.mxu0
  %2470 = vmatpush.msra.mxu0 0.0
  %2471 = vmatpush.msra.mxu0 0.0
  %2472 = vmatpush.msra.mxu0 0.0
  %2473 = vmatpush.msra.mxu0 0.0
  %2474 = vmatpush.msra.mxu0 0.0
  %2475 = vmatpush.msra.mxu0 0.0
  %2476 = vmatpush.msra.mxu0 0.0
  %2477 = vmatpush.msra.mxu0 0.0
  %2478 = vmatpush.msra.mxu0 0.0
  %2479 = vmatpush.msra.mxu0 0.0
  %2480 = vmatpush.msra.mxu0 0.0
  %2481 = vmatpush.msra.mxu0 0.0
  %2482 = vmatpush.msra.mxu0 0.0
  %2483 = vmatpush.msra.mxu0 0.0
  %2484 = vmatpush.msra.mxu0 0.0
  %v2485 = vand.u32 %v2341, 4294901760
  %2486 = vmatpush.msra.mxu0 %v2485
  %v2487 = vand.u32 %v2344, 4294901760
  %2488 = vmatmul.f32.gmra.mxu0 %v2487
  %v2489 = vpop.f32.mrf.mxu0
  %v2490 = vadd.f32 %v2468, %v2489
  %2491 = vdwg.mxu0
  %2492 = vrot.lane.b32.xlu0 %v2039, 96
  %v2493 = vpop.permute.xlu0 %2492
  %v2494 = vsel %vm232, %v2039, 0
  %v2496 = vsel %vm232, %v2493, 0
  %2498 = vmatpush.xpose.msra.mxu0 0.0
  %2499 = vmatpush.xpose.msra.mxu0 0.0
  %2500 = vmatpush.xpose.msra.mxu0 0.0
  %2501 = vmatpush.xpose.msra.mxu0 0.0
  %2502 = vmatpush.xpose.msra.mxu0 0.0
  %2503 = vmatpush.xpose.msra.mxu0 0.0
  %2504 = vmatpush.xpose.msra.mxu0 0.0
  %2505 = vmatpush.xpose.msra.mxu0 0.0
  %2506 = vmatpush.xpose.msra.mxu0 0.0
  %2507 = vmatpush.xpose.msra.mxu0 0.0
  %2508 = vmatpush.xpose.msra.mxu0 0.0
  %2509 = vmatpush.xpose.msra.mxu0 0.0
  %2510 = vmatpush.xpose.msra.mxu0 0.0
  %2511 = vmatpush.xpose.msra.mxu0 0.0
  %2512 = vmatpush.xpose.msra.mxu0 0.0
  %v2513 = vand.u32 %v2496, 4294901760
  %2514 = vmatpush.xpose.msra.mxu0 %v2513
  %v2515 = vand.u32 %v2494, 4294901760
  %v2516 = vsub.f32 %v2494, %v2515
  %v2517 = vand.u32 %v2516, 4294901760
  %v2518 = vsub.f32 %v2516, %v2517
  %v2519 = vand.u32 %v2518, 4294901760
  %2520 = vmatmul.f32.gmra.mxu0 %v2519
  %v2521 = vpop.f32.mrf.mxu0
  %v2522 = vadd.f32 0.0, %v2521
  %2523 = vdwg.mxu0
  %2524 = vmatpush.xpose.msra.mxu0 0.0
  %2525 = vmatpush.xpose.msra.mxu0 0.0
  %2526 = vmatpush.xpose.msra.mxu0 0.0
  %2527 = vmatpush.xpose.msra.mxu0 0.0
  %2528 = vmatpush.xpose.msra.mxu0 0.0
  %2529 = vmatpush.xpose.msra.mxu0 0.0
  %2530 = vmatpush.xpose.msra.mxu0 0.0
  %2531 = vmatpush.xpose.msra.mxu0 0.0
  %2532 = vmatpush.xpose.msra.mxu0 0.0
  %2533 = vmatpush.xpose.msra.mxu0 0.0
  %2534 = vmatpush.xpose.msra.mxu0 0.0
  %2535 = vmatpush.xpose.msra.mxu0 0.0
  %2536 = vmatpush.xpose.msra.mxu0 0.0
  %2537 = vmatpush.xpose.msra.mxu0 0.0
  %2538 = vmatpush.xpose.msra.mxu0 0.0
  %v2539 = vand.u32 %v2496, 4294901760
  %v2540 = vsub.f32 %v2496, %v2539
  %v2541 = vand.u32 %v2540, 4294901760
  %v2542 = vsub.f32 %v2540, %v2541
  %v2543 = vand.u32 %v2542, 4294901760
  %2544 = vmatpush.xpose.msra.mxu0 %v2543
  %v2545 = vand.u32 %v2494, 4294901760
  %2546 = vmatmul.f32.gmra.mxu0 %v2545
  %v2547 = vpop.f32.mrf.mxu0
  %v2548 = vadd.f32 %v2522, %v2547
  %2549 = vdwg.mxu0
  %2550 = vmatpush.xpose.msra.mxu0 0.0
  %2551 = vmatpush.xpose.msra.mxu0 0.0
  %2552 = vmatpush.xpose.msra.mxu0 0.0
  %2553 = vmatpush.xpose.msra.mxu0 0.0
  %2554 = vmatpush.xpose.msra.mxu0 0.0
  %2555 = vmatpush.xpose.msra.mxu0 0.0
  %2556 = vmatpush.xpose.msra.mxu0 0.0
  %2557 = vmatpush.xpose.msra.mxu0 0.0
  %2558 = vmatpush.xpose.msra.mxu0 0.0
  %2559 = vmatpush.xpose.msra.mxu0 0.0
  %2560 = vmatpush.xpose.msra.mxu0 0.0
  %2561 = vmatpush.xpose.msra.mxu0 0.0
  %2562 = vmatpush.xpose.msra.mxu0 0.0
  %2563 = vmatpush.xpose.msra.mxu0 0.0
  %2564 = vmatpush.xpose.msra.mxu0 0.0
  %v2565 = vand.u32 %v2496, 4294901760
  %v2566 = vsub.f32 %v2496, %v2565
  %2567 = vmatpush.xpose.msra.mxu0 %v2566
  %v2568 = vand.u32 %v2494, 4294901760
  %v2569 = vsub.f32 %v2494, %v2568
  %2570 = vmatmul.f32.gmra.mxu0 %v2569
  %v2571 = vpop.f32.mrf.mxu0
  %v2572 = vadd.f32 %v2548, %v2571
  %2573 = vdwg.mxu0
  %2574 = vmatpush.xpose.msra.mxu0 0.0
  %2575 = vmatpush.xpose.msra.mxu0 0.0
  %2576 = vmatpush.xpose.msra.mxu0 0.0
  %2577 = vmatpush.xpose.msra.mxu0 0.0
  %2578 = vmatpush.xpose.msra.mxu0 0.0
  %2579 = vmatpush.xpose.msra.mxu0 0.0
  %2580 = vmatpush.xpose.msra.mxu0 0.0
  %2581 = vmatpush.xpose.msra.mxu0 0.0
  %2582 = vmatpush.xpose.msra.mxu0 0.0
  %2583 = vmatpush.xpose.msra.mxu0 0.0
  %2584 = vmatpush.xpose.msra.mxu0 0.0
  %2585 = vmatpush.xpose.msra.mxu0 0.0
  %2586 = vmatpush.xpose.msra.mxu0 0.0
  %2587 = vmatpush.xpose.msra.mxu0 0.0
  %2588 = vmatpush.xpose.msra.mxu0 0.0
  %v2589 = vand.u32 %v2496, 4294901760
  %2590 = vmatpush.xpose.msra.mxu0 %v2589
  %v2591 = vand.u32 %v2494, 4294901760
  %v2592 = vsub.f32 %v2494, %v2591
  %v2593 = vand.u32 %v2592, 4294901760
  %2594 = vmatmul.f32.gmra.mxu0 %v2593
  %v2595 = vpop.f32.mrf.mxu0
  %v2596 = vadd.f32 %v2572, %v2595
  %2597 = vdwg.mxu0
  %2598 = vmatpush.xpose.msra.mxu0 0.0
  %2599 = vmatpush.xpose.msra.mxu0 0.0
  %2600 = vmatpush.xpose.msra.mxu0 0.0
  %2601 = vmatpush.xpose.msra.mxu0 0.0
  %2602 = vmatpush.xpose.msra.mxu0 0.0
  %2603 = vmatpush.xpose.msra.mxu0 0.0
  %2604 = vmatpush.xpose.msra.mxu0 0.0
  %2605 = vmatpush.xpose.msra.mxu0 0.0
  %2606 = vmatpush.xpose.msra.mxu0 0.0
  %2607 = vmatpush.xpose.msra.mxu0 0.0
  %2608 = vmatpush.xpose.msra.mxu0 0.0
  %2609 = vmatpush.xpose.msra.mxu0 0.0
  %2610 = vmatpush.xpose.msra.mxu0 0.0
  %2611 = vmatpush.xpose.msra.mxu0 0.0
  %2612 = vmatpush.xpose.msra.mxu0 0.0
  %v2613 = vand.u32 %v2496, 4294901760
  %v2614 = vsub.f32 %v2496, %v2613
  %v2615 = vand.u32 %v2614, 4294901760
  %2616 = vmatpush.xpose.msra.mxu0 %v2615
  %v2617 = vand.u32 %v2494, 4294901760
  %2618 = vmatmul.f32.gmra.mxu0 %v2617
  %v2619 = vpop.f32.mrf.mxu0
  %v2620 = vadd.f32 %v2596, %v2619
  %2621 = vdwg.mxu0
  %2622 = vmatpush.xpose.msra.mxu0 0.0
  %2623 = vmatpush.xpose.msra.mxu0 0.0
  %2624 = vmatpush.xpose.msra.mxu0 0.0
  %2625 = vmatpush.xpose.msra.mxu0 0.0
  %2626 = vmatpush.xpose.msra.mxu0 0.0
  %2627 = vmatpush.xpose.msra.mxu0 0.0
  %2628 = vmatpush.xpose.msra.mxu0 0.0
  %2629 = vmatpush.xpose.msra.mxu0 0.0
  %2630 = vmatpush.xpose.msra.mxu0 0.0
  %2631 = vmatpush.xpose.msra.mxu0 0.0
  %2632 = vmatpush.xpose.msra.mxu0 0.0
  %2633 = vmatpush.xpose.msra.mxu0 0.0
  %2634 = vmatpush.xpose.msra.mxu0 0.0
  %2635 = vmatpush.xpose.msra.mxu0 0.0
  %2636 = vmatpush.xpose.msra.mxu0 0.0
  %v2637 = vand.u32 %v2496, 4294901760
  %2638 = vmatpush.xpose.msra.mxu0 %v2637
  %v2639 = vand.u32 %v2494, 4294901760
  %2640 = vmatmul.f32.gmra.mxu0 %v2639
  %v2641 = vpop.f32.mrf.mxu0
  %v2642 = vadd.f32 %v2620, %v2641
  %2643 = vdwg.mxu0
  %v2644 = vmul.f32 %v2642, 0.17677669
  %2645 = vset.pattern.permute.xlu0 96
  %2646 = vperm.xlu0 %2645, %v2039
  %v2647 = vpop.permute.xlu0 %2646
  %v2649 = vsub.f32 %v2647, %v2238
  %2650 = vset.pattern.permute.xlu0 97
  %2651 = vperm.xlu0 %2650, %v2039
  %v2652 = vpop.permute.xlu0 %2651
  %v2654 = vsub.f32 %v2652, %v2244
  %v2655 = vmul.f32 %v2649, %v2649
  %v2656 = vmul.f32 %v2654, %v2654
  %v2657 = vadd.f32 %v2655, %v2656
  %2659 = vrot.lane.b32.xlu0 %v2657, 120
  %v2660 = vpop.permute.xlu0 %2659
  %v2662 = vsel %vm663, %v2660, 0.0
  %2663 = vadd.xlane.f32.xlu0 %v2662
  %v2664 = vpop.xlane.xlu0 %2663
  %v2665 = vrot.slane %v2664, 4
  %v2666 = vadd.f32 %v2664, %v2665
  %v2667 = vrot.slane %v2666, 2
  %v2668 = vadd.f32 %v2666, %v2667
  %v2669 = vrot.slane %v2668, 1
  %v2670 = vadd.f32 %v2668, %v2669
  %s2671 = vtos %v2670
  %v2672 = vrcp.pop 64.0
  %v2673 = vmul.f32 64.0, %v2672
  %v2674 = vsub.f32 1.0, %v2673
  %v2675 = vmul.f32 %v2672, %v2674
  %v2676 = vadd.f32 %v2672, %v2675
  %vm2677 = vweird.f32 %v2672
  %v2678 = vsel %vm2677, %v2672, %v2676
  %s2679 = vtos %v2678
  %s2680 = smul.f32 %s2671, %s2679
  %v2681 = vstv %s2680
  %v2682 = vsub.f32 %v2657, %v2681
  %v2683 = vmul.f32 %v2682, %v2682
  %2685 = vrot.lane.b32.xlu0 %v2683, 120
  %v2686 = vpop.permute.xlu0 %2685
  %v2688 = vsel %vm663, %v2686, 0.0
  %2689 = vadd.xlane.f32.xlu0 %v2688
  %v2690 = vpop.xlane.xlu0 %2689
  %v2691 = vrot.slane %v2690, 4
  %v2692 = vadd.f32 %v2690, %v2691
  %v2693 = vrot.slane %v2692, 2
  %v2694 = vadd.f32 %v2692, %v2693
  %v2695 = vrot.slane %v2694, 1
  %v2696 = vadd.f32 %v2694, %v2695
  %s2697 = vtos %v2696
  %v2698 = vrcp.pop 63.0
  %v2699 = vmul.f32 63.0, %v2698
  %v2700 = vsub.f32 1.0, %v2699
  %v2701 = vmul.f32 %v2698, %v2700
  %v2702 = vadd.f32 %v2698, %v2701
  %vm2703 = vweird.f32 %v2698
  %v2704 = vsel %vm2703, %v2698, %v2702
  %s2705 = vtos %v2704
  %s2706 = smul.f32 %s2697, %s2705
  %v2707 = vstv %s2706
  %v2708 = vrsqrt.pop %v2707
  %v2709 = vmul.f32 %v2708, %v2707
  %v2710 = vmul.f32 %v2709, %v2708
  %v2711 = vmul.f32 0.5, %v2710
  %v2712 = vsub.f32 1.5, %v2711
  %v2713 = vmul.f32 %v2708, %v2712
  %v2714 = vmul.f32 %v2707, %v2713
  %vm2715 = vcmp.eq.f32.partialorder %v2707, inf
  %v2716 = vsel %vm2715, %v2707, %v2714
  %vm2717 = vcmp.eq.f32.partialorder %v2707, 0.0
  %v2718 = vand.u32 %v2707, 2147483648
  %v2719 = vsel %vm2717, %v2718, %v2716
  %s2720 = vtos %v2719
  %s2721 = smul.f32 %s2720, 1.25
  %s2722 = sadd.f32 %s2680, %s2721
  %vm2723 = vcmp.eq.f32.partialorder %v2654, 0.0
  %vm2724 = vcmp.lt.f32.partialorder %v2649, 0.0
  %vm2725 = vmand %vm2723, %vm2724
  %v2726 = vstv %s2722
  %vm2727 = vcmp.le.f32.partialorder %v2657, %v2726
  %vm2728 = vmand %vm2727, %vm1146
  %vm2729 = vmxor %vm2725, 1
  %vm2730 = vmand %vm2728, %vm2729
  %vm2731 = vmor %vm2730, %vm1153
  %2733 = vrot.lane.b32.xlu0 %v2644, 8
  %v2734 = vpop.permute.xlu0 %2733
  %v2736 = vsel %vm2731, %v2734, -inf
  %v2737 = vsel %vm1160, %v2736, -inf
  %2738 = vmax.xlane.f32.xlu0 %v2737
  %v2739 = vpop.xlane.xlu0 %2738
  %v2740 = vsub.f32 %v2736, %v2739
  %v2741 = vmul.f32 %v2740, 1.442695
  %v2742 = vpow.pop %v2741
  %2744 = vrot.lane.b32.xlu0 %v2742, 120
  %v2745 = vpop.permute.xlu0 %2744
  %v2747 = vsel %vm663, %v2745, 0.0
  %2748 = vadd.xlane.f32.xlu0 %v2747
  %v2749 = vpop.xlane.xlu0 %2748
  %v2750 = vrcp.pop %v2749
  %v2751 = vmul.f32 %v2749, %v2750
  %v2752 = vsub.f32 1.0, %v2751
  %v2753 = vmul.f32 %v2750, %v2752
  %v2754 = vadd.f32 %v2750, %v2753
  %vm2755 = vweird.f32 %v2749
  %vm2756 = vweird.f32 %v2750
  %vm2757 = vmor %vm2755, %vm2756
  %v2758 = vsel %vm2757, %v2750, %v2754
  %v2759 = vand.u32 2147483647, %v2749
  %vm2760 = vcmp.eq.f32.partialorder %v2759, 8.507059e+37
  %v2761 = vand.u32 %v2749, 2147483648
  %v2762 = vor.u32 1.1754944e-38, %v2761
  %v2763 = vsel %vm2760, %v2762, %v2758
  %v2764 = vmul.f32 %v2742, %v2763
  %2766 = vrot.lane.b32.xlu0 %v2764, 120
  %v2767 = vpop.permute.xlu0 %2766
  %2768 = vrot.lane.b32.xlu0 %v2039, 64
  %v2769 = vpop.permute.xlu0 %2768
  %v2771 = vsel %vm663, %v2767, 0
  %2773 = vmatpush.msra.mxu0 0.0
  %2774 = vmatpush.msra.mxu0 0.0
  %2775 = vmatpush.msra.mxu0 0.0
  %2776 = vmatpush.msra.mxu0 0.0
  %2777 = vmatpush.msra.mxu0 0.0
  %2778 = vmatpush.msra.mxu0 0.0
  %2779 = vmatpush.msra.mxu0 0.0
  %2780 = vmatpush.msra.mxu0 0.0
  %2781 = vmatpush.msra.mxu0 0.0
  %2782 = vmatpush.msra.mxu0 0.0
  %2783 = vmatpush.msra.mxu0 0.0
  %2784 = vmatpush.msra.mxu0 0.0
  %2785 = vmatpush.msra.mxu0 0.0
  %2786 = vmatpush.msra.mxu0 0.0
  %2787 = vmatpush.msra.mxu0 0.0
  %v2788 = vand.u32 %v2769, 4294901760
  %2789 = vmatpush.msra.mxu0 %v2788
  %v2790 = vand.u32 %v2771, 4294901760
  %v2791 = vsub.f32 %v2771, %v2790
  %v2792 = vand.u32 %v2791, 4294901760
  %v2793 = vsub.f32 %v2791, %v2792
  %v2794 = vand.u32 %v2793, 4294901760
  %2795 = vmatmul.f32.gmra.mxu0 %v2794
  %v2796 = vpop.f32.mrf.mxu0
  %v2797 = vadd.f32 0.0, %v2796
  %2798 = vdwg.mxu0
  %2799 = vmatpush.msra.mxu0 0.0
  %2800 = vmatpush.msra.mxu0 0.0
  %2801 = vmatpush.msra.mxu0 0.0
  %2802 = vmatpush.msra.mxu0 0.0
  %2803 = vmatpush.msra.mxu0 0.0
  %2804 = vmatpush.msra.mxu0 0.0
  %2805 = vmatpush.msra.mxu0 0.0
  %2806 = vmatpush.msra.mxu0 0.0
  %2807 = vmatpush.msra.mxu0 0.0
  %2808 = vmatpush.msra.mxu0 0.0
  %2809 = vmatpush.msra.mxu0 0.0
  %2810 = vmatpush.msra.mxu0 0.0
  %2811 = vmatpush.msra.mxu0 0.0
  %2812 = vmatpush.msra.mxu0 0.0
  %2813 = vmatpush.msra.mxu0 0.0
  %v2814 = vand.u32 %v2769, 4294901760
  %v2815 = vsub.f32 %v2769, %v2814
  %v2816 = vand.u32 %v2815, 4294901760
  %v2817 = vsub.f32 %v2815, %v2816
  %v2818 = vand.u32 %v2817, 4294901760
  %2819 = vmatpush.msra.mxu0 %v2818
  %v2820 = vand.u32 %v2771, 4294901760
  %2821 = vmatmul.f32.gmra.mxu0 %v2820
  %v2822 = vpop.f32.mrf.mxu0
  %v2823 = vadd.f32 %v2797, %v2822
  %2824 = vdwg.mxu0
  %2825 = vmatpush.msra.mxu0 0.0
  %2826 = vmatpush.msra.mxu0 0.0
  %2827 = vmatpush.msra.mxu0 0.0
  %2828 = vmatpush.msra.mxu0 0.0
  %2829 = vmatpush.msra.mxu0 0.0
  %2830 = vmatpush.msra.mxu0 0.0
  %2831 = vmatpush.msra.mxu0 0.0
  %2832 = vmatpush.msra.mxu0 0.0
  %2833 = vmatpush.msra.mxu0 0.0
  %2834 = vmatpush.msra.mxu0 0.0
  %2835 = vmatpush.msra.mxu0 0.0
  %2836 = vmatpush.msra.mxu0 0.0
  %2837 = vmatpush.msra.mxu0 0.0
  %2838 = vmatpush.msra.mxu0 0.0
  %2839 = vmatpush.msra.mxu0 0.0
  %v2840 = vand.u32 %v2769, 4294901760
  %v2841 = vsub.f32 %v2769, %v2840
  %2842 = vmatpush.msra.mxu0 %v2841
  %v2843 = vand.u32 %v2771, 4294901760
  %v2844 = vsub.f32 %v2771, %v2843
  %2845 = vmatmul.f32.gmra.mxu0 %v2844
  %v2846 = vpop.f32.mrf.mxu0
  %v2847 = vadd.f32 %v2823, %v2846
  %2848 = vdwg.mxu0
  %2849 = vmatpush.msra.mxu0 0.0
  %2850 = vmatpush.msra.mxu0 0.0
  %2851 = vmatpush.msra.mxu0 0.0
  %2852 = vmatpush.msra.mxu0 0.0
  %2853 = vmatpush.msra.mxu0 0.0
  %2854 = vmatpush.msra.mxu0 0.0
  %2855 = vmatpush.msra.mxu0 0.0
  %2856 = vmatpush.msra.mxu0 0.0
  %2857 = vmatpush.msra.mxu0 0.0
  %2858 = vmatpush.msra.mxu0 0.0
  %2859 = vmatpush.msra.mxu0 0.0
  %2860 = vmatpush.msra.mxu0 0.0
  %2861 = vmatpush.msra.mxu0 0.0
  %2862 = vmatpush.msra.mxu0 0.0
  %2863 = vmatpush.msra.mxu0 0.0
  %v2864 = vand.u32 %v2769, 4294901760
  %2865 = vmatpush.msra.mxu0 %v2864
  %v2866 = vand.u32 %v2771, 4294901760
  %v2867 = vsub.f32 %v2771, %v2866
  %v2868 = vand.u32 %v2867, 4294901760
  %2869 = vmatmul.f32.gmra.mxu0 %v2868
  %v2870 = vpop.f32.mrf.mxu0
  %v2871 = vadd.f32 %v2847, %v2870
  %2872 = vdwg.mxu0
  %2873 = vmatpush.msra.mxu0 0.0
  %2874 = vmatpush.msra.mxu0 0.0
  %2875 = vmatpush.msra.mxu0 0.0
  %2876 = vmatpush.msra.mxu0 0.0
  %2877 = vmatpush.msra.mxu0 0.0
  %2878 = vmatpush.msra.mxu0 0.0
  %2879 = vmatpush.msra.mxu0 0.0
  %2880 = vmatpush.msra.mxu0 0.0
  %2881 = vmatpush.msra.mxu0 0.0
  %2882 = vmatpush.msra.mxu0 0.0
  %2883 = vmatpush.msra.mxu0 0.0
  %2884 = vmatpush.msra.mxu0 0.0
  %2885 = vmatpush.msra.mxu0 0.0
  %2886 = vmatpush.msra.mxu0 0.0
  %2887 = vmatpush.msra.mxu0 0.0
  %v2888 = vand.u32 %v2769, 4294901760
  %v2889 = vsub.f32 %v2769, %v2888
  %v2890 = vand.u32 %v2889, 4294901760
  %2891 = vmatpush.msra.mxu0 %v2890
  %v2892 = vand.u32 %v2771, 4294901760
  %2893 = vmatmul.f32.gmra.mxu0 %v2892
  %v2894 = vpop.f32.mrf.mxu0
  %v2895 = vadd.f32 %v2871, %v2894
  %2896 = vdwg.mxu0
  %2897 = vmatpush.msra.mxu0 0.0
  %2898 = vmatpush.msra.mxu0 0.0
  %2899 = vmatpush.msra.mxu0 0.0
  %2900 = vmatpush.msra.mxu0 0.0
  %2901 = vmatpush.msra.mxu0 0.0
  %2902 = vmatpush.msra.mxu0 0.0
  %2903 = vmatpush.msra.mxu0 0.0
  %2904 = vmatpush.msra.mxu0 0.0
  %2905 = vmatpush.msra.mxu0 0.0
  %2906 = vmatpush.msra.mxu0 0.0
  %2907 = vmatpush.msra.mxu0 0.0
  %2908 = vmatpush.msra.mxu0 0.0
  %2909 = vmatpush.msra.mxu0 0.0
  %2910 = vmatpush.msra.mxu0 0.0
  %2911 = vmatpush.msra.mxu0 0.0
  %v2912 = vand.u32 %v2769, 4294901760
  %2913 = vmatpush.msra.mxu0 %v2912
  %v2914 = vand.u32 %v2771, 4294901760
  %2915 = vmatmul.f32.gmra.mxu0 %v2914
  %v2916 = vpop.f32.mrf.mxu0
  %v2917 = vadd.f32 %v2895, %v2916
  %2918 = vdwg.mxu0
  %v2919 = vperm.slane %v1817, 1
  %v2921 = vsel %vm232, %v2490, 0
  %v2924 = vsel %vm232, %v2917, 0
  %2926 = vmatpush.msra.mxu0 0.0
  %2927 = vmatpush.msra.mxu0 0.0
  %2928 = vmatpush.msra.mxu0 0.0
  %2929 = vmatpush.msra.mxu0 0.0
  %2930 = vmatpush.msra.mxu0 0.0
  %2931 = vmatpush.msra.mxu0 0.0
  %2932 = vmatpush.msra.mxu0 0.0
  %2933 = vmatpush.msra.mxu0 0.0
  %2934 = vmatpush.msra.mxu0 0.0
  %2935 = vmatpush.msra.mxu0 0.0
  %2936 = vmatpush.msra.mxu0 0.0
  %2937 = vmatpush.msra.mxu0 0.0
  %v2938 = vand.u32 %v1814, 4294901760
  %2939 = vmatpush.msra.mxu0 %v2938
  %v2940 = vand.u32 %v1813, 4294901760
  %2941 = vmatpush.msra.mxu0 %v2940
  %v2942 = vand.u32 %v1812, 4294901760
  %2943 = vmatpush.msra.mxu0 %v2942
  %v2944 = vand.u32 %v1811, 4294901760
  %2945 = vmatpush.msra.mxu0 %v2944
  %v2946 = vand.u32 %v2921, 4294901760
  %v2947 = vsub.f32 %v2921, %v2946
  %v2948 = vand.u32 %v2947, 4294901760
  %v2949 = vsub.f32 %v2947, %v2948
  %v2950 = vand.u32 %v2949, 4294901760
  %2951 = vmatmul.f32.gmra.mxu0 %v2950
  %v2952 = vpop.f32.mrf.mxu0
  %v2953 = vadd.f32 %v2919, %v2952
  %v2954 = vand.u32 %v2924, 4294901760
  %v2955 = vsub.f32 %v2924, %v2954
  %v2956 = vand.u32 %v2955, 4294901760
  %v2957 = vsub.f32 %v2955, %v2956
  %v2958 = vand.u32 %v2957, 4294901760
  %2959 = vmatmul.f32.gmra.mxu0 %v2958
  %v2960 = vpop.f32.mrf.mxu0
  %v2961 = vadd.f32 %v2919, %v2960
  %2962 = vdwg.mxu0
  %2963 = vmatpush.msra.mxu0 0.0
  %2964 = vmatpush.msra.mxu0 0.0
  %2965 = vmatpush.msra.mxu0 0.0
  %2966 = vmatpush.msra.mxu0 0.0
  %2967 = vmatpush.msra.mxu0 0.0
  %2968 = vmatpush.msra.mxu0 0.0
  %2969 = vmatpush.msra.mxu0 0.0
  %2970 = vmatpush.msra.mxu0 0.0
  %2971 = vmatpush.msra.mxu0 0.0
  %2972 = vmatpush.msra.mxu0 0.0
  %2973 = vmatpush.msra.mxu0 0.0
  %2974 = vmatpush.msra.mxu0 0.0
  %v2975 = vand.u32 %v1814, 4294901760
  %v2976 = vsub.f32 %v1814, %v2975
  %v2977 = vand.u32 %v2976, 4294901760
  %v2978 = vsub.f32 %v2976, %v2977
  %v2979 = vand.u32 %v2978, 4294901760
  %2980 = vmatpush.msra.mxu0 %v2979
  %v2981 = vand.u32 %v1813, 4294901760
  %v2982 = vsub.f32 %v1813, %v2981
  %v2983 = vand.u32 %v2982, 4294901760
  %v2984 = vsub.f32 %v2982, %v2983
  %v2985 = vand.u32 %v2984, 4294901760
  %2986 = vmatpush.msra.mxu0 %v2985
  %v2987 = vand.u32 %v1812, 4294901760
  %v2988 = vsub.f32 %v1812, %v2987
  %v2989 = vand.u32 %v2988, 4294901760
  %v2990 = vsub.f32 %v2988, %v2989
  %v2991 = vand.u32 %v2990, 4294901760
  %2992 = vmatpush.msra.mxu0 %v2991
  %v2993 = vand.u32 %v1811, 4294901760
  %v2994 = vsub.f32 %v1811, %v2993
  %v2995 = vand.u32 %v2994, 4294901760
  %v2996 = vsub.f32 %v2994, %v2995
  %v2997 = vand.u32 %v2996, 4294901760
  %2998 = vmatpush.msra.mxu0 %v2997
  %v2999 = vand.u32 %v2921, 4294901760
  %3000 = vmatmul.f32.gmra.mxu0 %v2999
  %v3001 = vpop.f32.mrf.mxu0
  %v3002 = vadd.f32 %v2953, %v3001
  %v3003 = vand.u32 %v2924, 4294901760
  %3004 = vmatmul.f32.gmra.mxu0 %v3003
  %v3005 = vpop.f32.mrf.mxu0
  %v3006 = vadd.f32 %v2961, %v3005
  %3007 = vdwg.mxu0
  %3008 = vmatpush.msra.mxu0 0.0
  %3009 = vmatpush.msra.mxu0 0.0
  %3010 = vmatpush.msra.mxu0 0.0
  %3011 = vmatpush.msra.mxu0 0.0
  %3012 = vmatpush.msra.mxu0 0.0
  %3013 = vmatpush.msra.mxu0 0.0
  %3014 = vmatpush.msra.mxu0 0.0
  %3015 = vmatpush.msra.mxu0 0.0
  %3016 = vmatpush.msra.mxu0 0.0
  %3017 = vmatpush.msra.mxu0 0.0
  %3018 = vmatpush.msra.mxu0 0.0
  %3019 = vmatpush.msra.mxu0 0.0
  %v3020 = vand.u32 %v1814, 4294901760
  %v3021 = vsub.f32 %v1814, %v3020
  %3022 = vmatpush.msra.mxu0 %v3021
  %v3023 = vand.u32 %v1813, 4294901760
  %v3024 = vsub.f32 %v1813, %v3023
  %3025 = vmatpush.msra.mxu0 %v3024
  %v3026 = vand.u32 %v1812, 4294901760
  %v3027 = vsub.f32 %v1812, %v3026
  %3028 = vmatpush.msra.mxu0 %v3027
  %v3029 = vand.u32 %v1811, 4294901760
  %v3030 = vsub.f32 %v1811, %v3029
  %3031 = vmatpush.msra.mxu0 %v3030
  %v3032 = vand.u32 %v2921, 4294901760
  %v3033 = vsub.f32 %v2921, %v3032
  %3034 = vmatmul.f32.gmra.mxu0 %v3033
  %v3035 = vpop.f32.mrf.mxu0
  %v3036 = vadd.f32 %v3002, %v3035
  %v3037 = vand.u32 %v2924, 4294901760
  %v3038 = vsub.f32 %v2924, %v3037
  %3039 = vmatmul.f32.gmra.mxu0 %v3038
  %v3040 = vpop.f32.mrf.mxu0
  %v3041 = vadd.f32 %v3006, %v3040
  %3042 = vdwg.mxu0
  %3043 = vmatpush.msra.mxu0 0.0
  %3044 = vmatpush.msra.mxu0 0.0
  %3045 = vmatpush.msra.mxu0 0.0
  %3046 = vmatpush.msra.mxu0 0.0
  %3047 = vmatpush.msra.mxu0 0.0
  %3048 = vmatpush.msra.mxu0 0.0
  %3049 = vmatpush.msra.mxu0 0.0
  %3050 = vmatpush.msra.mxu0 0.0
  %3051 = vmatpush.msra.mxu0 0.0
  %3052 = vmatpush.msra.mxu0 0.0
  %3053 = vmatpush.msra.mxu0 0.0
  %3054 = vmatpush.msra.mxu0 0.0
  %v3055 = vand.u32 %v1814, 4294901760
  %3056 = vmatpush.msra.mxu0 %v3055
  %v3057 = vand.u32 %v1813, 4294901760
  %3058 = vmatpush.msra.mxu0 %v3057
  %v3059 = vand.u32 %v1812, 4294901760
  %3060 = vmatpush.msra.mxu0 %v3059
  %v3061 = vand.u32 %v1811, 4294901760
  %3062 = vmatpush.msra.mxu0 %v3061
  %v3063 = vand.u32 %v2921, 4294901760
  %v3064 = vsub.f32 %v2921, %v3063
  %v3065 = vand.u32 %v3064, 4294901760
  %3066 = vmatmul.f32.gmra.mxu0 %v3065
  %v3067 = vpop.f32.mrf.mxu0
  %v3068 = vadd.f32 %v3036, %v3067
  %v3069 = vand.u32 %v2924, 4294901760
  %v3070 = vsub.f32 %v2924, %v3069
  %v3071 = vand.u32 %v3070, 4294901760
  %3072 = vmatmul.f32.gmra.mxu0 %v3071
  %v3073 = vpop.f32.mrf.mxu0
  %v3074 = vadd.f32 %v3041, %v3073
  %3075 = vdwg.mxu0
  %3076 = vmatpush.msra.mxu0 0.0
  %3077 = vmatpush.msra.mxu0 0.0
  %3078 = vmatpush.msra.mxu0 0.0
  %3079 = vmatpush.msra.mxu0 0.0
  %3080 = vmatpush.msra.mxu0 0.0
  %3081 = vmatpush.msra.mxu0 0.0
  %3082 = vmatpush.msra.mxu0 0.0
  %3083 = vmatpush.msra.mxu0 0.0
  %3084 = vmatpush.msra.mxu0 0.0
  %3085 = vmatpush.msra.mxu0 0.0
  %3086 = vmatpush.msra.mxu0 0.0
  %3087 = vmatpush.msra.mxu0 0.0
  %v3088 = vand.u32 %v1814, 4294901760
  %v3089 = vsub.f32 %v1814, %v3088
  %v3090 = vand.u32 %v3089, 4294901760
  %3091 = vmatpush.msra.mxu0 %v3090
  %v3092 = vand.u32 %v1813, 4294901760
  %v3093 = vsub.f32 %v1813, %v3092
  %v3094 = vand.u32 %v3093, 4294901760
  %3095 = vmatpush.msra.mxu0 %v3094
  %v3096 = vand.u32 %v1812, 4294901760
  %v3097 = vsub.f32 %v1812, %v3096
  %v3098 = vand.u32 %v3097, 4294901760
  %3099 = vmatpush.msra.mxu0 %v3098
  %v3100 = vand.u32 %v1811, 4294901760
  %v3101 = vsub.f32 %v1811, %v3100
  %v3102 = vand.u32 %v3101, 4294901760
  %3103 = vmatpush.msra.mxu0 %v3102
  %v3104 = vand.u32 %v2921, 4294901760
  %3105 = vmatmul.f32.gmra.mxu0 %v3104
  %v3106 = vpop.f32.mrf.mxu0
  %v3107 = vadd.f32 %v3068, %v3106
  %v3108 = vand.u32 %v2924, 4294901760
  %3109 = vmatmul.f32.gmra.mxu0 %v3108
  %v3110 = vpop.f32.mrf.mxu0
  %v3111 = vadd.f32 %v3074, %v3110
  %3112 = vdwg.mxu0
  %3113 = vmatpush.msra.mxu0 0.0
  %3114 = vmatpush.msra.mxu0 0.0
  %3115 = vmatpush.msra.mxu0 0.0
  %3116 = vmatpush.msra.mxu0 0.0
  %3117 = vmatpush.msra.mxu0 0.0
  %3118 = vmatpush.msra.mxu0 0.0
  %3119 = vmatpush.msra.mxu0 0.0
  %3120 = vmatpush.msra.mxu0 0.0
  %3121 = vmatpush.msra.mxu0 0.0
  %3122 = vmatpush.msra.mxu0 0.0
  %3123 = vmatpush.msra.mxu0 0.0
  %3124 = vmatpush.msra.mxu0 0.0
  %v3125 = vand.u32 %v1814, 4294901760
  %3126 = vmatpush.msra.mxu0 %v3125
  %v3127 = vand.u32 %v1813, 4294901760
  %3128 = vmatpush.msra.mxu0 %v3127
  %v3129 = vand.u32 %v1812, 4294901760
  %3130 = vmatpush.msra.mxu0 %v3129
  %v3131 = vand.u32 %v1811, 4294901760
  %3132 = vmatpush.msra.mxu0 %v3131
  %v3133 = vand.u32 %v2921, 4294901760
  %3134 = vmatmul.f32.gmra.mxu0 %v3133
  %v3135 = vpop.f32.mrf.mxu0
  %v3136 = vadd.f32 %v3107, %v3135
  %v3137 = vand.u32 %v2924, 4294901760
  %3138 = vmatmul.f32.gmra.mxu0 %v3137
  %v3139 = vpop.f32.mrf.mxu0
  %v3140 = vadd.f32 %v3111, %v3139
  %3141 = vdwg.mxu0
  %v3142 = vmul.f32 %v2035, %v2035
  %v3143 = vmul.f32 %v2039, %v2039
  %3146 = vrot.lane.b32.xlu0 %v3142, 32
  %v3147 = vpop.permute.xlu0 %3146
  %3148 = vrot.lane.b32.xlu0 %v3143, 32
  %v3149 = vpop.permute.xlu0 %3148
  %v3152 = vsel %vm1576, %v3147, 0.0
  %3153 = vadd.xlane.f32.xlu0 %v3152
  %v3154 = vpop.xlane.xlu0 %3153
  %v3155 = vsel %vm1576, %v3149, 0.0
  %3156 = vadd.xlane.f32.xlu0 %v3155
  %v3157 = vpop.xlane.xlu0 %3156
  %v3158 = vmax.f32 %v3154, 1e-24
  %v3159 = vmax.f32 %v3157, 1e-24
  %v3160 = vrsqrt.pop %v3158
  %v3161 = vmul.f32 %v3160, %v3158
  %v3162 = vmul.f32 %v3161, %v3160
  %v3163 = vmul.f32 0.5, %v3162
  %v3164 = vsub.f32 1.5, %v3163
  %v3165 = vmul.f32 %v3160, %v3164
  %vm3166 = vweird.f32 %v3158
  %vm3167 = vweird.f32 %v3160
  %vm3168 = vmor %vm3166, %vm3167
  %v3169 = vsel %vm3168, %v3160, %v3165
  %v3170 = vrsqrt.pop %v3159
  %v3171 = vmul.f32 %v3170, %v3159
  %v3172 = vmul.f32 %v3171, %v3170
  %v3173 = vmul.f32 0.5, %v3172
  %v3174 = vsub.f32 1.5, %v3173
  %v3175 = vmul.f32 %v3170, %v3174
  %vm3176 = vweird.f32 %v3159
  %vm3177 = vweird.f32 %v3170
  %vm3178 = vmor %vm3176, %vm3177
  %v3179 = vsel %vm3178, %v3170, %v3175
  %v3180 = vmul.f32 %v2035, %v3169
  %v3181 = vmul.f32 %v2039, %v3179
  %v3182 = vperm.slane %v1817, 2
  %3185 = vrot.lane.b32.xlu0 %v3180, 32
  %v3186 = vpop.permute.xlu0 %3185
  %3187 = vrot.lane.b32.xlu0 %v3181, 32
  %v3188 = vpop.permute.xlu0 %3187
  %v3189 = vsel %vm1576, %v3186, 0
  %v3191 = vsel %vm1576, %v3188, 0
  %v3194 = vsel %vm1618, %v1815, 0
  %3196 = vmatpush.msra.mxu0 0.0
  %3197 = vmatpush.msra.mxu0 0.0
  %3198 = vmatpush.msra.mxu0 0.0
  %3199 = vmatpush.msra.mxu0 0.0
  %3200 = vmatpush.msra.mxu0 0.0
  %3201 = vmatpush.msra.mxu0 0.0
  %3202 = vmatpush.msra.mxu0 0.0
  %3203 = vmatpush.msra.mxu0 0.0
  %3204 = vmatpush.msra.mxu0 0.0
  %3205 = vmatpush.msra.mxu0 0.0
  %3206 = vmatpush.msra.mxu0 0.0
  %3207 = vmatpush.msra.mxu0 0.0
  %3208 = vmatpush.msra.mxu0 0.0
  %3209 = vmatpush.msra.mxu0 0.0
  %3210 = vmatpush.msra.mxu0 0.0
  %v3211 = vand.u32 %v3194, 4294901760
  %3212 = vmatpush.msra.mxu0 %v3211
  %v3213 = vand.u32 %v3189, 4294901760
  %v3214 = vsub.f32 %v3189, %v3213
  %v3215 = vand.u32 %v3214, 4294901760
  %v3216 = vsub.f32 %v3214, %v3215
  %v3217 = vand.u32 %v3216, 4294901760
  %3218 = vmatmul.f32.gmra.mxu0 %v3217
  %v3219 = vpop.f32.mrf.mxu0
  %v3220 = vadd.f32 %v3182, %v3219
  %v3221 = vand.u32 %v3191, 4294901760
  %v3222 = vsub.f32 %v3191, %v3221
  %v3223 = vand.u32 %v3222, 4294901760
  %v3224 = vsub.f32 %v3222, %v3223
  %v3225 = vand.u32 %v3224, 4294901760
  %3226 = vmatmul.f32.gmra.mxu0 %v3225
  %v3227 = vpop.f32.mrf.mxu0
  %v3228 = vadd.f32 %v3182, %v3227
  %3229 = vdwg.mxu0
  %3230 = vmatpush.msra.mxu0 0.0
  %3231 = vmatpush.msra.mxu0 0.0
  %3232 = vmatpush.msra.mxu0 0.0
  %3233 = vmatpush.msra.mxu0 0.0
  %3234 = vmatpush.msra.mxu0 0.0
  %3235 = vmatpush.msra.mxu0 0.0
  %3236 = vmatpush.msra.mxu0 0.0
  %3237 = vmatpush.msra.mxu0 0.0
  %3238 = vmatpush.msra.mxu0 0.0
  %3239 = vmatpush.msra.mxu0 0.0
  %3240 = vmatpush.msra.mxu0 0.0
  %3241 = vmatpush.msra.mxu0 0.0
  %3242 = vmatpush.msra.mxu0 0.0
  %3243 = vmatpush.msra.mxu0 0.0
  %3244 = vmatpush.msra.mxu0 0.0
  %v3245 = vand.u32 %v3194, 4294901760
  %v3246 = vsub.f32 %v3194, %v3245
  %v3247 = vand.u32 %v3246, 4294901760
  %v3248 = vsub.f32 %v3246, %v3247
  %v3249 = vand.u32 %v3248, 4294901760
  %3250 = vmatpush.msra.mxu0 %v3249
  %v3251 = vand.u32 %v3189, 4294901760
  %3252 = vmatmul.f32.gmra.mxu0 %v3251
  %v3253 = vpop.f32.mrf.mxu0
  %v3254 = vadd.f32 %v3220, %v3253
  %v3255 = vand.u32 %v3191, 4294901760
  %3256 = vmatmul.f32.gmra.mxu0 %v3255
  %v3257 = vpop.f32.mrf.mxu0
  %v3258 = vadd.f32 %v3228, %v3257
  %3259 = vdwg.mxu0
  %3260 = vmatpush.msra.mxu0 0.0
  %3261 = vmatpush.msra.mxu0 0.0
  %3262 = vmatpush.msra.mxu0 0.0
  %3263 = vmatpush.msra.mxu0 0.0
  %3264 = vmatpush.msra.mxu0 0.0
  %3265 = vmatpush.msra.mxu0 0.0
  %3266 = vmatpush.msra.mxu0 0.0
  %3267 = vmatpush.msra.mxu0 0.0
  %3268 = vmatpush.msra.mxu0 0.0
  %3269 = vmatpush.msra.mxu0 0.0
  %3270 = vmatpush.msra.mxu0 0.0
  %3271 = vmatpush.msra.mxu0 0.0
  %3272 = vmatpush.msra.mxu0 0.0
  %3273 = vmatpush.msra.mxu0 0.0
  %3274 = vmatpush.msra.mxu0 0.0
  %v3275 = vand.u32 %v3194, 4294901760
  %v3276 = vsub.f32 %v3194, %v3275
  %3277 = vmatpush.msra.mxu0 %v3276
  %v3278 = vand.u32 %v3189, 4294901760
  %v3279 = vsub.f32 %v3189, %v3278
  %3280 = vmatmul.f32.gmra.mxu0 %v3279
  %v3281 = vpop.f32.mrf.mxu0
  %v3282 = vadd.f32 %v3254, %v3281
  %v3283 = vand.u32 %v3191, 4294901760
  %v3284 = vsub.f32 %v3191, %v3283
  %3285 = vmatmul.f32.gmra.mxu0 %v3284
  %v3286 = vpop.f32.mrf.mxu0
  %v3287 = vadd.f32 %v3258, %v3286
  %3288 = vdwg.mxu0
  %3289 = vmatpush.msra.mxu0 0.0
  %3290 = vmatpush.msra.mxu0 0.0
  %3291 = vmatpush.msra.mxu0 0.0
  %3292 = vmatpush.msra.mxu0 0.0
  %3293 = vmatpush.msra.mxu0 0.0
  %3294 = vmatpush.msra.mxu0 0.0
  %3295 = vmatpush.msra.mxu0 0.0
  %3296 = vmatpush.msra.mxu0 0.0
  %3297 = vmatpush.msra.mxu0 0.0
  %3298 = vmatpush.msra.mxu0 0.0
  %3299 = vmatpush.msra.mxu0 0.0
  %3300 = vmatpush.msra.mxu0 0.0
  %3301 = vmatpush.msra.mxu0 0.0
  %3302 = vmatpush.msra.mxu0 0.0
  %3303 = vmatpush.msra.mxu0 0.0
  %v3304 = vand.u32 %v3194, 4294901760
  %3305 = vmatpush.msra.mxu0 %v3304
  %v3306 = vand.u32 %v3189, 4294901760
  %v3307 = vsub.f32 %v3189, %v3306
  %v3308 = vand.u32 %v3307, 4294901760
  %3309 = vmatmul.f32.gmra.mxu0 %v3308
  %v3310 = vpop.f32.mrf.mxu0
  %v3311 = vadd.f32 %v3282, %v3310
  %v3312 = vand.u32 %v3191, 4294901760
  %v3313 = vsub.f32 %v3191, %v3312
  %v3314 = vand.u32 %v3313, 4294901760
  %3315 = vmatmul.f32.gmra.mxu0 %v3314
  %v3316 = vpop.f32.mrf.mxu0
  %v3317 = vadd.f32 %v3287, %v3316
  %3318 = vdwg.mxu0
  %3319 = vmatpush.msra.mxu0 0.0
  %3320 = vmatpush.msra.mxu0 0.0
  %3321 = vmatpush.msra.mxu0 0.0
  %3322 = vmatpush.msra.mxu0 0.0
  %3323 = vmatpush.msra.mxu0 0.0
  %3324 = vmatpush.msra.mxu0 0.0
  %3325 = vmatpush.msra.mxu0 0.0
  %3326 = vmatpush.msra.mxu0 0.0
  %3327 = vmatpush.msra.mxu0 0.0
  %3328 = vmatpush.msra.mxu0 0.0
  %3329 = vmatpush.msra.mxu0 0.0
  %3330 = vmatpush.msra.mxu0 0.0
  %3331 = vmatpush.msra.mxu0 0.0
  %3332 = vmatpush.msra.mxu0 0.0
  %3333 = vmatpush.msra.mxu0 0.0
  %v3334 = vand.u32 %v3194, 4294901760
  %v3335 = vsub.f32 %v3194, %v3334
  %v3336 = vand.u32 %v3335, 4294901760
  %3337 = vmatpush.msra.mxu0 %v3336
  %v3338 = vand.u32 %v3189, 4294901760
  %3339 = vmatmul.f32.gmra.mxu0 %v3338
  %v3340 = vpop.f32.mrf.mxu0
  %v3341 = vadd.f32 %v3311, %v3340
  %v3342 = vand.u32 %v3191, 4294901760
  %3343 = vmatmul.f32.gmra.mxu0 %v3342
  %v3344 = vpop.f32.mrf.mxu0
  %v3345 = vadd.f32 %v3317, %v3344
  %3346 = vdwg.mxu0
  %3347 = vmatpush.msra.mxu0 0.0
  %3348 = vmatpush.msra.mxu0 0.0
  %3349 = vmatpush.msra.mxu0 0.0
  %3350 = vmatpush.msra.mxu0 0.0
  %3351 = vmatpush.msra.mxu0 0.0
  %3352 = vmatpush.msra.mxu0 0.0
  %3353 = vmatpush.msra.mxu0 0.0
  %3354 = vmatpush.msra.mxu0 0.0
  %3355 = vmatpush.msra.mxu0 0.0
  %3356 = vmatpush.msra.mxu0 0.0
  %3357 = vmatpush.msra.mxu0 0.0
  %3358 = vmatpush.msra.mxu0 0.0
  %3359 = vmatpush.msra.mxu0 0.0
  %3360 = vmatpush.msra.mxu0 0.0
  %3361 = vmatpush.msra.mxu0 0.0
  %v3362 = vand.u32 %v3194, 4294901760
  %3363 = vmatpush.msra.mxu0 %v3362
  %v3364 = vand.u32 %v3189, 4294901760
  %3365 = vmatmul.f32.gmra.mxu0 %v3364
  %v3366 = vpop.f32.mrf.mxu0
  %v3367 = vadd.f32 %v3341, %v3366
  %v3368 = vand.u32 %v3191, 4294901760
  %3369 = vmatmul.f32.gmra.mxu0 %v3368
  %v3370 = vpop.f32.mrf.mxu0
  %v3371 = vadd.f32 %v3345, %v3370
  %3372 = vdwg.mxu0
  %v3373 = vadd.f32 %v1803, %v3136
  %v3374 = vadd.f32 %v1804, %v3140
  %v3375 = vmul.f32 %v3367, 0.1
  %v3376 = vmul.f32 %v3371, 0.1
  %v3377 = vadd.f32 %v3373, %v3375
  %v3378 = vadd.f32 %v3374, %v3376
  %s3379 = scalar_lea.vmem %s2, 64
  %v3380 = vld [vmem:[%s3379] sm:$0xff]
  %v3381 = vld [vmem:[%s3379 + $0x8] sm:$0xff]
  %v3382 = vld [vmem:[%s3379 + $0x10] sm:$0xff]
  %v3383 = vld [vmem:[%s3379 + $0x18] sm:$0xff]
  %s3384 = scalar_lea.vmem %s3, 80
  %v3385 = vld [vmem:[%s3384] sm:$0xff]
  %v3386 = vld [vmem:[%s3384 + $0x8] sm:$0xff]
  %v3387 = vld [vmem:[%s3384 + $0x10] sm:$0xff]
  %v3388 = vld [vmem:[%s3384 + $0x18] sm:$0xff]
  %v3389 = vld [vmem:[%s3384 + $0x20] sm:$0x3]
  %s3390 = scalar_lea.vmem %s4, 8
  %v3391 = vld [vmem:[%s3390] sm:$0x7]
  %v3392 = vperm.slane %v3391, 0
  %v3394 = vsel %vm232, %v3377, 0
  %v3397 = vsel %vm232, %v3378, 0
  %3399 = vmatpush.msra.mxu0 0.0
  %3400 = vmatpush.msra.mxu0 0.0
  %3401 = vmatpush.msra.mxu0 0.0
  %3402 = vmatpush.msra.mxu0 0.0
  %3403 = vmatpush.msra.mxu0 0.0
  %3404 = vmatpush.msra.mxu0 0.0
  %3405 = vmatpush.msra.mxu0 0.0
  %3406 = vmatpush.msra.mxu0 0.0
  %3407 = vmatpush.msra.mxu0 0.0
  %3408 = vmatpush.msra.mxu0 0.0
  %3409 = vmatpush.msra.mxu0 0.0
  %3410 = vmatpush.msra.mxu0 0.0
  %v3411 = vand.u32 %v3383, 4294901760
  %3412 = vmatpush.msra.mxu0 %v3411
  %v3413 = vand.u32 %v3382, 4294901760
  %3414 = vmatpush.msra.mxu0 %v3413
  %v3415 = vand.u32 %v3381, 4294901760
  %3416 = vmatpush.msra.mxu0 %v3415
  %v3417 = vand.u32 %v3380, 4294901760
  %3418 = vmatpush.msra.mxu0 %v3417
  %v3419 = vand.u32 %v3394, 4294901760
  %v3420 = vsub.f32 %v3394, %v3419
  %v3421 = vand.u32 %v3420, 4294901760
  %v3422 = vsub.f32 %v3420, %v3421
  %v3423 = vand.u32 %v3422, 4294901760
  %3424 = vmatmul.f32.gmra.mxu0 %v3423
  %v3425 = vpop.f32.mrf.mxu0
  %v3426 = vadd.f32 %v3392, %v3425
  %v3427 = vand.u32 %v3397, 4294901760
  %v3428 = vsub.f32 %v3397, %v3427
  %v3429 = vand.u32 %v3428, 4294901760
  %v3430 = vsub.f32 %v3428, %v3429
  %v3431 = vand.u32 %v3430, 4294901760
  %3432 = vmatmul.f32.gmra.mxu0 %v3431
  %v3433 = vpop.f32.mrf.mxu0
  %v3434 = vadd.f32 %v3392, %v3433
  %3435 = vdwg.mxu0
  %3436 = vmatpush.msra.mxu0 0.0
  %3437 = vmatpush.msra.mxu0 0.0
  %3438 = vmatpush.msra.mxu0 0.0
  %3439 = vmatpush.msra.mxu0 0.0
  %3440 = vmatpush.msra.mxu0 0.0
  %3441 = vmatpush.msra.mxu0 0.0
  %3442 = vmatpush.msra.mxu0 0.0
  %3443 = vmatpush.msra.mxu0 0.0
  %3444 = vmatpush.msra.mxu0 0.0
  %3445 = vmatpush.msra.mxu0 0.0
  %3446 = vmatpush.msra.mxu0 0.0
  %3447 = vmatpush.msra.mxu0 0.0
  %v3448 = vand.u32 %v3383, 4294901760
  %v3449 = vsub.f32 %v3383, %v3448
  %v3450 = vand.u32 %v3449, 4294901760
  %v3451 = vsub.f32 %v3449, %v3450
  %v3452 = vand.u32 %v3451, 4294901760
  %3453 = vmatpush.msra.mxu0 %v3452
  %v3454 = vand.u32 %v3382, 4294901760
  %v3455 = vsub.f32 %v3382, %v3454
  %v3456 = vand.u32 %v3455, 4294901760
  %v3457 = vsub.f32 %v3455, %v3456
  %v3458 = vand.u32 %v3457, 4294901760
  %3459 = vmatpush.msra.mxu0 %v3458
  %v3460 = vand.u32 %v3381, 4294901760
  %v3461 = vsub.f32 %v3381, %v3460
  %v3462 = vand.u32 %v3461, 4294901760
  %v3463 = vsub.f32 %v3461, %v3462
  %v3464 = vand.u32 %v3463, 4294901760
  %3465 = vmatpush.msra.mxu0 %v3464
  %v3466 = vand.u32 %v3380, 4294901760
  %v3467 = vsub.f32 %v3380, %v3466
  %v3468 = vand.u32 %v3467, 4294901760
  %v3469 = vsub.f32 %v3467, %v3468
  %v3470 = vand.u32 %v3469, 4294901760
  %3471 = vmatpush.msra.mxu0 %v3470
  %v3472 = vand.u32 %v3394, 4294901760
  %3473 = vmatmul.f32.gmra.mxu0 %v3472
  %v3474 = vpop.f32.mrf.mxu0
  %v3475 = vadd.f32 %v3426, %v3474
  %v3476 = vand.u32 %v3397, 4294901760
  %3477 = vmatmul.f32.gmra.mxu0 %v3476
  %v3478 = vpop.f32.mrf.mxu0
  %v3479 = vadd.f32 %v3434, %v3478
  %3480 = vdwg.mxu0
  %3481 = vmatpush.msra.mxu0 0.0
  %3482 = vmatpush.msra.mxu0 0.0
  %3483 = vmatpush.msra.mxu0 0.0
  %3484 = vmatpush.msra.mxu0 0.0
  %3485 = vmatpush.msra.mxu0 0.0
  %3486 = vmatpush.msra.mxu0 0.0
  %3487 = vmatpush.msra.mxu0 0.0
  %3488 = vmatpush.msra.mxu0 0.0
  %3489 = vmatpush.msra.mxu0 0.0
  %3490 = vmatpush.msra.mxu0 0.0
  %3491 = vmatpush.msra.mxu0 0.0
  %3492 = vmatpush.msra.mxu0 0.0
  %v3493 = vand.u32 %v3383, 4294901760
  %v3494 = vsub.f32 %v3383, %v3493
  %3495 = vmatpush.msra.mxu0 %v3494
  %v3496 = vand.u32 %v3382, 4294901760
  %v3497 = vsub.f32 %v3382, %v3496
  %3498 = vmatpush.msra.mxu0 %v3497
  %v3499 = vand.u32 %v3381, 4294901760
  %v3500 = vsub.f32 %v3381, %v3499
  %3501 = vmatpush.msra.mxu0 %v3500
  %v3502 = vand.u32 %v3380, 4294901760
  %v3503 = vsub.f32 %v3380, %v3502
  %3504 = vmatpush.msra.mxu0 %v3503
  %v3505 = vand.u32 %v3394, 4294901760
  %v3506 = vsub.f32 %v3394, %v3505
  %3507 = vmatmul.f32.gmra.mxu0 %v3506
  %v3508 = vpop.f32.mrf.mxu0
  %v3509 = vadd.f32 %v3475, %v3508
  %v3510 = vand.u32 %v3397, 4294901760
  %v3511 = vsub.f32 %v3397, %v3510
  %3512 = vmatmul.f32.gmra.mxu0 %v3511
  %v3513 = vpop.f32.mrf.mxu0
  %v3514 = vadd.f32 %v3479, %v3513
  %3515 = vdwg.mxu0
  %3516 = vmatpush.msra.mxu0 0.0
  %3517 = vmatpush.msra.mxu0 0.0
  %3518 = vmatpush.msra.mxu0 0.0
  %3519 = vmatpush.msra.mxu0 0.0
  %3520 = vmatpush.msra.mxu0 0.0
  %3521 = vmatpush.msra.mxu0 0.0
  %3522 = vmatpush.msra.mxu0 0.0
  %3523 = vmatpush.msra.mxu0 0.0
  %3524 = vmatpush.msra.mxu0 0.0
  %3525 = vmatpush.msra.mxu0 0.0
  %3526 = vmatpush.msra.mxu0 0.0
  %3527 = vmatpush.msra.mxu0 0.0
  %v3528 = vand.u32 %v3383, 4294901760
  %3529 = vmatpush.msra.mxu0 %v3528
  %v3530 = vand.u32 %v3382, 4294901760
  %3531 = vmatpush.msra.mxu0 %v3530
  %v3532 = vand.u32 %v3381, 4294901760
  %3533 = vmatpush.msra.mxu0 %v3532
  %v3534 = vand.u32 %v3380, 4294901760
  %3535 = vmatpush.msra.mxu0 %v3534
  %v3536 = vand.u32 %v3394, 4294901760
  %v3537 = vsub.f32 %v3394, %v3536
  %v3538 = vand.u32 %v3537, 4294901760
  %3539 = vmatmul.f32.gmra.mxu0 %v3538
  %v3540 = vpop.f32.mrf.mxu0
  %v3541 = vadd.f32 %v3509, %v3540
  %v3542 = vand.u32 %v3397, 4294901760
  %v3543 = vsub.f32 %v3397, %v3542
  %v3544 = vand.u32 %v3543, 4294901760
  %3545 = vmatmul.f32.gmra.mxu0 %v3544
  %v3546 = vpop.f32.mrf.mxu0
  %v3547 = vadd.f32 %v3514, %v3546
  %3548 = vdwg.mxu0
  %3549 = vmatpush.msra.mxu0 0.0
  %3550 = vmatpush.msra.mxu0 0.0
  %3551 = vmatpush.msra.mxu0 0.0
  %3552 = vmatpush.msra.mxu0 0.0
  %3553 = vmatpush.msra.mxu0 0.0
  %3554 = vmatpush.msra.mxu0 0.0
  %3555 = vmatpush.msra.mxu0 0.0
  %3556 = vmatpush.msra.mxu0 0.0
  %3557 = vmatpush.msra.mxu0 0.0
  %3558 = vmatpush.msra.mxu0 0.0
  %3559 = vmatpush.msra.mxu0 0.0
  %3560 = vmatpush.msra.mxu0 0.0
  %v3561 = vand.u32 %v3383, 4294901760
  %v3562 = vsub.f32 %v3383, %v3561
  %v3563 = vand.u32 %v3562, 4294901760
  %3564 = vmatpush.msra.mxu0 %v3563
  %v3565 = vand.u32 %v3382, 4294901760
  %v3566 = vsub.f32 %v3382, %v3565
  %v3567 = vand.u32 %v3566, 4294901760
  %3568 = vmatpush.msra.mxu0 %v3567
  %v3569 = vand.u32 %v3381, 4294901760
  %v3570 = vsub.f32 %v3381, %v3569
  %v3571 = vand.u32 %v3570, 4294901760
  %3572 = vmatpush.msra.mxu0 %v3571
  %v3573 = vand.u32 %v3380, 4294901760
  %v3574 = vsub.f32 %v3380, %v3573
  %v3575 = vand.u32 %v3574, 4294901760
  %3576 = vmatpush.msra.mxu0 %v3575
  %v3577 = vand.u32 %v3394, 4294901760
  %3578 = vmatmul.f32.gmra.mxu0 %v3577
  %v3579 = vpop.f32.mrf.mxu0
  %v3580 = vadd.f32 %v3541, %v3579
  %v3581 = vand.u32 %v3397, 4294901760
  %3582 = vmatmul.f32.gmra.mxu0 %v3581
  %v3583 = vpop.f32.mrf.mxu0
  %v3584 = vadd.f32 %v3547, %v3583
  %3585 = vdwg.mxu0
  %3586 = vmatpush.msra.mxu0 0.0
  %3587 = vmatpush.msra.mxu0 0.0
  %3588 = vmatpush.msra.mxu0 0.0
  %3589 = vmatpush.msra.mxu0 0.0
  %3590 = vmatpush.msra.mxu0 0.0
  %3591 = vmatpush.msra.mxu0 0.0
  %3592 = vmatpush.msra.mxu0 0.0
  %3593 = vmatpush.msra.mxu0 0.0
  %3594 = vmatpush.msra.mxu0 0.0
  %3595 = vmatpush.msra.mxu0 0.0
  %3596 = vmatpush.msra.mxu0 0.0
  %3597 = vmatpush.msra.mxu0 0.0
  %v3598 = vand.u32 %v3383, 4294901760
  %3599 = vmatpush.msra.mxu0 %v3598
  %v3600 = vand.u32 %v3382, 4294901760
  %3601 = vmatpush.msra.mxu0 %v3600
  %v3602 = vand.u32 %v3381, 4294901760
  %3603 = vmatpush.msra.mxu0 %v3602
  %v3604 = vand.u32 %v3380, 4294901760
  %3605 = vmatpush.msra.mxu0 %v3604
  %v3606 = vand.u32 %v3394, 4294901760
  %3607 = vmatmul.f32.gmra.mxu0 %v3606
  %v3608 = vpop.f32.mrf.mxu0
  %v3609 = vadd.f32 %v3580, %v3608
  %v3610 = vand.u32 %v3397, 4294901760
  %3611 = vmatmul.f32.gmra.mxu0 %v3610
  %v3612 = vpop.f32.mrf.mxu0
  %v3613 = vadd.f32 %v3584, %v3612
  %3614 = vdwg.mxu0
  %3617 = vrot.lane.b32.xlu0 %v3609, 32
  %v3618 = vpop.permute.xlu0 %3617
  %3619 = vrot.lane.b32.xlu0 %v3613, 32
  %v3620 = vpop.permute.xlu0 %3619
  %3623 = vxpose.xlu0.b32.start [1/16] %v3618, 128
  %3624 = vxpose.xlu0.b32.cont [2/16] %v3620, 128
  %3625 = vxpose.xlu0.b32.cont [3/16] 0.0, 128
  %3626 = vxpose.xlu0.b32.cont [4/16] 0.0, 128
  %3627 = vxpose.xlu0.b32.cont [5/16] 0.0, 128
  %3628 = vxpose.xlu0.b32.cont [6/16] 0.0, 128
  %3629 = vxpose.xlu0.b32.cont [7/16] 0.0, 128
  %3630 = vxpose.xlu0.b32.cont [8/16] 0.0, 128
  %3631 = vxpose.xlu0.b32.cont [9/16] 0.0, 128
  %3632 = vxpose.xlu0.b32.cont [10/16] 0.0, 128
  %3633 = vxpose.xlu0.b32.cont [11/16] 0.0, 128
  %3634 = vxpose.xlu0.b32.cont [12/16] 0.0, 128
  %3635 = vxpose.xlu0.b32.cont [13/16] 0.0, 128
  %3636 = vxpose.xlu0.b32.cont [14/16] 0.0, 128
  %3637 = vxpose.xlu0.b32.cont [15/16] 0.0, 128
  %3638 = vxpose.xlu0.b32.end [16/16] 0.0, 128
  %v3639 = vpop.trf.xlu0
  %v3640 = vpop.trf.xlu0
  %v3641 = vpop.trf.xlu0
  %v3642 = vpop.trf.xlu0
  %v3643 = vpop.trf.xlu0
  %v3644 = vpop.trf.xlu0
  %v3645 = vpop.trf.xlu0
  %v3646 = vpop.trf.xlu0
  %v3647 = vpop.trf.xlu0
  %v3648 = vpop.trf.xlu0
  %v3649 = vpop.trf.xlu0
  %v3650 = vpop.trf.xlu0
  %v3651 = vpop.trf.xlu0
  %v3652 = vpop.trf.xlu0
  %v3653 = vpop.trf.xlu0
  %v3654 = vpop.trf.xlu0
  %3655 = vrot.lane.b32.xlu0 %v3609, 96
  %v3656 = vpop.permute.xlu0 %3655
  %v3657 = vsel %vm232, %v3609, 0
  %v3659 = vsel %vm232, %v3656, 0
  %3661 = vmatpush.xpose.msra.mxu0 0.0
  %3662 = vmatpush.xpose.msra.mxu0 0.0
  %3663 = vmatpush.xpose.msra.mxu0 0.0
  %3664 = vmatpush.xpose.msra.mxu0 0.0
  %3665 = vmatpush.xpose.msra.mxu0 0.0
  %3666 = vmatpush.xpose.msra.mxu0 0.0
  %3667 = vmatpush.xpose.msra.mxu0 0.0
  %3668 = vmatpush.xpose.msra.mxu0 0.0
  %3669 = vmatpush.xpose.msra.mxu0 0.0
  %3670 = vmatpush.xpose.msra.mxu0 0.0
  %3671 = vmatpush.xpose.msra.mxu0 0.0
  %3672 = vmatpush.xpose.msra.mxu0 0.0
  %3673 = vmatpush.xpose.msra.mxu0 0.0
  %3674 = vmatpush.xpose.msra.mxu0 0.0
  %3675 = vmatpush.xpose.msra.mxu0 0.0
  %v3676 = vand.u32 %v3659, 4294901760
  %3677 = vmatpush.xpose.msra.mxu0 %v3676
  %v3678 = vand.u32 %v3657, 4294901760
  %v3679 = vsub.f32 %v3657, %v3678
  %v3680 = vand.u32 %v3679, 4294901760
  %v3681 = vsub.f32 %v3679, %v3680
  %v3682 = vand.u32 %v3681, 4294901760
  %3683 = vmatmul.f32.gmra.mxu0 %v3682
  %v3684 = vpop.f32.mrf.mxu0
  %v3685 = vadd.f32 0.0, %v3684
  %3686 = vdwg.mxu0
  %3687 = vmatpush.xpose.msra.mxu0 0.0
  %3688 = vmatpush.xpose.msra.mxu0 0.0
  %3689 = vmatpush.xpose.msra.mxu0 0.0
  %3690 = vmatpush.xpose.msra.mxu0 0.0
  %3691 = vmatpush.xpose.msra.mxu0 0.0
  %3692 = vmatpush.xpose.msra.mxu0 0.0
  %3693 = vmatpush.xpose.msra.mxu0 0.0
  %3694 = vmatpush.xpose.msra.mxu0 0.0
  %3695 = vmatpush.xpose.msra.mxu0 0.0
  %3696 = vmatpush.xpose.msra.mxu0 0.0
  %3697 = vmatpush.xpose.msra.mxu0 0.0
  %3698 = vmatpush.xpose.msra.mxu0 0.0
  %3699 = vmatpush.xpose.msra.mxu0 0.0
  %3700 = vmatpush.xpose.msra.mxu0 0.0
  %3701 = vmatpush.xpose.msra.mxu0 0.0
  %v3702 = vand.u32 %v3659, 4294901760
  %v3703 = vsub.f32 %v3659, %v3702
  %v3704 = vand.u32 %v3703, 4294901760
  %v3705 = vsub.f32 %v3703, %v3704
  %v3706 = vand.u32 %v3705, 4294901760
  %3707 = vmatpush.xpose.msra.mxu0 %v3706
  %v3708 = vand.u32 %v3657, 4294901760
  %3709 = vmatmul.f32.gmra.mxu0 %v3708
  %v3710 = vpop.f32.mrf.mxu0
  %v3711 = vadd.f32 %v3685, %v3710
  %3712 = vdwg.mxu0
  %3713 = vmatpush.xpose.msra.mxu0 0.0
  %3714 = vmatpush.xpose.msra.mxu0 0.0
  %3715 = vmatpush.xpose.msra.mxu0 0.0
  %3716 = vmatpush.xpose.msra.mxu0 0.0
  %3717 = vmatpush.xpose.msra.mxu0 0.0
  %3718 = vmatpush.xpose.msra.mxu0 0.0
  %3719 = vmatpush.xpose.msra.mxu0 0.0
  %3720 = vmatpush.xpose.msra.mxu0 0.0
  %3721 = vmatpush.xpose.msra.mxu0 0.0
  %3722 = vmatpush.xpose.msra.mxu0 0.0
  %3723 = vmatpush.xpose.msra.mxu0 0.0
  %3724 = vmatpush.xpose.msra.mxu0 0.0
  %3725 = vmatpush.xpose.msra.mxu0 0.0
  %3726 = vmatpush.xpose.msra.mxu0 0.0
  %3727 = vmatpush.xpose.msra.mxu0 0.0
  %v3728 = vand.u32 %v3659, 4294901760
  %v3729 = vsub.f32 %v3659, %v3728
  %3730 = vmatpush.xpose.msra.mxu0 %v3729
  %v3731 = vand.u32 %v3657, 4294901760
  %v3732 = vsub.f32 %v3657, %v3731
  %3733 = vmatmul.f32.gmra.mxu0 %v3732
  %v3734 = vpop.f32.mrf.mxu0
  %v3735 = vadd.f32 %v3711, %v3734
  %3736 = vdwg.mxu0
  %3737 = vmatpush.xpose.msra.mxu0 0.0
  %3738 = vmatpush.xpose.msra.mxu0 0.0
  %3739 = vmatpush.xpose.msra.mxu0 0.0
  %3740 = vmatpush.xpose.msra.mxu0 0.0
  %3741 = vmatpush.xpose.msra.mxu0 0.0
  %3742 = vmatpush.xpose.msra.mxu0 0.0
  %3743 = vmatpush.xpose.msra.mxu0 0.0
  %3744 = vmatpush.xpose.msra.mxu0 0.0
  %3745 = vmatpush.xpose.msra.mxu0 0.0
  %3746 = vmatpush.xpose.msra.mxu0 0.0
  %3747 = vmatpush.xpose.msra.mxu0 0.0
  %3748 = vmatpush.xpose.msra.mxu0 0.0
  %3749 = vmatpush.xpose.msra.mxu0 0.0
  %3750 = vmatpush.xpose.msra.mxu0 0.0
  %3751 = vmatpush.xpose.msra.mxu0 0.0
  %v3752 = vand.u32 %v3659, 4294901760
  %3753 = vmatpush.xpose.msra.mxu0 %v3752
  %v3754 = vand.u32 %v3657, 4294901760
  %v3755 = vsub.f32 %v3657, %v3754
  %v3756 = vand.u32 %v3755, 4294901760
  %3757 = vmatmul.f32.gmra.mxu0 %v3756
  %v3758 = vpop.f32.mrf.mxu0
  %v3759 = vadd.f32 %v3735, %v3758
  %3760 = vdwg.mxu0
  %3761 = vmatpush.xpose.msra.mxu0 0.0
  %3762 = vmatpush.xpose.msra.mxu0 0.0
  %3763 = vmatpush.xpose.msra.mxu0 0.0
  %3764 = vmatpush.xpose.msra.mxu0 0.0
  %3765 = vmatpush.xpose.msra.mxu0 0.0
  %3766 = vmatpush.xpose.msra.mxu0 0.0
  %3767 = vmatpush.xpose.msra.mxu0 0.0
  %3768 = vmatpush.xpose.msra.mxu0 0.0
  %3769 = vmatpush.xpose.msra.mxu0 0.0
  %3770 = vmatpush.xpose.msra.mxu0 0.0
  %3771 = vmatpush.xpose.msra.mxu0 0.0
  %3772 = vmatpush.xpose.msra.mxu0 0.0
  %3773 = vmatpush.xpose.msra.mxu0 0.0
  %3774 = vmatpush.xpose.msra.mxu0 0.0
  %3775 = vmatpush.xpose.msra.mxu0 0.0
  %v3776 = vand.u32 %v3659, 4294901760
  %v3777 = vsub.f32 %v3659, %v3776
  %v3778 = vand.u32 %v3777, 4294901760
  %3779 = vmatpush.xpose.msra.mxu0 %v3778
  %v3780 = vand.u32 %v3657, 4294901760
  %3781 = vmatmul.f32.gmra.mxu0 %v3780
  %v3782 = vpop.f32.mrf.mxu0
  %v3783 = vadd.f32 %v3759, %v3782
  %3784 = vdwg.mxu0
  %3785 = vmatpush.xpose.msra.mxu0 0.0
  %3786 = vmatpush.xpose.msra.mxu0 0.0
  %3787 = vmatpush.xpose.msra.mxu0 0.0
  %3788 = vmatpush.xpose.msra.mxu0 0.0
  %3789 = vmatpush.xpose.msra.mxu0 0.0
  %3790 = vmatpush.xpose.msra.mxu0 0.0
  %3791 = vmatpush.xpose.msra.mxu0 0.0
  %3792 = vmatpush.xpose.msra.mxu0 0.0
  %3793 = vmatpush.xpose.msra.mxu0 0.0
  %3794 = vmatpush.xpose.msra.mxu0 0.0
  %3795 = vmatpush.xpose.msra.mxu0 0.0
  %3796 = vmatpush.xpose.msra.mxu0 0.0
  %3797 = vmatpush.xpose.msra.mxu0 0.0
  %3798 = vmatpush.xpose.msra.mxu0 0.0
  %3799 = vmatpush.xpose.msra.mxu0 0.0
  %v3800 = vand.u32 %v3659, 4294901760
  %3801 = vmatpush.xpose.msra.mxu0 %v3800
  %v3802 = vand.u32 %v3657, 4294901760
  %3803 = vmatmul.f32.gmra.mxu0 %v3802
  %v3804 = vpop.f32.mrf.mxu0
  %v3805 = vadd.f32 %v3783, %v3804
  %3806 = vdwg.mxu0
  %v3807 = vmul.f32 %v3805, 0.17677669
  %3808 = vset.pattern.permute.xlu0 96
  %3809 = vperm.xlu0 %3808, %v3609
  %v3810 = vpop.permute.xlu0 %3809
  %v3812 = vperm.slane %v3639, 0
  %v3813 = vsub.f32 %v3810, %v3812
  %3814 = vset.pattern.permute.xlu0 97
  %3815 = vperm.xlu0 %3814, %v3609
  %v3816 = vpop.permute.xlu0 %3815
  %v3818 = vperm.slane %v3639, 1
  %v3819 = vsub.f32 %v3816, %v3818
  %v3820 = vmul.f32 %v3813, %v3813
  %v3821 = vmul.f32 %v3819, %v3819
  %v3822 = vadd.f32 %v3820, %v3821
  %v3823 = vsel %vm663, %v3822, 0.0
  %3824 = vadd.xlane.f32.xlu0 %v3823
  %v3825 = vpop.xlane.xlu0 %3824
  %v3826 = vrot.slane %v3825, 4
  %v3827 = vadd.f32 %v3825, %v3826
  %v3828 = vrot.slane %v3827, 2
  %v3829 = vadd.f32 %v3827, %v3828
  %v3830 = vrot.slane %v3829, 1
  %v3831 = vadd.f32 %v3829, %v3830
  %s3832 = vtos %v3831
  %v3833 = vrcp.pop 64.0
  %v3834 = vmul.f32 64.0, %v3833
  %v3835 = vsub.f32 1.0, %v3834
  %v3836 = vmul.f32 %v3833, %v3835
  %v3837 = vadd.f32 %v3833, %v3836
  %vm3838 = vweird.f32 %v3833
  %v3839 = vsel %vm3838, %v3833, %v3837
  %s3840 = vtos %v3839
  %s3841 = smul.f32 %s3832, %s3840
  %v3842 = vstv %s3841
  %v3843 = vsub.f32 %v3822, %v3842
  %v3844 = vmul.f32 %v3843, %v3843
  %v3845 = vsel %vm663, %v3844, 0.0
  %3846 = vadd.xlane.f32.xlu0 %v3845
  %v3847 = vpop.xlane.xlu0 %3846
  %v3848 = vrot.slane %v3847, 4
  %v3849 = vadd.f32 %v3847, %v3848
  %v3850 = vrot.slane %v3849, 2
  %v3851 = vadd.f32 %v3849, %v3850
  %v3852 = vrot.slane %v3851, 1
  %v3853 = vadd.f32 %v3851, %v3852
  %s3854 = vtos %v3853
  %v3855 = vrcp.pop 63.0
  %v3856 = vmul.f32 63.0, %v3855
  %v3857 = vsub.f32 1.0, %v3856
  %v3858 = vmul.f32 %v3855, %v3857
  %v3859 = vadd.f32 %v3855, %v3858
  %vm3860 = vweird.f32 %v3855
  %v3861 = vsel %vm3860, %v3855, %v3859
  %s3862 = vtos %v3861
  %s3863 = smul.f32 %s3854, %s3862
  %v3864 = vstv %s3863
  %v3865 = vrsqrt.pop %v3864
  %v3866 = vmul.f32 %v3865, %v3864
  %v3867 = vmul.f32 %v3866, %v3865
  %v3868 = vmul.f32 0.5, %v3867
  %v3869 = vsub.f32 1.5, %v3868
  %v3870 = vmul.f32 %v3865, %v3869
  %v3871 = vmul.f32 %v3864, %v3870
  %vm3872 = vcmp.eq.f32.partialorder %v3864, inf
  %v3873 = vsel %vm3872, %v3864, %v3871
  %vm3874 = vcmp.eq.f32.partialorder %v3864, 0.0
  %v3875 = vand.u32 %v3864, 2147483648
  %v3876 = vsel %vm3874, %v3875, %v3873
  %s3877 = vtos %v3876
  %s3878 = smul.f32 %s3877, 1.25
  %s3879 = sadd.f32 %s3841, %s3878
  %vm3880 = vcmp.eq.f32.partialorder %v3819, 0.0
  %vm3881 = vcmp.lt.f32.partialorder %v3813, 0.0
  %vm3882 = vmand %vm3880, %vm3881
  %v3883 = vstv %s3879
  %vm3884 = vcmp.le.f32.partialorder %v3822, %v3883
  %vm3885 = vmand %vm3884, %vm219
  %vm3886 = vmxor %vm3882, 1
  %vm3887 = vmand %vm3885, %vm3886
  %vm3888 = vmor %vm3887, %vm220
  %v3889 = vsel %vm3888, %v3807, -inf
  %v3890 = vsel %vm663, %v3889, -inf
  %3891 = vmax.xlane.f32.xlu0 %v3890
  %v3892 = vpop.xlane.xlu0 %3891
  %v3893 = vsub.f32 %v3889, %v3892
  %v3894 = vmul.f32 %v3893, 1.442695
  %v3895 = vpow.pop %v3894
  %v3896 = vsel %vm663, %v3895, 0.0
  %3897 = vadd.xlane.f32.xlu0 %v3896
  %v3898 = vpop.xlane.xlu0 %3897
  %v3899 = vrcp.pop %v3898
  %v3900 = vmul.f32 %v3898, %v3899
  %v3901 = vsub.f32 1.0, %v3900
  %v3902 = vmul.f32 %v3899, %v3901
  %v3903 = vadd.f32 %v3899, %v3902
  %vm3904 = vweird.f32 %v3898
  %vm3905 = vweird.f32 %v3899
  %vm3906 = vmor %vm3904, %vm3905
  %v3907 = vsel %vm3906, %v3899, %v3903
  %v3908 = vand.u32 2147483647, %v3898
  %vm3909 = vcmp.eq.f32.partialorder %v3908, 8.507059e+37
  %v3910 = vand.u32 %v3898, 2147483648
  %v3911 = vor.u32 1.1754944e-38, %v3910
  %v3912 = vsel %vm3909, %v3911, %v3907
  %v3913 = vmul.f32 %v3895, %v3912
  %3914 = vrot.lane.b32.xlu0 %v3609, 64
  %v3915 = vpop.permute.xlu0 %3914
  %v3918 = vsel %vm663, %v3913, 0
  %3920 = vmatpush.msra.mxu0 0.0
  %3921 = vmatpush.msra.mxu0 0.0
  %3922 = vmatpush.msra.mxu0 0.0
  %3923 = vmatpush.msra.mxu0 0.0
  %3924 = vmatpush.msra.mxu0 0.0
  %3925 = vmatpush.msra.mxu0 0.0
  %3926 = vmatpush.msra.mxu0 0.0
  %3927 = vmatpush.msra.mxu0 0.0
  %3928 = vmatpush.msra.mxu0 0.0
  %3929 = vmatpush.msra.mxu0 0.0
  %3930 = vmatpush.msra.mxu0 0.0
  %3931 = vmatpush.msra.mxu0 0.0
  %3932 = vmatpush.msra.mxu0 0.0
  %3933 = vmatpush.msra.mxu0 0.0
  %3934 = vmatpush.msra.mxu0 0.0
  %v3935 = vand.u32 %v3915, 4294901760
  %3936 = vmatpush.msra.mxu0 %v3935
  %v3937 = vand.u32 %v3918, 4294901760
  %v3938 = vsub.f32 %v3918, %v3937
  %v3939 = vand.u32 %v3938, 4294901760
  %v3940 = vsub.f32 %v3938, %v3939
  %v3941 = vand.u32 %v3940, 4294901760
  %3942 = vmatmul.f32.gmra.mxu0 %v3941
  %v3943 = vpop.f32.mrf.mxu0
  %v3944 = vadd.f32 0.0, %v3943
  %3945 = vdwg.mxu0
  %3946 = vmatpush.msra.mxu0 0.0
  %3947 = vmatpush.msra.mxu0 0.0
  %3948 = vmatpush.msra.mxu0 0.0
  %3949 = vmatpush.msra.mxu0 0.0
  %3950 = vmatpush.msra.mxu0 0.0
  %3951 = vmatpush.msra.mxu0 0.0
  %3952 = vmatpush.msra.mxu0 0.0
  %3953 = vmatpush.msra.mxu0 0.0
  %3954 = vmatpush.msra.mxu0 0.0
  %3955 = vmatpush.msra.mxu0 0.0
  %3956 = vmatpush.msra.mxu0 0.0
  %3957 = vmatpush.msra.mxu0 0.0
  %3958 = vmatpush.msra.mxu0 0.0
  %3959 = vmatpush.msra.mxu0 0.0
  %3960 = vmatpush.msra.mxu0 0.0
  %v3961 = vand.u32 %v3915, 4294901760
  %v3962 = vsub.f32 %v3915, %v3961
  %v3963 = vand.u32 %v3962, 4294901760
  %v3964 = vsub.f32 %v3962, %v3963
  %v3965 = vand.u32 %v3964, 4294901760
  %3966 = vmatpush.msra.mxu0 %v3965
  %v3967 = vand.u32 %v3918, 4294901760
  %3968 = vmatmul.f32.gmra.mxu0 %v3967
  %v3969 = vpop.f32.mrf.mxu0
  %v3970 = vadd.f32 %v3944, %v3969
  %3971 = vdwg.mxu0
  %3972 = vmatpush.msra.mxu0 0.0
  %3973 = vmatpush.msra.mxu0 0.0
  %3974 = vmatpush.msra.mxu0 0.0
  %3975 = vmatpush.msra.mxu0 0.0
  %3976 = vmatpush.msra.mxu0 0.0
  %3977 = vmatpush.msra.mxu0 0.0
  %3978 = vmatpush.msra.mxu0 0.0
  %3979 = vmatpush.msra.mxu0 0.0
  %3980 = vmatpush.msra.mxu0 0.0
  %3981 = vmatpush.msra.mxu0 0.0
  %3982 = vmatpush.msra.mxu0 0.0
  %3983 = vmatpush.msra.mxu0 0.0
  %3984 = vmatpush.msra.mxu0 0.0
  %3985 = vmatpush.msra.mxu0 0.0
  %3986 = vmatpush.msra.mxu0 0.0
  %v3987 = vand.u32 %v3915, 4294901760
  %v3988 = vsub.f32 %v3915, %v3987
  %3989 = vmatpush.msra.mxu0 %v3988
  %v3990 = vand.u32 %v3918, 4294901760
  %v3991 = vsub.f32 %v3918, %v3990
  %3992 = vmatmul.f32.gmra.mxu0 %v3991
  %v3993 = vpop.f32.mrf.mxu0
  %v3994 = vadd.f32 %v3970, %v3993
  %3995 = vdwg.mxu0
  %3996 = vmatpush.msra.mxu0 0.0
  %3997 = vmatpush.msra.mxu0 0.0
  %3998 = vmatpush.msra.mxu0 0.0
  %3999 = vmatpush.msra.mxu0 0.0
  %4000 = vmatpush.msra.mxu0 0.0
  %4001 = vmatpush.msra.mxu0 0.0
  %4002 = vmatpush.msra.mxu0 0.0
  %4003 = vmatpush.msra.mxu0 0.0
  %4004 = vmatpush.msra.mxu0 0.0
  %4005 = vmatpush.msra.mxu0 0.0
  %4006 = vmatpush.msra.mxu0 0.0
  %4007 = vmatpush.msra.mxu0 0.0
  %4008 = vmatpush.msra.mxu0 0.0
  %4009 = vmatpush.msra.mxu0 0.0
  %4010 = vmatpush.msra.mxu0 0.0
  %v4011 = vand.u32 %v3915, 4294901760
  %4012 = vmatpush.msra.mxu0 %v4011
  %v4013 = vand.u32 %v3918, 4294901760
  %v4014 = vsub.f32 %v3918, %v4013
  %v4015 = vand.u32 %v4014, 4294901760
  %4016 = vmatmul.f32.gmra.mxu0 %v4015
  %v4017 = vpop.f32.mrf.mxu0
  %v4018 = vadd.f32 %v3994, %v4017
  %4019 = vdwg.mxu0
  %4020 = vmatpush.msra.mxu0 0.0
  %4021 = vmatpush.msra.mxu0 0.0
  %4022 = vmatpush.msra.mxu0 0.0
  %4023 = vmatpush.msra.mxu0 0.0
  %4024 = vmatpush.msra.mxu0 0.0
  %4025 = vmatpush.msra.mxu0 0.0
  %4026 = vmatpush.msra.mxu0 0.0
  %4027 = vmatpush.msra.mxu0 0.0
  %4028 = vmatpush.msra.mxu0 0.0
  %4029 = vmatpush.msra.mxu0 0.0
  %4030 = vmatpush.msra.mxu0 0.0
  %4031 = vmatpush.msra.mxu0 0.0
  %4032 = vmatpush.msra.mxu0 0.0
  %4033 = vmatpush.msra.mxu0 0.0
  %4034 = vmatpush.msra.mxu0 0.0
  %v4035 = vand.u32 %v3915, 4294901760
  %v4036 = vsub.f32 %v3915, %v4035
  %v4037 = vand.u32 %v4036, 4294901760
  %4038 = vmatpush.msra.mxu0 %v4037
  %v4039 = vand.u32 %v3918, 4294901760
  %4040 = vmatmul.f32.gmra.mxu0 %v4039
  %v4041 = vpop.f32.mrf.mxu0
  %v4042 = vadd.f32 %v4018, %v4041
  %4043 = vdwg.mxu0
  %4044 = vmatpush.msra.mxu0 0.0
  %4045 = vmatpush.msra.mxu0 0.0
  %4046 = vmatpush.msra.mxu0 0.0
  %4047 = vmatpush.msra.mxu0 0.0
  %4048 = vmatpush.msra.mxu0 0.0
  %4049 = vmatpush.msra.mxu0 0.0
  %4050 = vmatpush.msra.mxu0 0.0
  %4051 = vmatpush.msra.mxu0 0.0
  %4052 = vmatpush.msra.mxu0 0.0
  %4053 = vmatpush.msra.mxu0 0.0
  %4054 = vmatpush.msra.mxu0 0.0
  %4055 = vmatpush.msra.mxu0 0.0
  %4056 = vmatpush.msra.mxu0 0.0
  %4057 = vmatpush.msra.mxu0 0.0
  %4058 = vmatpush.msra.mxu0 0.0
  %v4059 = vand.u32 %v3915, 4294901760
  %4060 = vmatpush.msra.mxu0 %v4059
  %v4061 = vand.u32 %v3918, 4294901760
  %4062 = vmatmul.f32.gmra.mxu0 %v4061
  %v4063 = vpop.f32.mrf.mxu0
  %v4064 = vadd.f32 %v4042, %v4063
  %4065 = vdwg.mxu0
  %4066 = vrot.lane.b32.xlu0 %v3613, 96
  %v4067 = vpop.permute.xlu0 %4066
  %v4068 = vsel %vm232, %v3613, 0
  %v4070 = vsel %vm232, %v4067, 0
  %4072 = vmatpush.xpose.msra.mxu0 0.0
  %4073 = vmatpush.xpose.msra.mxu0 0.0
  %4074 = vmatpush.xpose.msra.mxu0 0.0
  %4075 = vmatpush.xpose.msra.mxu0 0.0
  %4076 = vmatpush.xpose.msra.mxu0 0.0
  %4077 = vmatpush.xpose.msra.mxu0 0.0
  %4078 = vmatpush.xpose.msra.mxu0 0.0
  %4079 = vmatpush.xpose.msra.mxu0 0.0
  %4080 = vmatpush.xpose.msra.mxu0 0.0
  %4081 = vmatpush.xpose.msra.mxu0 0.0
  %4082 = vmatpush.xpose.msra.mxu0 0.0
  %4083 = vmatpush.xpose.msra.mxu0 0.0
  %4084 = vmatpush.xpose.msra.mxu0 0.0
  %4085 = vmatpush.xpose.msra.mxu0 0.0
  %4086 = vmatpush.xpose.msra.mxu0 0.0
  %v4087 = vand.u32 %v4070, 4294901760
  %4088 = vmatpush.xpose.msra.mxu0 %v4087
  %v4089 = vand.u32 %v4068, 4294901760
  %v4090 = vsub.f32 %v4068, %v4089
  %v4091 = vand.u32 %v4090, 4294901760
  %v4092 = vsub.f32 %v4090, %v4091
  %v4093 = vand.u32 %v4092, 4294901760
  %4094 = vmatmul.f32.gmra.mxu0 %v4093
  %v4095 = vpop.f32.mrf.mxu0
  %v4096 = vadd.f32 0.0, %v4095
  %4097 = vdwg.mxu0
  %4098 = vmatpush.xpose.msra.mxu0 0.0
  %4099 = vmatpush.xpose.msra.mxu0 0.0
  %4100 = vmatpush.xpose.msra.mxu0 0.0
  %4101 = vmatpush.xpose.msra.mxu0 0.0
  %4102 = vmatpush.xpose.msra.mxu0 0.0
  %4103 = vmatpush.xpose.msra.mxu0 0.0
  %4104 = vmatpush.xpose.msra.mxu0 0.0
  %4105 = vmatpush.xpose.msra.mxu0 0.0
  %4106 = vmatpush.xpose.msra.mxu0 0.0
  %4107 = vmatpush.xpose.msra.mxu0 0.0
  %4108 = vmatpush.xpose.msra.mxu0 0.0
  %4109 = vmatpush.xpose.msra.mxu0 0.0
  %4110 = vmatpush.xpose.msra.mxu0 0.0
  %4111 = vmatpush.xpose.msra.mxu0 0.0
  %4112 = vmatpush.xpose.msra.mxu0 0.0
  %v4113 = vand.u32 %v4070, 4294901760
  %v4114 = vsub.f32 %v4070, %v4113
  %v4115 = vand.u32 %v4114, 4294901760
  %v4116 = vsub.f32 %v4114, %v4115
  %v4117 = vand.u32 %v4116, 4294901760
  %4118 = vmatpush.xpose.msra.mxu0 %v4117
  %v4119 = vand.u32 %v4068, 4294901760
  %4120 = vmatmul.f32.gmra.mxu0 %v4119
  %v4121 = vpop.f32.mrf.mxu0
  %v4122 = vadd.f32 %v4096, %v4121
  %4123 = vdwg.mxu0
  %4124 = vmatpush.xpose.msra.mxu0 0.0
  %4125 = vmatpush.xpose.msra.mxu0 0.0
  %4126 = vmatpush.xpose.msra.mxu0 0.0
  %4127 = vmatpush.xpose.msra.mxu0 0.0
  %4128 = vmatpush.xpose.msra.mxu0 0.0
  %4129 = vmatpush.xpose.msra.mxu0 0.0
  %4130 = vmatpush.xpose.msra.mxu0 0.0
  %4131 = vmatpush.xpose.msra.mxu0 0.0
  %4132 = vmatpush.xpose.msra.mxu0 0.0
  %4133 = vmatpush.xpose.msra.mxu0 0.0
  %4134 = vmatpush.xpose.msra.mxu0 0.0
  %4135 = vmatpush.xpose.msra.mxu0 0.0
  %4136 = vmatpush.xpose.msra.mxu0 0.0
  %4137 = vmatpush.xpose.msra.mxu0 0.0
  %4138 = vmatpush.xpose.msra.mxu0 0.0
  %v4139 = vand.u32 %v4070, 4294901760
  %v4140 = vsub.f32 %v4070, %v4139
  %4141 = vmatpush.xpose.msra.mxu0 %v4140
  %v4142 = vand.u32 %v4068, 4294901760
  %v4143 = vsub.f32 %v4068, %v4142
  %4144 = vmatmul.f32.gmra.mxu0 %v4143
  %v4145 = vpop.f32.mrf.mxu0
  %v4146 = vadd.f32 %v4122, %v4145
  %4147 = vdwg.mxu0
  %4148 = vmatpush.xpose.msra.mxu0 0.0
  %4149 = vmatpush.xpose.msra.mxu0 0.0
  %4150 = vmatpush.xpose.msra.mxu0 0.0
  %4151 = vmatpush.xpose.msra.mxu0 0.0
  %4152 = vmatpush.xpose.msra.mxu0 0.0
  %4153 = vmatpush.xpose.msra.mxu0 0.0
  %4154 = vmatpush.xpose.msra.mxu0 0.0
  %4155 = vmatpush.xpose.msra.mxu0 0.0
  %4156 = vmatpush.xpose.msra.mxu0 0.0
  %4157 = vmatpush.xpose.msra.mxu0 0.0
  %4158 = vmatpush.xpose.msra.mxu0 0.0
  %4159 = vmatpush.xpose.msra.mxu0 0.0
  %4160 = vmatpush.xpose.msra.mxu0 0.0
  %4161 = vmatpush.xpose.msra.mxu0 0.0
  %4162 = vmatpush.xpose.msra.mxu0 0.0
  %v4163 = vand.u32 %v4070, 4294901760
  %4164 = vmatpush.xpose.msra.mxu0 %v4163
  %v4165 = vand.u32 %v4068, 4294901760
  %v4166 = vsub.f32 %v4068, %v4165
  %v4167 = vand.u32 %v4166, 4294901760
  %4168 = vmatmul.f32.gmra.mxu0 %v4167
  %v4169 = vpop.f32.mrf.mxu0
  %v4170 = vadd.f32 %v4146, %v4169
  %4171 = vdwg.mxu0
  %4172 = vmatpush.xpose.msra.mxu0 0.0
  %4173 = vmatpush.xpose.msra.mxu0 0.0
  %4174 = vmatpush.xpose.msra.mxu0 0.0
  %4175 = vmatpush.xpose.msra.mxu0 0.0
  %4176 = vmatpush.xpose.msra.mxu0 0.0
  %4177 = vmatpush.xpose.msra.mxu0 0.0
  %4178 = vmatpush.xpose.msra.mxu0 0.0
  %4179 = vmatpush.xpose.msra.mxu0 0.0
  %4180 = vmatpush.xpose.msra.mxu0 0.0
  %4181 = vmatpush.xpose.msra.mxu0 0.0
  %4182 = vmatpush.xpose.msra.mxu0 0.0
  %4183 = vmatpush.xpose.msra.mxu0 0.0
  %4184 = vmatpush.xpose.msra.mxu0 0.0
  %4185 = vmatpush.xpose.msra.mxu0 0.0
  %4186 = vmatpush.xpose.msra.mxu0 0.0
  %v4187 = vand.u32 %v4070, 4294901760
  %v4188 = vsub.f32 %v4070, %v4187
  %v4189 = vand.u32 %v4188, 4294901760
  %4190 = vmatpush.xpose.msra.mxu0 %v4189
  %v4191 = vand.u32 %v4068, 4294901760
  %4192 = vmatmul.f32.gmra.mxu0 %v4191
  %v4193 = vpop.f32.mrf.mxu0
  %v4194 = vadd.f32 %v4170, %v4193
  %4195 = vdwg.mxu0
  %4196 = vmatpush.xpose.msra.mxu0 0.0
  %4197 = vmatpush.xpose.msra.mxu0 0.0
  %4198 = vmatpush.xpose.msra.mxu0 0.0
  %4199 = vmatpush.xpose.msra.mxu0 0.0
  %4200 = vmatpush.xpose.msra.mxu0 0.0
  %4201 = vmatpush.xpose.msra.mxu0 0.0
  %4202 = vmatpush.xpose.msra.mxu0 0.0
  %4203 = vmatpush.xpose.msra.mxu0 0.0
  %4204 = vmatpush.xpose.msra.mxu0 0.0
  %4205 = vmatpush.xpose.msra.mxu0 0.0
  %4206 = vmatpush.xpose.msra.mxu0 0.0
  %4207 = vmatpush.xpose.msra.mxu0 0.0
  %4208 = vmatpush.xpose.msra.mxu0 0.0
  %4209 = vmatpush.xpose.msra.mxu0 0.0
  %4210 = vmatpush.xpose.msra.mxu0 0.0
  %v4211 = vand.u32 %v4070, 4294901760
  %4212 = vmatpush.xpose.msra.mxu0 %v4211
  %v4213 = vand.u32 %v4068, 4294901760
  %4214 = vmatmul.f32.gmra.mxu0 %v4213
  %v4215 = vpop.f32.mrf.mxu0
  %v4216 = vadd.f32 %v4194, %v4215
  %4217 = vdwg.mxu0
  %v4218 = vmul.f32 %v4216, 0.17677669
  %4219 = vset.pattern.permute.xlu0 96
  %4220 = vperm.xlu0 %4219, %v3613
  %v4221 = vpop.permute.xlu0 %4220
  %v4223 = vsub.f32 %v4221, %v3812
  %4224 = vset.pattern.permute.xlu0 97
  %4225 = vperm.xlu0 %4224, %v3613
  %v4226 = vpop.permute.xlu0 %4225
  %v4228 = vsub.f32 %v4226, %v3818
  %v4229 = vmul.f32 %v4223, %v4223
  %v4230 = vmul.f32 %v4228, %v4228
  %v4231 = vadd.f32 %v4229, %v4230
  %4233 = vrot.lane.b32.xlu0 %v4231, 120
  %v4234 = vpop.permute.xlu0 %4233
  %v4236 = vsel %vm663, %v4234, 0.0
  %4237 = vadd.xlane.f32.xlu0 %v4236
  %v4238 = vpop.xlane.xlu0 %4237
  %v4239 = vrot.slane %v4238, 4
  %v4240 = vadd.f32 %v4238, %v4239
  %v4241 = vrot.slane %v4240, 2
  %v4242 = vadd.f32 %v4240, %v4241
  %v4243 = vrot.slane %v4242, 1
  %v4244 = vadd.f32 %v4242, %v4243
  %s4245 = vtos %v4244
  %v4246 = vrcp.pop 64.0
  %v4247 = vmul.f32 64.0, %v4246
  %v4248 = vsub.f32 1.0, %v4247
  %v4249 = vmul.f32 %v4246, %v4248
  %v4250 = vadd.f32 %v4246, %v4249
  %vm4251 = vweird.f32 %v4246
  %v4252 = vsel %vm4251, %v4246, %v4250
  %s4253 = vtos %v4252
  %s4254 = smul.f32 %s4245, %s4253
  %v4255 = vstv %s4254
  %v4256 = vsub.f32 %v4231, %v4255
  %v4257 = vmul.f32 %v4256, %v4256
  %4259 = vrot.lane.b32.xlu0 %v4257, 120
  %v4260 = vpop.permute.xlu0 %4259
  %v4262 = vsel %vm663, %v4260, 0.0
  %4263 = vadd.xlane.f32.xlu0 %v4262
  %v4264 = vpop.xlane.xlu0 %4263
  %v4265 = vrot.slane %v4264, 4
  %v4266 = vadd.f32 %v4264, %v4265
  %v4267 = vrot.slane %v4266, 2
  %v4268 = vadd.f32 %v4266, %v4267
  %v4269 = vrot.slane %v4268, 1
  %v4270 = vadd.f32 %v4268, %v4269
  %s4271 = vtos %v4270
  %v4272 = vrcp.pop 63.0
  %v4273 = vmul.f32 63.0, %v4272
  %v4274 = vsub.f32 1.0, %v4273
  %v4275 = vmul.f32 %v4272, %v4274
  %v4276 = vadd.f32 %v4272, %v4275
  %vm4277 = vweird.f32 %v4272
  %v4278 = vsel %vm4277, %v4272, %v4276
  %s4279 = vtos %v4278
  %s4280 = smul.f32 %s4271, %s4279
  %v4281 = vstv %s4280
  %v4282 = vrsqrt.pop %v4281
  %v4283 = vmul.f32 %v4282, %v4281
  %v4284 = vmul.f32 %v4283, %v4282
  %v4285 = vmul.f32 0.5, %v4284
  %v4286 = vsub.f32 1.5, %v4285
  %v4287 = vmul.f32 %v4282, %v4286
  %v4288 = vmul.f32 %v4281, %v4287
  %vm4289 = vcmp.eq.f32.partialorder %v4281, inf
  %v4290 = vsel %vm4289, %v4281, %v4288
  %vm4291 = vcmp.eq.f32.partialorder %v4281, 0.0
  %v4292 = vand.u32 %v4281, 2147483648
  %v4293 = vsel %vm4291, %v4292, %v4290
  %s4294 = vtos %v4293
  %s4295 = smul.f32 %s4294, 1.25
  %s4296 = sadd.f32 %s4254, %s4295
  %vm4297 = vcmp.eq.f32.partialorder %v4228, 0.0
  %vm4298 = vcmp.lt.f32.partialorder %v4223, 0.0
  %vm4299 = vmand %vm4297, %vm4298
  %v4300 = vstv %s4296
  %vm4301 = vcmp.le.f32.partialorder %v4231, %v4300
  %vm4302 = vmand %vm4301, %vm1146
  %vm4303 = vmxor %vm4299, 1
  %vm4304 = vmand %vm4302, %vm4303
  %vm4305 = vmor %vm4304, %vm1153
  %4307 = vrot.lane.b32.xlu0 %v4218, 8
  %v4308 = vpop.permute.xlu0 %4307
  %v4310 = vsel %vm4305, %v4308, -inf
  %v4311 = vsel %vm1160, %v4310, -inf
  %4312 = vmax.xlane.f32.xlu0 %v4311
  %v4313 = vpop.xlane.xlu0 %4312
  %v4314 = vsub.f32 %v4310, %v4313
  %v4315 = vmul.f32 %v4314, 1.442695
  %v4316 = vpow.pop %v4315
  %4318 = vrot.lane.b32.xlu0 %v4316, 120
  %v4319 = vpop.permute.xlu0 %4318
  %v4321 = vsel %vm663, %v4319, 0.0
  %4322 = vadd.xlane.f32.xlu0 %v4321
  %v4323 = vpop.xlane.xlu0 %4322
  %v4324 = vrcp.pop %v4323
  %v4325 = vmul.f32 %v4323, %v4324
  %v4326 = vsub.f32 1.0, %v4325
  %v4327 = vmul.f32 %v4324, %v4326
  %v4328 = vadd.f32 %v4324, %v4327
  %vm4329 = vweird.f32 %v4323
  %vm4330 = vweird.f32 %v4324
  %vm4331 = vmor %vm4329, %vm4330
  %v4332 = vsel %vm4331, %v4324, %v4328
  %v4333 = vand.u32 2147483647, %v4323
  %vm4334 = vcmp.eq.f32.partialorder %v4333, 8.507059e+37
  %v4335 = vand.u32 %v4323, 2147483648
  %v4336 = vor.u32 1.1754944e-38, %v4335
  %v4337 = vsel %vm4334, %v4336, %v4332
  %v4338 = vmul.f32 %v4316, %v4337
  %4340 = vrot.lane.b32.xlu0 %v4338, 120
  %v4341 = vpop.permute.xlu0 %4340
  %4342 = vrot.lane.b32.xlu0 %v3613, 64
  %v4343 = vpop.permute.xlu0 %4342
  %v4345 = vsel %vm663, %v4341, 0
  %4347 = vmatpush.msra.mxu0 0.0
  %4348 = vmatpush.msra.mxu0 0.0
  %4349 = vmatpush.msra.mxu0 0.0
  %4350 = vmatpush.msra.mxu0 0.0
  %4351 = vmatpush.msra.mxu0 0.0
  %4352 = vmatpush.msra.mxu0 0.0
  %4353 = vmatpush.msra.mxu0 0.0
  %4354 = vmatpush.msra.mxu0 0.0
  %4355 = vmatpush.msra.mxu0 0.0
  %4356 = vmatpush.msra.mxu0 0.0
  %4357 = vmatpush.msra.mxu0 0.0
  %4358 = vmatpush.msra.mxu0 0.0
  %4359 = vmatpush.msra.mxu0 0.0
  %4360 = vmatpush.msra.mxu0 0.0
  %4361 = vmatpush.msra.mxu0 0.0
  %v4362 = vand.u32 %v4343, 4294901760
  %4363 = vmatpush.msra.mxu0 %v4362
  %v4364 = vand.u32 %v4345, 4294901760
  %v4365 = vsub.f32 %v4345, %v4364
  %v4366 = vand.u32 %v4365, 4294901760
  %v4367 = vsub.f32 %v4365, %v4366
  %v4368 = vand.u32 %v4367, 4294901760
  %4369 = vmatmul.f32.gmra.mxu0 %v4368
  %v4370 = vpop.f32.mrf.mxu0
  %v4371 = vadd.f32 0.0, %v4370
  %4372 = vdwg.mxu0
  %4373 = vmatpush.msra.mxu0 0.0
  %4374 = vmatpush.msra.mxu0 0.0
  %4375 = vmatpush.msra.mxu0 0.0
  %4376 = vmatpush.msra.mxu0 0.0
  %4377 = vmatpush.msra.mxu0 0.0
  %4378 = vmatpush.msra.mxu0 0.0
  %4379 = vmatpush.msra.mxu0 0.0
  %4380 = vmatpush.msra.mxu0 0.0
  %4381 = vmatpush.msra.mxu0 0.0
  %4382 = vmatpush.msra.mxu0 0.0
  %4383 = vmatpush.msra.mxu0 0.0
  %4384 = vmatpush.msra.mxu0 0.0
  %4385 = vmatpush.msra.mxu0 0.0
  %4386 = vmatpush.msra.mxu0 0.0
  %4387 = vmatpush.msra.mxu0 0.0
  %v4388 = vand.u32 %v4343, 4294901760
  %v4389 = vsub.f32 %v4343, %v4388
  %v4390 = vand.u32 %v4389, 4294901760
  %v4391 = vsub.f32 %v4389, %v4390
  %v4392 = vand.u32 %v4391, 4294901760
  %4393 = vmatpush.msra.mxu0 %v4392
  %v4394 = vand.u32 %v4345, 4294901760
  %4395 = vmatmul.f32.gmra.mxu0 %v4394
  %v4396 = vpop.f32.mrf.mxu0
  %v4397 = vadd.f32 %v4371, %v4396
  %4398 = vdwg.mxu0
  %4399 = vmatpush.msra.mxu0 0.0
  %4400 = vmatpush.msra.mxu0 0.0
  %4401 = vmatpush.msra.mxu0 0.0
  %4402 = vmatpush.msra.mxu0 0.0
  %4403 = vmatpush.msra.mxu0 0.0
  %4404 = vmatpush.msra.mxu0 0.0
  %4405 = vmatpush.msra.mxu0 0.0
  %4406 = vmatpush.msra.mxu0 0.0
  %4407 = vmatpush.msra.mxu0 0.0
  %4408 = vmatpush.msra.mxu0 0.0
  %4409 = vmatpush.msra.mxu0 0.0
  %4410 = vmatpush.msra.mxu0 0.0
  %4411 = vmatpush.msra.mxu0 0.0
  %4412 = vmatpush.msra.mxu0 0.0
  %4413 = vmatpush.msra.mxu0 0.0
  %v4414 = vand.u32 %v4343, 4294901760
  %v4415 = vsub.f32 %v4343, %v4414
  %4416 = vmatpush.msra.mxu0 %v4415
  %v4417 = vand.u32 %v4345, 4294901760
  %v4418 = vsub.f32 %v4345, %v4417
  %4419 = vmatmul.f32.gmra.mxu0 %v4418
  %v4420 = vpop.f32.mrf.mxu0
  %v4421 = vadd.f32 %v4397, %v4420
  %4422 = vdwg.mxu0
  %4423 = vmatpush.msra.mxu0 0.0
  %4424 = vmatpush.msra.mxu0 0.0
  %4425 = vmatpush.msra.mxu0 0.0
  %4426 = vmatpush.msra.mxu0 0.0
  %4427 = vmatpush.msra.mxu0 0.0
  %4428 = vmatpush.msra.mxu0 0.0
  %4429 = vmatpush.msra.mxu0 0.0
  %4430 = vmatpush.msra.mxu0 0.0
  %4431 = vmatpush.msra.mxu0 0.0
  %4432 = vmatpush.msra.mxu0 0.0
  %4433 = vmatpush.msra.mxu0 0.0
  %4434 = vmatpush.msra.mxu0 0.0
  %4435 = vmatpush.msra.mxu0 0.0
  %4436 = vmatpush.msra.mxu0 0.0
  %4437 = vmatpush.msra.mxu0 0.0
  %v4438 = vand.u32 %v4343, 4294901760
  %4439 = vmatpush.msra.mxu0 %v4438
  %v4440 = vand.u32 %v4345, 4294901760
  %v4441 = vsub.f32 %v4345, %v4440
  %v4442 = vand.u32 %v4441, 4294901760
  %4443 = vmatmul.f32.gmra.mxu0 %v4442
  %v4444 = vpop.f32.mrf.mxu0
  %v4445 = vadd.f32 %v4421, %v4444
  %4446 = vdwg.mxu0
  %4447 = vmatpush.msra.mxu0 0.0
  %4448 = vmatpush.msra.mxu0 0.0
  %4449 = vmatpush.msra.mxu0 0.0
  %4450 = vmatpush.msra.mxu0 0.0
  %4451 = vmatpush.msra.mxu0 0.0
  %4452 = vmatpush.msra.mxu0 0.0
  %4453 = vmatpush.msra.mxu0 0.0
  %4454 = vmatpush.msra.mxu0 0.0
  %4455 = vmatpush.msra.mxu0 0.0
  %4456 = vmatpush.msra.mxu0 0.0
  %4457 = vmatpush.msra.mxu0 0.0
  %4458 = vmatpush.msra.mxu0 0.0
  %4459 = vmatpush.msra.mxu0 0.0
  %4460 = vmatpush.msra.mxu0 0.0
  %4461 = vmatpush.msra.mxu0 0.0
  %v4462 = vand.u32 %v4343, 4294901760
  %v4463 = vsub.f32 %v4343, %v4462
  %v4464 = vand.u32 %v4463, 4294901760
  %4465 = vmatpush.msra.mxu0 %v4464
  %v4466 = vand.u32 %v4345, 4294901760
  %4467 = vmatmul.f32.gmra.mxu0 %v4466
  %v4468 = vpop.f32.mrf.mxu0
  %v4469 = vadd.f32 %v4445, %v4468
  %4470 = vdwg.mxu0
  %4471 = vmatpush.msra.mxu0 0.0
  %4472 = vmatpush.msra.mxu0 0.0
  %4473 = vmatpush.msra.mxu0 0.0
  %4474 = vmatpush.msra.mxu0 0.0
  %4475 = vmatpush.msra.mxu0 0.0
  %4476 = vmatpush.msra.mxu0 0.0
  %4477 = vmatpush.msra.mxu0 0.0
  %4478 = vmatpush.msra.mxu0 0.0
  %4479 = vmatpush.msra.mxu0 0.0
  %4480 = vmatpush.msra.mxu0 0.0
  %4481 = vmatpush.msra.mxu0 0.0
  %4482 = vmatpush.msra.mxu0 0.0
  %4483 = vmatpush.msra.mxu0 0.0
  %4484 = vmatpush.msra.mxu0 0.0
  %4485 = vmatpush.msra.mxu0 0.0
  %v4486 = vand.u32 %v4343, 4294901760
  %4487 = vmatpush.msra.mxu0 %v4486
  %v4488 = vand.u32 %v4345, 4294901760
  %4489 = vmatmul.f32.gmra.mxu0 %v4488
  %v4490 = vpop.f32.mrf.mxu0
  %v4491 = vadd.f32 %v4469, %v4490
  %4492 = vdwg.mxu0
  %v4493 = vperm.slane %v3391, 1
  %v4495 = vsel %vm232, %v4064, 0
  %v4498 = vsel %vm232, %v4491, 0
  %4500 = vmatpush.msra.mxu0 0.0
  %4501 = vmatpush.msra.mxu0 0.0
  %4502 = vmatpush.msra.mxu0 0.0
  %4503 = vmatpush.msra.mxu0 0.0
  %4504 = vmatpush.msra.mxu0 0.0
  %4505 = vmatpush.msra.mxu0 0.0
  %4506 = vmatpush.msra.mxu0 0.0
  %4507 = vmatpush.msra.mxu0 0.0
  %4508 = vmatpush.msra.mxu0 0.0
  %4509 = vmatpush.msra.mxu0 0.0
  %4510 = vmatpush.msra.mxu0 0.0
  %4511 = vmatpush.msra.mxu0 0.0
  %v4512 = vand.u32 %v3388, 4294901760
  %4513 = vmatpush.msra.mxu0 %v4512
  %v4514 = vand.u32 %v3387, 4294901760
  %4515 = vmatpush.msra.mxu0 %v4514
  %v4516 = vand.u32 %v3386, 4294901760
  %4517 = vmatpush.msra.mxu0 %v4516
  %v4518 = vand.u32 %v3385, 4294901760
  %4519 = vmatpush.msra.mxu0 %v4518
  %v4520 = vand.u32 %v4495, 4294901760
  %v4521 = vsub.f32 %v4495, %v4520
  %v4522 = vand.u32 %v4521, 4294901760
  %v4523 = vsub.f32 %v4521, %v4522
  %v4524 = vand.u32 %v4523, 4294901760
  %4525 = vmatmul.f32.gmra.mxu0 %v4524
  %v4526 = vpop.f32.mrf.mxu0
  %v4527 = vadd.f32 %v4493, %v4526
  %v4528 = vand.u32 %v4498, 4294901760
  %v4529 = vsub.f32 %v4498, %v4528
  %v4530 = vand.u32 %v4529, 4294901760
  %v4531 = vsub.f32 %v4529, %v4530
  %v4532 = vand.u32 %v4531, 4294901760
  %4533 = vmatmul.f32.gmra.mxu0 %v4532
  %v4534 = vpop.f32.mrf.mxu0
  %v4535 = vadd.f32 %v4493, %v4534
  %4536 = vdwg.mxu0
  %4537 = vmatpush.msra.mxu0 0.0
  %4538 = vmatpush.msra.mxu0 0.0
  %4539 = vmatpush.msra.mxu0 0.0
  %4540 = vmatpush.msra.mxu0 0.0
  %4541 = vmatpush.msra.mxu0 0.0
  %4542 = vmatpush.msra.mxu0 0.0
  %4543 = vmatpush.msra.mxu0 0.0
  %4544 = vmatpush.msra.mxu0 0.0
  %4545 = vmatpush.msra.mxu0 0.0
  %4546 = vmatpush.msra.mxu0 0.0
  %4547 = vmatpush.msra.mxu0 0.0
  %4548 = vmatpush.msra.mxu0 0.0
  %v4549 = vand.u32 %v3388, 4294901760
  %v4550 = vsub.f32 %v3388, %v4549
  %v4551 = vand.u32 %v4550, 4294901760
  %v4552 = vsub.f32 %v4550, %v4551
  %v4553 = vand.u32 %v4552, 4294901760
  %4554 = vmatpush.msra.mxu0 %v4553
  %v4555 = vand.u32 %v3387, 4294901760
  %v4556 = vsub.f32 %v3387, %v4555
  %v4557 = vand.u32 %v4556, 4294901760
  %v4558 = vsub.f32 %v4556, %v4557
  %v4559 = vand.u32 %v4558, 4294901760
  %4560 = vmatpush.msra.mxu0 %v4559
  %v4561 = vand.u32 %v3386, 4294901760
  %v4562 = vsub.f32 %v3386, %v4561
  %v4563 = vand.u32 %v4562, 4294901760
  %v4564 = vsub.f32 %v4562, %v4563
  %v4565 = vand.u32 %v4564, 4294901760
  %4566 = vmatpush.msra.mxu0 %v4565
  %v4567 = vand.u32 %v3385, 4294901760
  %v4568 = vsub.f32 %v3385, %v4567
  %v4569 = vand.u32 %v4568, 4294901760
  %v4570 = vsub.f32 %v4568, %v4569
  %v4571 = vand.u32 %v4570, 4294901760
  %4572 = vmatpush.msra.mxu0 %v4571
  %v4573 = vand.u32 %v4495, 4294901760
  %4574 = vmatmul.f32.gmra.mxu0 %v4573
  %v4575 = vpop.f32.mrf.mxu0
  %v4576 = vadd.f32 %v4527, %v4575
  %v4577 = vand.u32 %v4498, 4294901760
  %4578 = vmatmul.f32.gmra.mxu0 %v4577
  %v4579 = vpop.f32.mrf.mxu0
  %v4580 = vadd.f32 %v4535, %v4579
  %4581 = vdwg.mxu0
  %4582 = vmatpush.msra.mxu0 0.0
  %4583 = vmatpush.msra.mxu0 0.0
  %4584 = vmatpush.msra.mxu0 0.0
  %4585 = vmatpush.msra.mxu0 0.0
  %4586 = vmatpush.msra.mxu0 0.0
  %4587 = vmatpush.msra.mxu0 0.0
  %4588 = vmatpush.msra.mxu0 0.0
  %4589 = vmatpush.msra.mxu0 0.0
  %4590 = vmatpush.msra.mxu0 0.0
  %4591 = vmatpush.msra.mxu0 0.0
  %4592 = vmatpush.msra.mxu0 0.0
  %4593 = vmatpush.msra.mxu0 0.0
  %v4594 = vand.u32 %v3388, 4294901760
  %v4595 = vsub.f32 %v3388, %v4594
  %4596 = vmatpush.msra.mxu0 %v4595
  %v4597 = vand.u32 %v3387, 4294901760
  %v4598 = vsub.f32 %v3387, %v4597
  %4599 = vmatpush.msra.mxu0 %v4598
  %v4600 = vand.u32 %v3386, 4294901760
  %v4601 = vsub.f32 %v3386, %v4600
  %4602 = vmatpush.msra.mxu0 %v4601
  %v4603 = vand.u32 %v3385, 4294901760
  %v4604 = vsub.f32 %v3385, %v4603
  %4605 = vmatpush.msra.mxu0 %v4604
  %v4606 = vand.u32 %v4495, 4294901760
  %v4607 = vsub.f32 %v4495, %v4606
  %4608 = vmatmul.f32.gmra.mxu0 %v4607
  %v4609 = vpop.f32.mrf.mxu0
  %v4610 = vadd.f32 %v4576, %v4609
  %v4611 = vand.u32 %v4498, 4294901760
  %v4612 = vsub.f32 %v4498, %v4611
  %4613 = vmatmul.f32.gmra.mxu0 %v4612
  %v4614 = vpop.f32.mrf.mxu0
  %v4615 = vadd.f32 %v4580, %v4614
  %4616 = vdwg.mxu0
  %4617 = vmatpush.msra.mxu0 0.0
  %4618 = vmatpush.msra.mxu0 0.0
  %4619 = vmatpush.msra.mxu0 0.0
  %4620 = vmatpush.msra.mxu0 0.0
  %4621 = vmatpush.msra.mxu0 0.0
  %4622 = vmatpush.msra.mxu0 0.0
  %4623 = vmatpush.msra.mxu0 0.0
  %4624 = vmatpush.msra.mxu0 0.0
  %4625 = vmatpush.msra.mxu0 0.0
  %4626 = vmatpush.msra.mxu0 0.0
  %4627 = vmatpush.msra.mxu0 0.0
  %4628 = vmatpush.msra.mxu0 0.0
  %v4629 = vand.u32 %v3388, 4294901760
  %4630 = vmatpush.msra.mxu0 %v4629
  %v4631 = vand.u32 %v3387, 4294901760
  %4632 = vmatpush.msra.mxu0 %v4631
  %v4633 = vand.u32 %v3386, 4294901760
  %4634 = vmatpush.msra.mxu0 %v4633
  %v4635 = vand.u32 %v3385, 4294901760
  %4636 = vmatpush.msra.mxu0 %v4635
  %v4637 = vand.u32 %v4495, 4294901760
  %v4638 = vsub.f32 %v4495, %v4637
  %v4639 = vand.u32 %v4638, 4294901760
  %4640 = vmatmul.f32.gmra.mxu0 %v4639
  %v4641 = vpop.f32.mrf.mxu0
  %v4642 = vadd.f32 %v4610, %v4641
  %v4643 = vand.u32 %v4498, 4294901760
  %v4644 = vsub.f32 %v4498, %v4643
  %v4645 = vand.u32 %v4644, 4294901760
  %4646 = vmatmul.f32.gmra.mxu0 %v4645
  %v4647 = vpop.f32.mrf.mxu0
  %v4648 = vadd.f32 %v4615, %v4647
  %4649 = vdwg.mxu0
  %4650 = vmatpush.msra.mxu0 0.0
  %4651 = vmatpush.msra.mxu0 0.0
  %4652 = vmatpush.msra.mxu0 0.0
  %4653 = vmatpush.msra.mxu0 0.0
  %4654 = vmatpush.msra.mxu0 0.0
  %4655 = vmatpush.msra.mxu0 0.0
  %4656 = vmatpush.msra.mxu0 0.0
  %4657 = vmatpush.msra.mxu0 0.0
  %4658 = vmatpush.msra.mxu0 0.0
  %4659 = vmatpush.msra.mxu0 0.0
  %4660 = vmatpush.msra.mxu0 0.0
  %4661 = vmatpush.msra.mxu0 0.0
  %v4662 = vand.u32 %v3388, 4294901760
  %v4663 = vsub.f32 %v3388, %v4662
  %v4664 = vand.u32 %v4663, 4294901760
  %4665 = vmatpush.msra.mxu0 %v4664
  %v4666 = vand.u32 %v3387, 4294901760
  %v4667 = vsub.f32 %v3387, %v4666
  %v4668 = vand.u32 %v4667, 4294901760
  %4669 = vmatpush.msra.mxu0 %v4668
  %v4670 = vand.u32 %v3386, 4294901760
  %v4671 = vsub.f32 %v3386, %v4670
  %v4672 = vand.u32 %v4671, 4294901760
  %4673 = vmatpush.msra.mxu0 %v4672
  %v4674 = vand.u32 %v3385, 4294901760
  %v4675 = vsub.f32 %v3385, %v4674
  %v4676 = vand.u32 %v4675, 4294901760
  %4677 = vmatpush.msra.mxu0 %v4676
  %v4678 = vand.u32 %v4495, 4294901760
  %4679 = vmatmul.f32.gmra.mxu0 %v4678
  %v4680 = vpop.f32.mrf.mxu0
  %v4681 = vadd.f32 %v4642, %v4680
  %v4682 = vand.u32 %v4498, 4294901760
  %4683 = vmatmul.f32.gmra.mxu0 %v4682
  %v4684 = vpop.f32.mrf.mxu0
  %v4685 = vadd.f32 %v4648, %v4684
  %4686 = vdwg.mxu0
  %4687 = vmatpush.msra.mxu0 0.0
  %4688 = vmatpush.msra.mxu0 0.0
  %4689 = vmatpush.msra.mxu0 0.0
  %4690 = vmatpush.msra.mxu0 0.0
  %4691 = vmatpush.msra.mxu0 0.0
  %4692 = vmatpush.msra.mxu0 0.0
  %4693 = vmatpush.msra.mxu0 0.0
  %4694 = vmatpush.msra.mxu0 0.0
  %4695 = vmatpush.msra.mxu0 0.0
  %4696 = vmatpush.msra.mxu0 0.0
  %4697 = vmatpush.msra.mxu0 0.0
  %4698 = vmatpush.msra.mxu0 0.0
  %v4699 = vand.u32 %v3388, 4294901760
  %4700 = vmatpush.msra.mxu0 %v4699
  %v4701 = vand.u32 %v3387, 4294901760
  %4702 = vmatpush.msra.mxu0 %v4701
  %v4703 = vand.u32 %v3386, 4294901760
  %4704 = vmatpush.msra.mxu0 %v4703
  %v4705 = vand.u32 %v3385, 4294901760
  %4706 = vmatpush.msra.mxu0 %v4705
  %v4707 = vand.u32 %v4495, 4294901760
  %4708 = vmatmul.f32.gmra.mxu0 %v4707
  %v4709 = vpop.f32.mrf.mxu0
  %v4710 = vadd.f32 %v4681, %v4709
  %v4711 = vand.u32 %v4498, 4294901760
  %4712 = vmatmul.f32.gmra.mxu0 %v4711
  %v4713 = vpop.f32.mrf.mxu0
  %v4714 = vadd.f32 %v4685, %v4713
  %4715 = vdwg.mxu0
  %v4716 = vmul.f32 %v3609, %v3609
  %v4717 = vmul.f32 %v3613, %v3613
  %4720 = vrot.lane.b32.xlu0 %v4716, 32
  %v4721 = vpop.permute.xlu0 %4720
  %4722 = vrot.lane.b32.xlu0 %v4717, 32
  %v4723 = vpop.permute.xlu0 %4722
  %v4726 = vsel %vm1576, %v4721, 0.0
  %4727 = vadd.xlane.f32.xlu0 %v4726
  %v4728 = vpop.xlane.xlu0 %4727
  %v4729 = vsel %vm1576, %v4723, 0.0
  %4730 = vadd.xlane.f32.xlu0 %v4729
  %v4731 = vpop.xlane.xlu0 %4730
  %v4732 = vmax.f32 %v4728, 1e-24
  %v4733 = vmax.f32 %v4731, 1e-24
  %v4734 = vrsqrt.pop %v4732
  %v4735 = vmul.f32 %v4734, %v4732
  %v4736 = vmul.f32 %v4735, %v4734
  %v4737 = vmul.f32 0.5, %v4736
  %v4738 = vsub.f32 1.5, %v4737
  %v4739 = vmul.f32 %v4734, %v4738
  %vm4740 = vweird.f32 %v4732
  %vm4741 = vweird.f32 %v4734
  %vm4742 = vmor %vm4740, %vm4741
  %v4743 = vsel %vm4742, %v4734, %v4739
  %v4744 = vrsqrt.pop %v4733
  %v4745 = vmul.f32 %v4744, %v4733
  %v4746 = vmul.f32 %v4745, %v4744
  %v4747 = vmul.f32 0.5, %v4746
  %v4748 = vsub.f32 1.5, %v4747
  %v4749 = vmul.f32 %v4744, %v4748
  %vm4750 = vweird.f32 %v4733
  %vm4751 = vweird.f32 %v4744
  %vm4752 = vmor %vm4750, %vm4751
  %v4753 = vsel %vm4752, %v4744, %v4749
  %v4754 = vmul.f32 %v3609, %v4743
  %v4755 = vmul.f32 %v3613, %v4753
  %v4756 = vperm.slane %v3391, 2
  %4759 = vrot.lane.b32.xlu0 %v4754, 32
  %v4760 = vpop.permute.xlu0 %4759
  %4761 = vrot.lane.b32.xlu0 %v4755, 32
  %v4762 = vpop.permute.xlu0 %4761
  %v4763 = vsel %vm1576, %v4760, 0
  %v4765 = vsel %vm1576, %v4762, 0
  %v4768 = vsel %vm1618, %v3389, 0
  %4770 = vmatpush.msra.mxu0 0.0
  %4771 = vmatpush.msra.mxu0 0.0
  %4772 = vmatpush.msra.mxu0 0.0
  %4773 = vmatpush.msra.mxu0 0.0
  %4774 = vmatpush.msra.mxu0 0.0
  %4775 = vmatpush.msra.mxu0 0.0
  %4776 = vmatpush.msra.mxu0 0.0
  %4777 = vmatpush.msra.mxu0 0.0
  %4778 = vmatpush.msra.mxu0 0.0
  %4779 = vmatpush.msra.mxu0 0.0
  %4780 = vmatpush.msra.mxu0 0.0
  %4781 = vmatpush.msra.mxu0 0.0
  %4782 = vmatpush.msra.mxu0 0.0
  %4783 = vmatpush.msra.mxu0 0.0
  %4784 = vmatpush.msra.mxu0 0.0
  %v4785 = vand.u32 %v4768, 4294901760
  %4786 = vmatpush.msra.mxu0 %v4785
  %v4787 = vand.u32 %v4763, 4294901760
  %v4788 = vsub.f32 %v4763, %v4787
  %v4789 = vand.u32 %v4788, 4294901760
  %v4790 = vsub.f32 %v4788, %v4789
  %v4791 = vand.u32 %v4790, 4294901760
  %4792 = vmatmul.f32.gmra.mxu0 %v4791
  %v4793 = vpop.f32.mrf.mxu0
  %v4794 = vadd.f32 %v4756, %v4793
  %v4795 = vand.u32 %v4765, 4294901760
  %v4796 = vsub.f32 %v4765, %v4795
  %v4797 = vand.u32 %v4796, 4294901760
  %v4798 = vsub.f32 %v4796, %v4797
  %v4799 = vand.u32 %v4798, 4294901760
  %4800 = vmatmul.f32.gmra.mxu0 %v4799
  %v4801 = vpop.f32.mrf.mxu0
  %v4802 = vadd.f32 %v4756, %v4801
  %4803 = vdwg.mxu0
  %4804 = vmatpush.msra.mxu0 0.0
  %4805 = vmatpush.msra.mxu0 0.0
  %4806 = vmatpush.msra.mxu0 0.0
  %4807 = vmatpush.msra.mxu0 0.0
  %4808 = vmatpush.msra.mxu0 0.0
  %4809 = vmatpush.msra.mxu0 0.0
  %4810 = vmatpush.msra.mxu0 0.0
  %4811 = vmatpush.msra.mxu0 0.0
  %4812 = vmatpush.msra.mxu0 0.0
  %4813 = vmatpush.msra.mxu0 0.0
  %4814 = vmatpush.msra.mxu0 0.0
  %4815 = vmatpush.msra.mxu0 0.0
  %4816 = vmatpush.msra.mxu0 0.0
  %4817 = vmatpush.msra.mxu0 0.0
  %4818 = vmatpush.msra.mxu0 0.0
  %v4819 = vand.u32 %v4768, 4294901760
  %v4820 = vsub.f32 %v4768, %v4819
  %v4821 = vand.u32 %v4820, 4294901760
  %v4822 = vsub.f32 %v4820, %v4821
  %v4823 = vand.u32 %v4822, 4294901760
  %4824 = vmatpush.msra.mxu0 %v4823
  %v4825 = vand.u32 %v4763, 4294901760
  %4826 = vmatmul.f32.gmra.mxu0 %v4825
  %v4827 = vpop.f32.mrf.mxu0
  %v4828 = vadd.f32 %v4794, %v4827
  %v4829 = vand.u32 %v4765, 4294901760
  %4830 = vmatmul.f32.gmra.mxu0 %v4829
  %v4831 = vpop.f32.mrf.mxu0
  %v4832 = vadd.f32 %v4802, %v4831
  %4833 = vdwg.mxu0
  %4834 = vmatpush.msra.mxu0 0.0
  %4835 = vmatpush.msra.mxu0 0.0
  %4836 = vmatpush.msra.mxu0 0.0
  %4837 = vmatpush.msra.mxu0 0.0
  %4838 = vmatpush.msra.mxu0 0.0
  %4839 = vmatpush.msra.mxu0 0.0
  %4840 = vmatpush.msra.mxu0 0.0
  %4841 = vmatpush.msra.mxu0 0.0
  %4842 = vmatpush.msra.mxu0 0.0
  %4843 = vmatpush.msra.mxu0 0.0
  %4844 = vmatpush.msra.mxu0 0.0
  %4845 = vmatpush.msra.mxu0 0.0
  %4846 = vmatpush.msra.mxu0 0.0
  %4847 = vmatpush.msra.mxu0 0.0
  %4848 = vmatpush.msra.mxu0 0.0
  %v4849 = vand.u32 %v4768, 4294901760
  %v4850 = vsub.f32 %v4768, %v4849
  %4851 = vmatpush.msra.mxu0 %v4850
  %v4852 = vand.u32 %v4763, 4294901760
  %v4853 = vsub.f32 %v4763, %v4852
  %4854 = vmatmul.f32.gmra.mxu0 %v4853
  %v4855 = vpop.f32.mrf.mxu0
  %v4856 = vadd.f32 %v4828, %v4855
  %v4857 = vand.u32 %v4765, 4294901760
  %v4858 = vsub.f32 %v4765, %v4857
  %4859 = vmatmul.f32.gmra.mxu0 %v4858
  %v4860 = vpop.f32.mrf.mxu0
  %v4861 = vadd.f32 %v4832, %v4860
  %4862 = vdwg.mxu0
  %4863 = vmatpush.msra.mxu0 0.0
  %4864 = vmatpush.msra.mxu0 0.0
  %4865 = vmatpush.msra.mxu0 0.0
  %4866 = vmatpush.msra.mxu0 0.0
  %4867 = vmatpush.msra.mxu0 0.0
  %4868 = vmatpush.msra.mxu0 0.0
  %4869 = vmatpush.msra.mxu0 0.0
  %4870 = vmatpush.msra.mxu0 0.0
  %4871 = vmatpush.msra.mxu0 0.0
  %4872 = vmatpush.msra.mxu0 0.0
  %4873 = vmatpush.msra.mxu0 0.0
  %4874 = vmatpush.msra.mxu0 0.0
  %4875 = vmatpush.msra.mxu0 0.0
  %4876 = vmatpush.msra.mxu0 0.0
  %4877 = vmatpush.msra.mxu0 0.0
  %v4878 = vand.u32 %v4768, 4294901760
  %4879 = vmatpush.msra.mxu0 %v4878
  %v4880 = vand.u32 %v4763, 4294901760
  %v4881 = vsub.f32 %v4763, %v4880
  %v4882 = vand.u32 %v4881, 4294901760
  %4883 = vmatmul.f32.gmra.mxu0 %v4882
  %v4884 = vpop.f32.mrf.mxu0
  %v4885 = vadd.f32 %v4856, %v4884
  %v4886 = vand.u32 %v4765, 4294901760
  %v4887 = vsub.f32 %v4765, %v4886
  %v4888 = vand.u32 %v4887, 4294901760
  %4889 = vmatmul.f32.gmra.mxu0 %v4888
  %v4890 = vpop.f32.mrf.mxu0
  %v4891 = vadd.f32 %v4861, %v4890
  %4892 = vdwg.mxu0
  %4893 = vmatpush.msra.mxu0 0.0
  %4894 = vmatpush.msra.mxu0 0.0
  %4895 = vmatpush.msra.mxu0 0.0
  %4896 = vmatpush.msra.mxu0 0.0
  %4897 = vmatpush.msra.mxu0 0.0
  %4898 = vmatpush.msra.mxu0 0.0
  %4899 = vmatpush.msra.mxu0 0.0
  %4900 = vmatpush.msra.mxu0 0.0
  %4901 = vmatpush.msra.mxu0 0.0
  %4902 = vmatpush.msra.mxu0 0.0
  %4903 = vmatpush.msra.mxu0 0.0
  %4904 = vmatpush.msra.mxu0 0.0
  %4905 = vmatpush.msra.mxu0 0.0
  %4906 = vmatpush.msra.mxu0 0.0
  %4907 = vmatpush.msra.mxu0 0.0
  %v4908 = vand.u32 %v4768, 4294901760
  %v4909 = vsub.f32 %v4768, %v4908
  %v4910 = vand.u32 %v4909, 4294901760
  %4911 = vmatpush.msra.mxu0 %v4910
  %v4912 = vand.u32 %v4763, 4294901760
  %4913 = vmatmul.f32.gmra.mxu0 %v4912
  %v4914 = vpop.f32.mrf.mxu0
  %v4915 = vadd.f32 %v4885, %v4914
  %v4916 = vand.u32 %v4765, 4294901760
  %4917 = vmatmul.f32.gmra.mxu0 %v4916
  %v4918 = vpop.f32.mrf.mxu0
  %v4919 = vadd.f32 %v4891, %v4918
  %4920 = vdwg.mxu0
  %4921 = vmatpush.msra.mxu0 0.0
  %4922 = vmatpush.msra.mxu0 0.0
  %4923 = vmatpush.msra.mxu0 0.0
  %4924 = vmatpush.msra.mxu0 0.0
  %4925 = vmatpush.msra.mxu0 0.0
  %4926 = vmatpush.msra.mxu0 0.0
  %4927 = vmatpush.msra.mxu0 0.0
  %4928 = vmatpush.msra.mxu0 0.0
  %4929 = vmatpush.msra.mxu0 0.0
  %4930 = vmatpush.msra.mxu0 0.0
  %4931 = vmatpush.msra.mxu0 0.0
  %4932 = vmatpush.msra.mxu0 0.0
  %4933 = vmatpush.msra.mxu0 0.0
  %4934 = vmatpush.msra.mxu0 0.0
  %4935 = vmatpush.msra.mxu0 0.0
  %v4936 = vand.u32 %v4768, 4294901760
  %4937 = vmatpush.msra.mxu0 %v4936
  %v4938 = vand.u32 %v4763, 4294901760
  %4939 = vmatmul.f32.gmra.mxu0 %v4938
  %v4940 = vpop.f32.mrf.mxu0
  %v4941 = vadd.f32 %v4915, %v4940
  %v4942 = vand.u32 %v4765, 4294901760
  %4943 = vmatmul.f32.gmra.mxu0 %v4942
  %v4944 = vpop.f32.mrf.mxu0
  %v4945 = vadd.f32 %v4919, %v4944
  %4946 = vdwg.mxu0
  %v4947 = vadd.f32 %v3377, %v4710
  %v4948 = vadd.f32 %v3378, %v4714
  %v4949 = vmul.f32 %v4941, 0.1
  %v4950 = vmul.f32 %v4945, 0.1
  %v4951 = vadd.f32 %v4947, %v4949
  %v4952 = vadd.f32 %v4948, %v4950
  %v4953 = vld [vmem:[%s5] sm:$0xff]
  %v4954 = vld [vmem:[%s5 + $0x8] sm:$0xff]
  %v4955 = vld [vmem:[%s5 + $0x10] sm:$0xff]
  %v4956 = vld [vmem:[%s5 + $0x18] sm:$0xff]
  %v4957 = vld [vmem:[%s5 + $0x20] sm:$0x1]
  %v4958 = vperm.slane %v4957, 0
  %v4960 = vsel %vm232, %v4951, 0
  %v4963 = vsel %vm232, %v4952, 0
  %4965 = vmatpush.msra.mxu0 0.0
  %4966 = vmatpush.msra.mxu0 0.0
  %4967 = vmatpush.msra.mxu0 0.0
  %4968 = vmatpush.msra.mxu0 0.0
  %4969 = vmatpush.msra.mxu0 0.0
  %4970 = vmatpush.msra.mxu0 0.0
  %4971 = vmatpush.msra.mxu0 0.0
  %4972 = vmatpush.msra.mxu0 0.0
  %4973 = vmatpush.msra.mxu0 0.0
  %4974 = vmatpush.msra.mxu0 0.0
  %4975 = vmatpush.msra.mxu0 0.0
  %4976 = vmatpush.msra.mxu0 0.0
  %4977 = vmatpush.msra.mxu0 %v4956
  %4978 = vmatpush.msra.mxu0 %v4955
  %4979 = vmatpush.msra.mxu0 %v4954
  %4980 = vmatpush.msra.mxu0 %v4953
  %4981 = vmatmul.f32.gmra.mxu0 %v4960
  %v4982 = vpop.f32.mrf.mxu0
  %v4983 = vadd.f32 %v4958, %v4982
  %4984 = vmatmul.f32.gmra.mxu0 %v4963
  %v4985 = vpop.f32.mrf.mxu0
  %v4986 = vadd.f32 %v4958, %v4985
  %4987 = vdwg.mxu0
  %4988 = vst [vmem:[%s6] sm:$0xff] %v4983
  %4989 = vst [vmem:[%s6 + $0x8] sm:$0xff] %v4986
  // Predicated region
  $region26: #{financial_quantum_forward.1} parent=0 // pred_check
    _
  $region27: #{financial_quantum_forward.1} parent=0 // pred_check_branch
    %4991 = sbr.rel (0) target = $region29
  $region28: #{financial_quantum_forward.1} parent=0 // pred_region
    _
  $region29: #{financial_quantum_forward.1} parent=0 // pred_fallthru
    _
  // Predicated region
  $region30: #{financial_quantum_forward.1} parent=0 // pred_check
    _
  $region31: #{financial_quantum_forward.1} parent=0 // pred_check_branch
    %4993 = sbr.rel (0) target = $region33
  $region32: #{financial_quantum_forward.1} parent=0 // pred_region
    _
  $region33: #{financial_quantum_forward.1} parent=0 // pred_fallthru
    _

</llo_original>
